<compile_context>
chip_gen: v6e
topology: v6e:2x2x1
jax: 0.10.0
libtpu: 0.0.40
codegen_flags: <defaults>
</compile_context>

<pallas_src>
import jax
import jax.numpy as jnp
from jax.experimental import pallas as pl
from jax.experimental.pallas import tpu as pltpu


# ---------------------------------------------------------------------------
# LeNet geometry (fixed by the PyTorch module: 3x32x32 input)
# ---------------------------------------------------------------------------
KH = KW = 5
H1, W1, C1, OC1 = 32, 32, 3, 6          # conv1: 3x32x32 -> 6x28x28
OH1 = OW1 = H1 - KH + 1                 # 28
PH1 = PW1 = OH1 // 2                    # 14
H2, W2, C2, OC2 = PH1, PW1, OC1, 16     # conv2: 6x14x14 -> 16x10x10
OH2 = OW2 = H2 - KH + 1                 # 10
PH2 = PW2 = OH2 // 2                    # 5
LANE = 128                              # padded lane width (input K / fc width)
KBIG = KH * LANE                        # 640: stacked-kh (and fc1) contraction width
NCONV = 2 * LANE                        # 256: conv output lanes (two parity halves)
R1 = H1                                 # rows/sample at conv1 stage (32, 28 valid out)
R2 = H1 // 2                            # rows/sample after pool1 (16, 14 valid)
R3 = H1 // 4                            # rows/sample after pool2 (8, 5 valid)


# ---------------------------------------------------------------------------
# Fused Pallas kernel: one grid step = TB samples through the whole network
# ---------------------------------------------------------------------------
def _lenet_kernel(x_ref, b1_ref, c1b_ref, b2_ref, c2b_ref, g_ref, f1b_ref,
                  w2_ref, f2b_ref, w3_ref, f3b_ref, o_ref,
                  xb_ref, t1_ref, p1_ref, x2b_ref, t2_ref, p2_ref, fc_ref):
    f32, bf16 = jnp.float32, jnp.bfloat16
    TB = o_ref.shape[0]
    M1, M2, M3 = TB * R1, TB * R2, TB * R3

    # ---- conv1 + bias + ReLU + 2x2 max-pool --------------------------------
    # Stage the KH row-shifted copies of the input side by side (lane blocks
    # of 128) so the whole conv is ONE (M1, 640) x (640, 256) MXU matmul.
    for kh in range(KH):
        xb_ref[pl.ds(0, M1 - kh), pl.ds(kh * LANE, LANE)] = \
            x_ref[pl.ds(kh, M1 - kh), :]
    # Tail rows only feed discarded per-sample rows; zero them so no stale
    # VMEM (potential NaN) ever enters the pipeline.
    xb_ref[pl.ds(M1 - (KH - 1), KH - 1), :] = jnp.zeros((KH - 1, KBIG), f32)

    acc = jnp.dot(xb_ref[...].astype(bf16), b1_ref[...],
                  preferred_element_type=f32)                    # (M1, 256)
    acc = jnp.maximum(acc + c1b_ref[...], 0.0)
    # pool over ow: parity halves are lane-aligned at 0 / 128 -> per-lane max
    t1_ref[...] = jnp.maximum(acc[:, :LANE], acc[:, LANE:])      # (M1, 128)
    # pool over oh: stride-2 sublane reads (per-sample blocks of 32 rows)
    p1_ref[...] = jnp.maximum(t1_ref[pl.ds(0, M2, 2), :],
                              t1_ref[pl.ds(1, M2, 2), :])        # (M2, 128)

    # ---- conv2 + bias + ReLU + 2x2 max-pool (same single-matmul scheme) ----
    for kh in range(KH):
        x2b_ref[pl.ds(0, M2 - kh), pl.ds(kh * LANE, LANE)] = \
            p1_ref[pl.ds(kh, M2 - kh), :]
    x2b_ref[pl.ds(M2 - (KH - 1), KH - 1), :] = jnp.zeros((KH - 1, KBIG), f32)

    acc = jnp.dot(x2b_ref[...].astype(bf16), b2_ref[...],
                  preferred_element_type=f32)                    # (M2, 256)
    acc = jnp.maximum(acc + c2b_ref[...], 0.0)
    t2_ref[...] = jnp.maximum(acc[:, :LANE], acc[:, LANE:])      # (M2, 128)
    p2_ref[...] = jnp.maximum(t2_ref[pl.ds(0, M3, 2), :],
                              t2_ref[pl.ds(1, M3, 2), :])        # (M3, 128)

    # ---- flatten: per-sample (5 x 128) pooled rows -> one 640-lane row ------
    for ph in range(PH2):
        fc_ref[:, pl.ds(ph * LANE, LANE)] = p2_ref[pl.ds(ph, TB, R3), :]

    # ---- fc1 + ReLU -> fc2 + ReLU -> fc3 (batched, lane-padded to 128) ------
    h = jnp.dot(fc_ref[...].astype(bf16), g_ref[...], preferred_element_type=f32)
    h = jnp.maximum(h + f1b_ref[...], 0.0)                       # lanes >=120 stay 0
    h = jnp.dot(h.astype(bf16), w2_ref[...], preferred_element_type=f32)
    h = jnp.maximum(h + f2b_ref[...], 0.0)                       # lanes >=84 stay 0
    h = jnp.dot(h.astype(bf16), w3_ref[...], preferred_element_type=f32)
    o_ref[...] = h + f3b_ref[...]                                # (TB, 128)


# ---------------------------------------------------------------------------
# One-time parameter repacking (PyTorch layouts -> kernel layouts)
# ---------------------------------------------------------------------------
def _banded_conv_weight(w, w_in):
    """Pack conv weight (OC, C, KH, KW) into a (KH*128, 256) banded matmul weight.

    Row index : kh*128 + (ow + kw)*C + c       (input lane layout w*C + c, K pad 128)
    Col index : (ow % 2)*128 + (ow // 2)*OC + oc
                (parity-split over ow, lane-aligned so the 2x2 pool over ow is
                 a per-lane max of two 128-lane halves)
    """
    oc_n, c_n, kh_n, kw_n = w.shape
    ow_n = w_in - kw_n + 1
    ow = jnp.arange(ow_n)[:, None, None, None]
    kw = jnp.arange(kw_n)[None, :, None, None]
    c = jnp.arange(c_n)[None, None, :, None]
    oc = jnp.arange(oc_n)[None, None, None, :]
    shape = (ow_n, kw_n, c_n, oc_n)
    rows = jnp.broadcast_to((ow + kw) * c_n + c, shape).reshape(-1)
    cols = jnp.broadcast_to((ow % 2) * LANE + (ow // 2) * oc_n + oc,
                            shape).reshape(-1)
    mats = []
    for kh in range(kh_n):
        vals = jnp.broadcast_to(w[:, :, kh, :].transpose(2, 1, 0)[None],
                                shape).reshape(-1)
        mats.append(jnp.zeros((LANE, NCONV), jnp.float32).at[rows, cols].set(vals))
    return jnp.concatenate(mats, axis=0).astype(jnp.bfloat16)    # (KH*128, 256)


def _conv_bias_row(b, ow_n):
    pw_n = ow_n // 2
    half = jnp.zeros((LANE,), jnp.float32).at[: pw_n * b.shape[0]].set(
        jnp.tile(b.astype(jnp.float32), pw_n))
    return jnp.concatenate([half, half]).reshape(1, NCONV)


def _fc1_packed(w):
    """fc1 weight (120, 400 = oc*25 + ph*5 + pw) -> (PH2*128 = 640, 128) bf16
    in the kernel's flattened layout: row ph*128 + pw*OC2 + oc, col k."""
    k = w.shape[0]                                    # 120
    w4 = w.reshape(k, OC2, PH2, PW2)                  # [k, oc, ph, pw]
    g = jnp.transpose(w4, (2, 3, 1, 0))               # [ph, pw, oc, k]
    g = g.reshape(PH2, PW2 * OC2, k)
    g = jnp.pad(g, ((0, 0), (0, LANE - PW2 * OC2), (0, LANE - k)))
    return g.reshape(PH2 * LANE, LANE).astype(jnp.bfloat16)


def _pad_fc_weight(w):
    wt = w.T.astype(jnp.float32)
    return jnp.pad(wt, ((0, LANE - wt.shape[0]),
                        (0, LANE - wt.shape[1]))).astype(jnp.bfloat16)


def _pad_bias(b):
    return jnp.pad(b.astype(jnp.float32), (0, LANE - b.shape[0])).reshape(1, LANE)


def pack_params(params):
    return {
        "b1": _banded_conv_weight(params["conv1_w"], W1),
        "c1b": _conv_bias_row(params["conv1_b"], OW1),
        "b2": _banded_conv_weight(params["conv2_w"], W2),
        "c2b": _conv_bias_row(params["conv2_b"], OW2),
        "g": _fc1_packed(params["fc1_w"]),
        "f1b": _pad_bias(params["fc1_b"]),
        "w2": _pad_fc_weight(params["fc2_w"]),
        "f2b": _pad_bias(params["fc2_b"]),
        "w3": _pad_fc_weight(params["fc3_w"]),
        "f3b": _pad_bias(params["fc3_b"]),
    }


# ---------------------------------------------------------------------------
# Forward pass
# ---------------------------------------------------------------------------
def _round_up(a, b):
    return (a + b - 1) // b * b


@jax.jit
def net_forward(packed, x):
    n = x.shape[0]
    tb = min(_round_up(n, 8), 32)               # batch tile per grid step
    n_pad = _round_up(n, tb)

    # NCHW -> flat per-sample rows: row = b*32 + h, lane = w*3 + c (pad to 128)
    xr = jnp.transpose(x, (0, 2, 3, 1)).reshape(n, H1, W1 * C1)
    xr = jnp.pad(xr, ((0, n_pad - n), (0, 0), (0, LANE - W1 * C1)))
    xr = xr.reshape(n_pad * H1, LANE).astype(jnp.float32)

    fixed2 = lambda i: (0, 0)
    out = pl.pallas_call(
        _lenet_kernel,
        grid=(n_pad // tb,),
        in_specs=[
            pl.BlockSpec((tb * R1, LANE), lambda i: (i, 0)),  # input rows per tile
            pl.BlockSpec((KBIG, NCONV), fixed2),              # conv1 banded weight
            pl.BlockSpec((1, NCONV), fixed2),                 # conv1 bias row
            pl.BlockSpec((KBIG, NCONV), fixed2),              # conv2 banded weight
            pl.BlockSpec((1, NCONV), fixed2),                 # conv2 bias row
            pl.BlockSpec((KBIG, LANE), fixed2),               # fc1 weight (640,128)
            pl.BlockSpec((1, LANE), fixed2),                  # fc1 bias
            pl.BlockSpec((LANE, LANE), fixed2),               # fc2 weight
            pl.BlockSpec((1, LANE), fixed2),                  # fc2 bias
            pl.BlockSpec((LANE, LANE), fixed2),               # fc3 weight
            pl.BlockSpec((1, LANE), fixed2),                  # fc3 bias
        ],
        out_specs=pl.BlockSpec((tb, LANE), lambda i: (i, 0)),
        out_shape=jax.ShapeDtypeStruct((n_pad, LANE), jnp.float32),
        scratch_shapes=[
            pltpu.VMEM((tb * R1, KBIG), jnp.float32),   # xb : conv1 staged input
            pltpu.VMEM((tb * R1, LANE), jnp.float32),   # t1 : conv1 ow-pooled
            pltpu.VMEM((tb * R2, LANE), jnp.float32),   # p1 : pool1 output
            pltpu.VMEM((tb * R2, KBIG), jnp.float32),   # x2b: conv2 staged input
            pltpu.VMEM((tb * R2, LANE), jnp.float32),   # t2 : conv2 ow-pooled
            pltpu.VMEM((tb * R3, LANE), jnp.float32),   # p2 : pool2 output
            pltpu.VMEM((tb, KBIG), jnp.float32),        # fc : flattened fc1 input
        ],
        compiler_params=pltpu.CompilerParams(
            dimension_semantics=("parallel",),
            vmem_limit_bytes=32 * 1024 * 1024),
    )(xr, packed["b1"], packed["c1b"], packed["b2"], packed["c2b"],
      packed["g"], packed["f1b"], packed["w2"], packed["f2b"],
      packed["w3"], packed["f3b"])
    return out[:n, :10]


# ---------------------------------------------------------------------------
# Params + pure-JAX reference (for a loose numerical check)
# ---------------------------------------------------------------------------
def init_params(key):
    ks = jax.random.split(key, 10)

    def uniform(k, shape, fan_in):
        bound = 1.0 / jnp.sqrt(fan_in)
        return jax.random.uniform(k, shape, jnp.float32, -bound, bound)

    return {
        "conv1_w": uniform(ks[0], (6, 3, 5, 5), 3 * 5 * 5),
        "conv1_b": uniform(ks[1], (6,), 3 * 5 * 5),
        "conv2_w": uniform(ks[2], (16, 6, 5, 5), 6 * 5 * 5),
        "conv2_b": uniform(ks[3], (16,), 6 * 5 * 5),
        "fc1_w": uniform(ks[4], (120, 16 * 5 * 5), 16 * 5 * 5),
        "fc1_b": uniform(ks[5], (120,), 16 * 5 * 5),
        "fc2_w": uniform(ks[6], (84, 120), 120),
        "fc2_b": uniform(ks[7], (84,), 120),
        "fc3_w": uniform(ks[8], (10, 84), 84),
        "fc3_b": uniform(ks[9], (10,), 84),
    }


def net_reference(params, x):
    def conv(x, w, b):
        y = jax.lax.conv_general_dilated(
            x, w, (1, 1), "VALID",
            dimension_numbers=("NCHW", "OIHW", "NCHW"),
            precision=jax.lax.Precision.HIGHEST)
        return jax.nn.relu(y + b[None, :, None, None])

    def pool(y):
        n, c, h, w = y.shape
        return y.reshape(n, c, h // 2, 2, w // 2, 2).max(axis=(3, 5))

    x = pool(conv(x, params["conv1_w"], params["conv1_b"]))
    x = pool(conv(x, params["conv2_w"], params["conv2_b"]))
    x = x.reshape(x.shape[0], -1)
    x = jax.nn.relu(x @ params["fc1_w"].T + params["fc1_b"])
    x = jax.nn.relu(x @ params["fc2_w"].T + params["fc2_b"])
    return x @ params["fc3_w"].T + params["fc3_b"]


if __name__ == "__main__":
    key = jax.random.PRNGKey(0)
    pkey, xkey = jax.random.split(key)
    params = init_params(pkey)
    packed = pack_params(params)
    # Forward pass implies 3x32x32 inputs (16*5*5 = 400 flatten). batch=2.
    x = jax.random.normal(xkey, (2, 3, 32, 32), dtype=jnp.float32)

    out = jax.block_until_ready(net_forward(packed, x))
    assert out.shape == (2, 10) and out.dtype == jnp.float32

    ref = jax.block_until_ready(net_reference(params, x))
    max_err = float(jnp.max(jnp.abs(out - ref)))
    assert jnp.allclose(out, ref, atol=5e-2, rtol=5e-2), f"max abs err {max_err}"
    print("KERNEL_OK")
</pallas_src>

<mosaic_0001>
module attributes {stable_mosaic.version = 11 : i64} {
  func.func @_lenet_kernel(%arg0: i32, %arg1: memref<256x128xf32, #tpu.memory_space<vmem>>, %arg2: memref<640x256xbf16, #tpu.memory_space<vmem>>, %arg3: memref<1x256xf32, #tpu.memory_space<vmem>>, %arg4: memref<640x256xbf16, #tpu.memory_space<vmem>>, %arg5: memref<1x256xf32, #tpu.memory_space<vmem>>, %arg6: memref<640x128xbf16, #tpu.memory_space<vmem>>, %arg7: memref<1x128xf32, #tpu.memory_space<vmem>>, %arg8: memref<128x128xbf16, #tpu.memory_space<vmem>>, %arg9: memref<1x128xf32, #tpu.memory_space<vmem>>, %arg10: memref<128x128xbf16, #tpu.memory_space<vmem>>, %arg11: memref<1x128xf32, #tpu.memory_space<vmem>>, %arg12: memref<8x128xf32, #tpu.memory_space<vmem>>, %arg13: memref<256x640xf32, #tpu.memory_space<vmem>>, %arg14: memref<256x128xf32, #tpu.memory_space<vmem>>, %arg15: memref<128x128xf32, #tpu.memory_space<vmem>>, %arg16: memref<128x640xf32, #tpu.memory_space<vmem>>, %arg17: memref<128x128xf32, #tpu.memory_space<vmem>>, %arg18: memref<64x128xf32, #tpu.memory_space<vmem>>, %arg19: memref<8x640xf32, #tpu.memory_space<vmem>>) attributes {dimension_semantics = [#tpu.dimension_semantics<parallel>], iteration_bounds = array<i64: 1>, scalar_prefetch = 0 : i64, scratch_operands = 7 : i64, tpu.core_type = #tpu.core_type<tc>, window_params = [{transform_indices = @transform_0, window_bounds = array<i64: 256, 128>}, {pipeline_mode = #tpu.pipeline_mode<synchronous>, transform_indices = @transform_1, window_bounds = array<i64: 640, 256>}, {pipeline_mode = #tpu.pipeline_mode<synchronous>, transform_indices = @transform_2, window_bounds = array<i64: 1, 256>}, {pipeline_mode = #tpu.pipeline_mode<synchronous>, transform_indices = @transform_3, window_bounds = array<i64: 640, 256>}, {pipeline_mode = #tpu.pipeline_mode<synchronous>, transform_indices = @transform_4, window_bounds = array<i64: 1, 256>}, {pipeline_mode = #tpu.pipeline_mode<synchronous>, transform_indices = @transform_5, window_bounds = array<i64: 640, 128>}, {pipeline_mode = #tpu.pipeline_mode<synchronous>, transform_indices = @transform_6, window_bounds = array<i64: 1, 128>}, {pipeline_mode = #tpu.pipeline_mode<synchronous>, transform_indices = @transform_7, window_bounds = array<i64: 128, 128>}, {pipeline_mode = #tpu.pipeline_mode<synchronous>, transform_indices = @transform_8, window_bounds = array<i64: 1, 128>}, {pipeline_mode = #tpu.pipeline_mode<synchronous>, transform_indices = @transform_9, window_bounds = array<i64: 128, 128>}, {pipeline_mode = #tpu.pipeline_mode<synchronous>, transform_indices = @transform_10, window_bounds = array<i64: 1, 128>}, {transform_indices = @transform_11, window_bounds = array<i64: 8, 128>}]} {
    %c0 = arith.constant 0 : index
    %c0_0 = arith.constant 0 : index
    %0 = vector.load %arg1[%c0, %c0_0] : memref<256x128xf32, #tpu.memory_space<vmem>>, vector<256x128xf32>
    %c0_1 = arith.constant 0 : index
    %c0_2 = arith.constant 0 : index
    %1 = vector.load %arg13[%c0_1, %c0_2] : memref<256x640xf32, #tpu.memory_space<vmem>>, vector<256x128xf32>
    tpu.vector_store %arg13[%c0_1, %c0_2], %0 {strides = array<i32>} : memref<256x640xf32, #tpu.memory_space<vmem>>, vector<256x128xf32>,
    %c1 = arith.constant 1 : index
    %c0_3 = arith.constant 0 : index
    %2 = vector.load %arg1[%c1, %c0_3] : memref<256x128xf32, #tpu.memory_space<vmem>>, vector<255x128xf32>
    %c0_4 = arith.constant 0 : index
    %c128 = arith.constant 128 : index
    %3 = vector.load %arg13[%c0_4, %c128] : memref<256x640xf32, #tpu.memory_space<vmem>>, vector<255x128xf32>
    tpu.vector_store %arg13[%c0_4, %c128], %2 {strides = array<i32>} : memref<256x640xf32, #tpu.memory_space<vmem>>, vector<255x128xf32>,
    %c2 = arith.constant 2 : index
    %c0_5 = arith.constant 0 : index
    %4 = vector.load %arg1[%c2, %c0_5] : memref<256x128xf32, #tpu.memory_space<vmem>>, vector<254x128xf32>
    %c0_6 = arith.constant 0 : index
    %c256 = arith.constant 256 : index
    %5 = vector.load %arg13[%c0_6, %c256] : memref<256x640xf32, #tpu.memory_space<vmem>>, vector<254x128xf32>
    tpu.vector_store %arg13[%c0_6, %c256], %4 {strides = array<i32>} : memref<256x640xf32, #tpu.memory_space<vmem>>, vector<254x128xf32>,
    %c3 = arith.constant 3 : index
    %c0_7 = arith.constant 0 : index
    %6 = vector.load %arg1[%c3, %c0_7] : memref<256x128xf32, #tpu.memory_space<vmem>>, vector<253x128xf32>
    %c0_8 = arith.constant 0 : index
    %c384 = arith.constant 384 : index
    %7 = vector.load %arg13[%c0_8, %c384] : memref<256x640xf32, #tpu.memory_space<vmem>>, vector<253x128xf32>
    tpu.vector_store %arg13[%c0_8, %c384], %6 {strides = array<i32>} : memref<256x640xf32, #tpu.memory_space<vmem>>, vector<253x128xf32>,
    %c4 = arith.constant 4 : index
    %c0_9 = arith.constant 0 : index
    %8 = vector.load %arg1[%c4, %c0_9] : memref<256x128xf32, #tpu.memory_space<vmem>>, vector<252x128xf32>
    %c0_10 = arith.constant 0 : index
    %c512 = arith.constant 512 : index
    %9 = vector.load %arg13[%c0_10, %c512] : memref<256x640xf32, #tpu.memory_space<vmem>>, vector<252x128xf32>
    tpu.vector_store %arg13[%c0_10, %c512], %8 {strides = array<i32>} : memref<256x640xf32, #tpu.memory_space<vmem>>, vector<252x128xf32>,
    %cst = arith.constant 0.000000e+00 : f32
    %10 = vector.broadcast %cst : f32 to vector<4x640xf32>
    %c252 = arith.constant 252 : index
    %c0_11 = arith.constant 0 : index
    %11 = vector.load %arg13[%c252, %c0_11] : memref<256x640xf32, #tpu.memory_space<vmem>>, vector<4x640xf32>
    tpu.vector_store %arg13[%c252, %c0_11], %10 {strides = array<i32>} : memref<256x640xf32, #tpu.memory_space<vmem>>, vector<4x640xf32>,
    %c0_12 = arith.constant 0 : index
    %c0_13 = arith.constant 0 : index
    %12 = vector.load %arg13[%c0_12, %c0_13] : memref<256x640xf32, #tpu.memory_space<vmem>>, vector<256x640xf32>
    %13 = arith.truncf %12 : vector<256x640xf32> to vector<256x640xbf16>
    %c0_14 = arith.constant 0 : index
    %c0_15 = arith.constant 0 : index
    %14 = vector.load %arg2[%c0_14, %c0_15] : memref<640x256xbf16, #tpu.memory_space<vmem>>, vector<640x256xbf16>
    %cst_16 = arith.constant dense<0.000000e+00> : vector<256x256xf32>
    %15 = tpu.matmul %13, %14, %cst_16 {dimension_numbers = #tpu.dot_dimension_numbers<[1], [0], [0], [1], [0, 0, 1, 1], [], []>} : vector<256x640xbf16>, vector<640x256xbf16>, vector<256x256xf32> -> vector<256x256xf32>
    %c0_17 = arith.constant 0 : index
    %c0_18 = arith.constant 0 : index
    %16 = vector.load %arg3[%c0_17, %c0_18] : memref<1x256xf32, #tpu.memory_space<vmem>>, vector<1x256xf32>
    %17 = vector.broadcast %16 : vector<1x256xf32> to vector<256x256xf32>
    %18 = arith.addf %15, %17 : vector<256x256xf32>
    %cst_19 = arith.constant 0.000000e+00 : f32
    %19 = vector.broadcast %cst_19 : f32 to vector<256x256xf32>
    %20 = arith.maximumf %18, %19 : vector<256x256xf32>
    %21 = vector.extract_strided_slice %20 {offsets = [0, 0], sizes = [256, 128], strides = [1, 1]} : vector<256x256xf32> to vector<256x128xf32>
    %22 = vector.extract_strided_slice %20 {offsets = [0, 128], sizes = [256, 128], strides = [1, 1]} : vector<256x256xf32> to vector<256x128xf32>
    %23 = arith.maximumf %21, %22 : vector<256x128xf32>
    %c0_20 = arith.constant 0 : index
    %c0_21 = arith.constant 0 : index
    %24 = vector.load %arg14[%c0_20, %c0_21] : memref<256x128xf32, #tpu.memory_space<vmem>>, vector<256x128xf32>
    tpu.vector_store %arg14[%c0_20, %c0_21], %23 {strides = array<i32>} : memref<256x128xf32, #tpu.memory_space<vmem>>, vector<256x128xf32>,
    %c0_22 = arith.constant 0 : index
    %c0_23 = arith.constant 0 : index
    %25 = tpu.strided_load %arg14[%c0_22, %c0_23] {strides = array<i32: 2, 1>} : memref<256x128xf32, #tpu.memory_space<vmem>>, vector<128x128xf32>
    %c1_24 = arith.constant 1 : index
    %c0_25 = arith.constant 0 : index
    %26 = tpu.strided_load %arg14[%c1_24, %c0_25] {strides = array<i32: 2, 1>} : memref<256x128xf32, #tpu.memory_space<vmem>>, vector<128x128xf32>
    %27 = arith.maximumf %25, %26 : vector<128x128xf32>
    %c0_26 = arith.constant 0 : index
    %c0_27 = arith.constant 0 : index
    %28 = vector.load %arg15[%c0_26, %c0_27] : memref<128x128xf32, #tpu.memory_space<vmem>>, vector<128x128xf32>
    tpu.vector_store %arg15[%c0_26, %c0_27], %27 {strides = array<i32>} : memref<128x128xf32, #tpu.memory_space<vmem>>, vector<128x128xf32>,
    %c0_28 = arith.constant 0 : index
    %c0_29 = arith.constant 0 : index
    %29 = vector.load %arg15[%c0_28, %c0_29] : memref<128x128xf32, #tpu.memory_space<vmem>>, vector<128x128xf32>
    %c0_30 = arith.constant 0 : index
    %c0_31 = arith.constant 0 : index
    %30 = vector.load %arg16[%c0_30, %c0_31] : memref<128x640xf32, #tpu.memory_space<vmem>>, vector<128x128xf32>
    tpu.vector_store %arg16[%c0_30, %c0_31], %29 {strides = array<i32>} : memref<128x640xf32, #tpu.memory_space<vmem>>, vector<128x128xf32>,
    %c1_32 = arith.constant 1 : index
    %c0_33 = arith.constant 0 : index
    %31 = vector.load %arg15[%c1_32, %c0_33] : memref<128x128xf32, #tpu.memory_space<vmem>>, vector<127x128xf32>
    %c0_34 = arith.constant 0 : index
    %c128_35 = arith.constant 128 : index
    %32 = vector.load %arg16[%c0_34, %c128_35] : memref<128x640xf32, #tpu.memory_space<vmem>>, vector<127x128xf32>
    tpu.vector_store %arg16[%c0_34, %c128_35], %31 {strides = array<i32>} : memref<128x640xf32, #tpu.memory_space<vmem>>, vector<127x128xf32>,
    %c2_36 = arith.constant 2 : index
    %c0_37 = arith.constant 0 : index
    %33 = vector.load %arg15[%c2_36, %c0_37] : memref<128x128xf32, #tpu.memory_space<vmem>>, vector<126x128xf32>
    %c0_38 = arith.constant 0 : index
    %c256_39 = arith.constant 256 : index
    %34 = vector.load %arg16[%c0_38, %c256_39] : memref<128x640xf32, #tpu.memory_space<vmem>>, vector<126x128xf32>
    tpu.vector_store %arg16[%c0_38, %c256_39], %33 {strides = array<i32>} : memref<128x640xf32, #tpu.memory_space<vmem>>, vector<126x128xf32>,
    %c3_40 = arith.constant 3 : index
    %c0_41 = arith.constant 0 : index
    %35 = vector.load %arg15[%c3_40, %c0_41] : memref<128x128xf32, #tpu.memory_space<vmem>>, vector<125x128xf32>
    %c0_42 = arith.constant 0 : index
    %c384_43 = arith.constant 384 : index
    %36 = vector.load %arg16[%c0_42, %c384_43] : memref<128x640xf32, #tpu.memory_space<vmem>>, vector<125x128xf32>
    tpu.vector_store %arg16[%c0_42, %c384_43], %35 {strides = array<i32>} : memref<128x640xf32, #tpu.memory_space<vmem>>, vector<125x128xf32>,
    %c4_44 = arith.constant 4 : index
    %c0_45 = arith.constant 0 : index
    %37 = vector.load %arg15[%c4_44, %c0_45] : memref<128x128xf32, #tpu.memory_space<vmem>>, vector<124x128xf32>
    %c0_46 = arith.constant 0 : index
    %c512_47 = arith.constant 512 : index
    %38 = vector.load %arg16[%c0_46, %c512_47] : memref<128x640xf32, #tpu.memory_space<vmem>>, vector<124x128xf32>
    tpu.vector_store %arg16[%c0_46, %c512_47], %37 {strides = array<i32>} : memref<128x640xf32, #tpu.memory_space<vmem>>, vector<124x128xf32>,
    %cst_48 = arith.constant 0.000000e+00 : f32
    %39 = vector.broadcast %cst_48 : f32 to vector<4x640xf32>
    %c124 = arith.constant 124 : index
    %c0_49 = arith.constant 0 : index
    %40 = vector.load %arg16[%c124, %c0_49] : memref<128x640xf32, #tpu.memory_space<vmem>>, vector<4x640xf32>
    tpu.vector_store %arg16[%c124, %c0_49], %39 {strides = array<i32>} : memref<128x640xf32, #tpu.memory_space<vmem>>, vector<4x640xf32>,
    %c0_50 = arith.constant 0 : index
    %c0_51 = arith.constant 0 : index
    %41 = vector.load %arg16[%c0_50, %c0_51] : memref<128x640xf32, #tpu.memory_space<vmem>>, vector<128x640xf32>
    %42 = arith.truncf %41 : vector<128x640xf32> to vector<128x640xbf16>
    %c0_52 = arith.constant 0 : index
    %c0_53 = arith.constant 0 : index
    %43 = vector.load %arg4[%c0_52, %c0_53] : memref<640x256xbf16, #tpu.memory_space<vmem>>, vector<640x256xbf16>
    %cst_54 = arith.constant dense<0.000000e+00> : vector<128x256xf32>
    %44 = tpu.matmul %42, %43, %cst_54 {dimension_numbers = #tpu.dot_dimension_numbers<[1], [0], [0], [1], [0, 0, 1, 1], [], []>} : vector<128x640xbf16>, vector<640x256xbf16>, vector<128x256xf32> -> vector<128x256xf32>
    %c0_55 = arith.constant 0 : index
    %c0_56 = arith.constant 0 : index
    %45 = vector.load %arg5[%c0_55, %c0_56] : memref<1x256xf32, #tpu.memory_space<vmem>>, vector<1x256xf32>
    %46 = vector.broadcast %45 : vector<1x256xf32> to vector<128x256xf32>
    %47 = arith.addf %44, %46 : vector<128x256xf32>
    %cst_57 = arith.constant 0.000000e+00 : f32
    %48 = vector.broadcast %cst_57 : f32 to vector<128x256xf32>
    %49 = arith.maximumf %47, %48 : vector<128x256xf32>
    %50 = vector.extract_strided_slice %49 {offsets = [0, 0], sizes = [128, 128], strides = [1, 1]} : vector<128x256xf32> to vector<128x128xf32>
    %51 = vector.extract_strided_slice %49 {offsets = [0, 128], sizes = [128, 128], strides = [1, 1]} : vector<128x256xf32> to vector<128x128xf32>
    %52 = arith.maximumf %50, %51 : vector<128x128xf32>
    %c0_58 = arith.constant 0 : index
    %c0_59 = arith.constant 0 : index
    %53 = vector.load %arg17[%c0_58, %c0_59] : memref<128x128xf32, #tpu.memory_space<vmem>>, vector<128x128xf32>
    tpu.vector_store %arg17[%c0_58, %c0_59], %52 {strides = array<i32>} : memref<128x128xf32, #tpu.memory_space<vmem>>, vector<128x128xf32>,
    %c0_60 = arith.constant 0 : index
    %c0_61 = arith.constant 0 : index
    %54 = tpu.strided_load %arg17[%c0_60, %c0_61] {strides = array<i32: 2, 1>} : memref<128x128xf32, #tpu.memory_space<vmem>>, vector<64x128xf32>
    %c1_62 = arith.constant 1 : index
    %c0_63 = arith.constant 0 : index
    %55 = tpu.strided_load %arg17[%c1_62, %c0_63] {strides = array<i32: 2, 1>} : memref<128x128xf32, #tpu.memory_space<vmem>>, vector<64x128xf32>
    %56 = arith.maximumf %54, %55 : vector<64x128xf32>
    %c0_64 = arith.constant 0 : index
    %c0_65 = arith.constant 0 : index
    %57 = vector.load %arg18[%c0_64, %c0_65] : memref<64x128xf32, #tpu.memory_space<vmem>>, vector<64x128xf32>
    tpu.vector_store %arg18[%c0_64, %c0_65], %56 {strides = array<i32>} : memref<64x128xf32, #tpu.memory_space<vmem>>, vector<64x128xf32>,
    %c0_66 = arith.constant 0 : index
    %c0_67 = arith.constant 0 : index
    %58 = tpu.strided_load %arg18[%c0_66, %c0_67] {strides = array<i32: 8, 1>} : memref<64x128xf32, #tpu.memory_space<vmem>>, vector<8x128xf32>
    %c0_68 = arith.constant 0 : index
    %c0_69 = arith.constant 0 : index
    %59 = vector.load %arg19[%c0_68, %c0_69] : memref<8x640xf32, #tpu.memory_space<vmem>>, vector<8x128xf32>
    tpu.vector_store %arg19[%c0_68, %c0_69], %58 {strides = array<i32>} : memref<8x640xf32, #tpu.memory_space<vmem>>, vector<8x128xf32>,
    %c1_70 = arith.constant 1 : index
    %c0_71 = arith.constant 0 : index
    %60 = tpu.strided_load %arg18[%c1_70, %c0_71] {strides = array<i32: 8, 1>} : memref<64x128xf32, #tpu.memory_space<vmem>>, vector<8x128xf32>
    %c0_72 = arith.constant 0 : index
    %c128_73 = arith.constant 128 : index
    %61 = vector.load %arg19[%c0_72, %c128_73] : memref<8x640xf32, #tpu.memory_space<vmem>>, vector<8x128xf32>
    tpu.vector_store %arg19[%c0_72, %c128_73], %60 {strides = array<i32>} : memref<8x640xf32, #tpu.memory_space<vmem>>, vector<8x128xf32>,
    %c2_74 = arith.constant 2 : index
    %c0_75 = arith.constant 0 : index
    %62 = tpu.strided_load %arg18[%c2_74, %c0_75] {strides = array<i32: 8, 1>} : memref<64x128xf32, #tpu.memory_space<vmem>>, vector<8x128xf32>
    %c0_76 = arith.constant 0 : index
    %c256_77 = arith.constant 256 : index
    %63 = vector.load %arg19[%c0_76, %c256_77] : memref<8x640xf32, #tpu.memory_space<vmem>>, vector<8x128xf32>
    tpu.vector_store %arg19[%c0_76, %c256_77], %62 {strides = array<i32>} : memref<8x640xf32, #tpu.memory_space<vmem>>, vector<8x128xf32>,
    %c3_78 = arith.constant 3 : index
    %c0_79 = arith.constant 0 : index
    %64 = tpu.strided_load %arg18[%c3_78, %c0_79] {strides = array<i32: 8, 1>} : memref<64x128xf32, #tpu.memory_space<vmem>>, vector<8x128xf32>
    %c0_80 = arith.constant 0 : index
    %c384_81 = arith.constant 384 : index
    %65 = vector.load %arg19[%c0_80, %c384_81] : memref<8x640xf32, #tpu.memory_space<vmem>>, vector<8x128xf32>
    tpu.vector_store %arg19[%c0_80, %c384_81], %64 {strides = array<i32>} : memref<8x640xf32, #tpu.memory_space<vmem>>, vector<8x128xf32>,
    %c4_82 = arith.constant 4 : index
    %c0_83 = arith.constant 0 : index
    %66 = tpu.strided_load %arg18[%c4_82, %c0_83] {strides = array<i32: 8, 1>} : memref<64x128xf32, #tpu.memory_space<vmem>>, vector<8x128xf32>
    %c0_84 = arith.constant 0 : index
    %c512_85 = arith.constant 512 : index
    %67 = vector.load %arg19[%c0_84, %c512_85] : memref<8x640xf32, #tpu.memory_space<vmem>>, vector<8x128xf32>
    tpu.vector_store %arg19[%c0_84, %c512_85], %66 {strides = array<i32>} : memref<8x640xf32, #tpu.memory_space<vmem>>, vector<8x128xf32>,
    %c0_86 = arith.constant 0 : index
    %c0_87 = arith.constant 0 : index
    %68 = vector.load %arg19[%c0_86, %c0_87] : memref<8x640xf32, #tpu.memory_space<vmem>>, vector<8x640xf32>
    %69 = arith.truncf %68 : vector<8x640xf32> to vector<8x640xbf16>
    %c0_88 = arith.constant 0 : index
    %c0_89 = arith.constant 0 : index
    %70 = vector.load %arg6[%c0_88, %c0_89] : memref<640x128xbf16, #tpu.memory_space<vmem>>, vector<640x128xbf16>
    %cst_90 = arith.constant dense<0.000000e+00> : vector<8x128xf32>
    %71 = tpu.matmul %69, %70, %cst_90 {dimension_numbers = #tpu.dot_dimension_numbers<[1], [0], [0], [1], [0, 0, 1, 1], [], []>} : vector<8x640xbf16>, vector<640x128xbf16>, vector<8x128xf32> -> vector<8x128xf32>
    %c0_91 = arith.constant 0 : index
    %c0_92 = arith.constant 0 : index
    %72 = vector.load %arg7[%c0_91, %c0_92] : memref<1x128xf32, #tpu.memory_space<vmem>>, vector<1x128xf32>
    %73 = vector.broadcast %72 : vector<1x128xf32> to vector<8x128xf32>
    %74 = arith.addf %71, %73 : vector<8x128xf32>
    %cst_93 = arith.constant 0.000000e+00 : f32
    %75 = vector.broadcast %cst_93 : f32 to vector<8x128xf32>
    %76 = arith.maximumf %74, %75 : vector<8x128xf32>
    %77 = arith.truncf %76 : vector<8x128xf32> to vector<8x128xbf16>
    %c0_94 = arith.constant 0 : index
    %c0_95 = arith.constant 0 : index
    %78 = vector.load %arg8[%c0_94, %c0_95] : memref<128x128xbf16, #tpu.memory_space<vmem>>, vector<128x128xbf16>
    %cst_96 = arith.constant dense<0.000000e+00> : vector<8x128xf32>
    %79 = tpu.matmul %77, %78, %cst_96 {dimension_numbers = #tpu.dot_dimension_numbers<[1], [0], [0], [1], [0, 0, 1, 1], [], []>} : vector<8x128xbf16>, vector<128x128xbf16>, vector<8x128xf32> -> vector<8x128xf32>
    %c0_97 = arith.constant 0 : index
    %c0_98 = arith.constant 0 : index
    %80 = vector.load %arg9[%c0_97, %c0_98] : memref<1x128xf32, #tpu.memory_space<vmem>>, vector<1x128xf32>
    %81 = vector.broadcast %80 : vector<1x128xf32> to vector<8x128xf32>
    %82 = arith.addf %79, %81 : vector<8x128xf32>
    %cst_99 = arith.constant 0.000000e+00 : f32
    %83 = vector.broadcast %cst_99 : f32 to vector<8x128xf32>
    %84 = arith.maximumf %82, %83 : vector<8x128xf32>
    %85 = arith.truncf %84 : vector<8x128xf32> to vector<8x128xbf16>
    %c0_100 = arith.constant 0 : index
    %c0_101 = arith.constant 0 : index
    %86 = vector.load %arg10[%c0_100, %c0_101] : memref<128x128xbf16, #tpu.memory_space<vmem>>, vector<128x128xbf16>
    %cst_102 = arith.constant dense<0.000000e+00> : vector<8x128xf32>
    %87 = tpu.matmul %85, %86, %cst_102 {dimension_numbers = #tpu.dot_dimension_numbers<[1], [0], [0], [1], [0, 0, 1, 1], [], []>} : vector<8x128xbf16>, vector<128x128xbf16>, vector<8x128xf32> -> vector<8x128xf32>
    %c0_103 = arith.constant 0 : index
    %c0_104 = arith.constant 0 : index
    %88 = vector.load %arg11[%c0_103, %c0_104] : memref<1x128xf32, #tpu.memory_space<vmem>>, vector<1x128xf32>
    %89 = vector.broadcast %88 : vector<1x128xf32> to vector<8x128xf32>
    %90 = arith.addf %87, %89 : vector<8x128xf32>
    %c0_105 = arith.constant 0 : index
    %c0_106 = arith.constant 0 : index
    %91 = vector.load %arg12[%c0_105, %c0_106] : memref<8x128xf32, #tpu.memory_space<vmem>>, vector<8x128xf32>
    tpu.vector_store %arg12[%c0_105, %c0_106], %90 {strides = array<i32>} : memref<8x128xf32, #tpu.memory_space<vmem>>, vector<8x128xf32>,
    return
  }
  func.func @transform_0(%arg0: i32) -> (i32, i32) {
    %c0_i32 = arith.constant 0 : i32
    %c0_i32_0 = arith.constant 0 : i32
    return %arg0, %c0_i32 : i32, i32
  }
  func.func @transform_1(%arg0: i32) -> (i32, i32) {
    %c0_i32 = arith.constant 0 : i32
    %c0_i32_0 = arith.constant 0 : i32
    %c0_i32_1 = arith.constant 0 : i32
    return %c0_i32, %c0_i32_0 : i32, i32
  }
  func.func @transform_2(%arg0: i32) -> (i32, i32) {
    %c0_i32 = arith.constant 0 : i32
    %c0_i32_0 = arith.constant 0 : i32
    %c0_i32_1 = arith.constant 0 : i32
    return %c0_i32, %c0_i32_0 : i32, i32
  }
  func.func @transform_3(%arg0: i32) -> (i32, i32) {
    %c0_i32 = arith.constant 0 : i32
    %c0_i32_0 = arith.constant 0 : i32
    %c0_i32_1 = arith.constant 0 : i32
    return %c0_i32, %c0_i32_0 : i32, i32
  }
  func.func @transform_4(%arg0: i32) -> (i32, i32) {
    %c0_i32 = arith.constant 0 : i32
    %c0_i32_0 = arith.constant 0 : i32
    %c0_i32_1 = arith.constant 0 : i32
    return %c0_i32, %c0_i32_0 : i32, i32
  }
  func.func @transform_5(%arg0: i32) -> (i32, i32) {
    %c0_i32 = arith.constant 0 : i32
    %c0_i32_0 = arith.constant 0 : i32
    %c0_i32_1 = arith.constant 0 : i32
    return %c0_i32, %c0_i32_0 : i32, i32
  }
  func.func @transform_6(%arg0: i32) -> (i32, i32) {
    %c0_i32 = arith.constant 0 : i32
    %c0_i32_0 = arith.constant 0 : i32
    %c0_i32_1 = arith.constant 0 : i32
    return %c0_i32, %c0_i32_0 : i32, i32
  }
  func.func @transform_7(%arg0: i32) -> (i32, i32) {
    %c0_i32 = arith.constant 0 : i32
    %c0_i32_0 = arith.constant 0 : i32
    %c0_i32_1 = arith.constant 0 : i32
    return %c0_i32, %c0_i32_0 : i32, i32
  }
  func.func @transform_8(%arg0: i32) -> (i32, i32) {
    %c0_i32 = arith.constant 0 : i32
    %c0_i32_0 = arith.constant 0 : i32
    %c0_i32_1 = arith.constant 0 : i32
    return %c0_i32, %c0_i32_0 : i32, i32
  }
  func.func @transform_9(%arg0: i32) -> (i32, i32) {
    %c0_i32 = arith.constant 0 : i32
    %c0_i32_0 = arith.constant 0 : i32
    %c0_i32_1 = arith.constant 0 : i32
    return %c0_i32, %c0_i32_0 : i32, i32
  }
  func.func @transform_10(%arg0: i32) -> (i32, i32) {
    %c0_i32 = arith.constant 0 : i32
    %c0_i32_0 = arith.constant 0 : i32
    %c0_i32_1 = arith.constant 0 : i32
    return %c0_i32, %c0_i32_0 : i32, i32
  }
  func.func @transform_11(%arg0: i32) -> (i32, i32) {
    %c0_i32 = arith.constant 0 : i32
    %c0_i32_0 = arith.constant 0 : i32
    return %arg0, %c0_i32 : i32, i32
  }
}

</mosaic_0001>

<llo_original>
// kernel: net_forward.1
$region0: #{net_forward.1}
  #allocation0 [shape = 'u32[]', space=smem, size = 0x4, offset = 0x4, fixed_abs, tag = 'smem constant byte address 0x4 - core index']
  #allocation1 [shape = 'u32[144,128]{1,0:T(1,128)}', space=vmem, size = 0x12000, scoped, tag = 'internal scratch']
  #allocation2 [shape = 'f32[256,640]{1,0:T(8,128)}', space=vmem, size = 0xa0000, scoped, tag = 'scratch operand']
  #allocation3 [shape = 'f32[256,128]{1,0:T(8,128)}', space=vmem, size = 0x20000, scoped, tag = 'scratch operand']
  #allocation4 [shape = 'f32[128,128]{1,0:T(8,128)}', space=vmem, size = 0x10000, scoped, tag = 'scratch operand']
  #allocation5 [shape = 'f32[128,640]{1,0:T(8,128)}', space=vmem, size = 0x50000, scoped, tag = 'scratch operand']
  #allocation6 [shape = 'f32[128,128]{1,0:T(8,128)}', space=vmem, size = 0x10000, scoped, tag = 'scratch operand']
  #allocation7 [shape = 'f32[64,128]{1,0:T(8,128)}', space=vmem, size = 0x8000, scoped, tag = 'scratch operand']
  #allocation8 [shape = 'f32[8,640]{1,0:T(8,128)}', space=vmem, size = 0x5000, scoped, tag = 'scratch operand']
  %s0 = inlined_call_operand.vmem [shape: f32[256,128], index: 0, kind: input, shape index: {}]
  %s1 = inlined_call_operand.vmem [shape: bf16[640,256], index: 1, kind: input, shape index: {}]
  %s2 = inlined_call_operand.vmem [shape: f32[1,256], index: 2, kind: input, shape index: {}]
  %s3 = inlined_call_operand.hbm [shape: bf16[640,256], index: 3, kind: input, shape index: {}]
  %s4 = inlined_call_operand.vmem [shape: f32[1,256], index: 4, kind: input, shape index: {}]
  %s5 = inlined_call_operand.vmem [shape: bf16[640,128], index: 5, kind: input, shape index: {}]
  %s6 = inlined_call_operand.vmem [shape: f32[1,128], index: 6, kind: input, shape index: {}]
  %s7 = inlined_call_operand.hbm [shape: bf16[128,128], index: 7, kind: input, shape index: {}]
  %s8 = inlined_call_operand.vmem [shape: f32[1,128], index: 8, kind: input, shape index: {}]
  %s9 = inlined_call_operand.hbm [shape: bf16[128,128], index: 9, kind: input, shape index: {}]
  %s10 = inlined_call_operand.vmem [shape: f32[1,128], index: 10, kind: input, shape index: {}]
  %s11 = inlined_call_operand.vmem [shape: f32[8,128], index: 11, kind: output, shape index: {}]
  %s12 = sld [smem:[#allocation0]]
  $region66: #{net_forward.1} parent=0
    _
  %s14 = ssub.s32 1, %s12
  %s15 = scalar_select 0, %s14, %s12
  $region1: #{net_forward.1} parent=0
    #allocation9 [shape = 'u8[327680]{0}', space=vmem, size = 0x50000, scoped, tag = 'input window, operand 3, single buffered']
    #allocation10 [shape = 's32[1]{0}', space=sflag, size = 0x4, scoped, tag = 'scoped memory for net_forward.1']
    #allocation11 [shape = 'u8[32768]{0}', space=vmem, size = 0x8000, scoped, tag = 'input window, operand 7, single buffered']
    #allocation12 [shape = 's32[1]{0}', space=sflag, size = 0x4, scoped, tag = 'scoped memory for net_forward.1']
    #allocation13 [shape = 'u8[32768]{0}', space=vmem, size = 0x8000, scoped, tag = 'input window, operand 9, single buffered']
    %16 = vsyncpa [#allocation10], 0
    %17 = vsyncpa [#allocation12], 0
    // Predicated region
    $region2: #{net_forward.1} parent=1 // pred_check
      _
    $region3: #{net_forward.1} parent=1 // pred_check_branch
      %19 = sbr.rel (0) target = $region5
    $region4: #{net_forward.1} parent=1 // pred_region
      _
    $region5: #{net_forward.1} parent=1 // pred_fallthru
      _
    // Predicated region
    $region6: #{net_forward.1} parent=1 // pred_check
      _
    $region7: #{net_forward.1} parent=1 // pred_check_branch
      %21 = sbr.rel (0) target = $region9
    $region8: #{net_forward.1} parent=1 // pred_region
      _
    $region9: #{net_forward.1} parent=1 // pred_fallthru
      _
    // Predicated region
    $region10: #{net_forward.1} parent=1 // pred_check
      _
    $region11: #{net_forward.1} parent=1 // pred_check_branch
      %23 = sbr.rel (0) target = $region13
    $region12: #{net_forward.1} parent=1 // pred_region
      _
    $region13: #{net_forward.1} parent=1 // pred_fallthru
      _
    // Predicated region
    $region14: #{net_forward.1} parent=1 // pred_check
      _
    $region15: #{net_forward.1} parent=1 // pred_check_branch
      %25 = sbr.rel (0) target = $region17
    $region16: #{net_forward.1} parent=1 // pred_region
      %s27 = ssub.s32 10240, 10240
      %28 = vsyncadd [#allocation10], %s27
      %s29 = sshll.u32 [#allocation9], 4
      %s30 = int_to_ptr.vmem [resolvable:$true] %s29
      %35 = dma.hbm_to_vmem [thread:$0]  %s3, 10240, %s30, [#allocation10], 128, 128, 8
    $region17: #{net_forward.1} parent=1 // pred_fallthru
      _
    // Predicated region
    $region18: #{net_forward.1} parent=1 // pred_check
      _
    $region19: #{net_forward.1} parent=1 // pred_check_branch
      %37 = sbr.rel (0) target = $region21
    $region20: #{net_forward.1} parent=1 // pred_region
      _
    $region21: #{net_forward.1} parent=1 // pred_fallthru
      _
    // Predicated region
    $region22: #{net_forward.1} parent=1 // pred_check
      _
    $region23: #{net_forward.1} parent=1 // pred_check_branch
      %39 = sbr.rel (0) target = $region25
    $region24: #{net_forward.1} parent=1 // pred_region
      _
    $region25: #{net_forward.1} parent=1 // pred_fallthru
      _
    // Predicated region
    $region26: #{net_forward.1} parent=1 // pred_check
      _
    $region27: #{net_forward.1} parent=1 // pred_check_branch
      %41 = sbr.rel (0) target = $region29
    $region28: #{net_forward.1} parent=1 // pred_region
      _
    $region29: #{net_forward.1} parent=1 // pred_fallthru
      _
    // Predicated region
    $region30: #{net_forward.1} parent=1 // pred_check
      _
    $region31: #{net_forward.1} parent=1 // pred_check_branch
      %43 = sbr.rel (0) target = $region33
    $region32: #{net_forward.1} parent=1 // pred_region
      %s45 = ssub.s32 1024, 1024
      %46 = vsyncadd [#allocation12], %s45
      %s47 = sshll.u32 [#allocation11], 4
      %s48 = int_to_ptr.vmem [resolvable:$true] %s47
      %53 = dma.hbm_to_vmem [thread:$0]  %s7, 1024, %s48, [#allocation12], 64, 64, 4
    $region33: #{net_forward.1} parent=1 // pred_fallthru
      _
    // Predicated region
    $region34: #{net_forward.1} parent=1 // pred_check
      _
    $region35: #{net_forward.1} parent=1 // pred_check_branch
      %55 = sbr.rel (0) target = $region37
    $region36: #{net_forward.1} parent=1 // pred_region
      _
    $region37: #{net_forward.1} parent=1 // pred_fallthru
      _
    // Predicated region
    $region38: #{net_forward.1} parent=1 // pred_check
      _
    $region39: #{net_forward.1} parent=1 // pred_check_branch
      %57 = sbr.rel (0) target = $region41
    $region40: #{net_forward.1} parent=1 // pred_region
      %s59 = ssub.s32 1024, 1024
      %60 = vsyncadd [#allocation12], %s59
      %s61 = sshll.u32 [#allocation13], 4
      %s62 = int_to_ptr.vmem [resolvable:$true] %s61
      %67 = dma.hbm_to_vmem [thread:$0]  %s9, 1024, %s62, [#allocation12], 64, 64, 4
    $region41: #{net_forward.1} parent=1 // pred_fallthru
      _
    // Predicated region
    $region42: #{net_forward.1} parent=1 // pred_check
      _
    $region43: #{net_forward.1} parent=1 // pred_check_branch
      %69 = sbr.rel (0) target = $region45
    $region44: #{net_forward.1} parent=1 // pred_region
      _
    $region45: #{net_forward.1} parent=1 // pred_fallthru
      _
    // Predicated region
    $region46: #{net_forward.1} parent=1 // pred_check
      _
    $region47: #{net_forward.1} parent=1 // pred_check_branch
      %71 = sbr.rel (0) target = $region49
    $region48: #{net_forward.1} parent=1 // pred_region
      %72 = dma.done [#allocation10], 10240
    $region49: #{net_forward.1} parent=1 // pred_fallthru
      _
    // Predicated region
    $region50: #{net_forward.1} parent=1 // pred_check
      _
    $region51: #{net_forward.1} parent=1 // pred_check_branch
      %74 = sbr.rel (0) target = $region53
    $region52: #{net_forward.1} parent=1 // pred_region
      %75 = dma.done [#allocation12], 1024
    $region53: #{net_forward.1} parent=1 // pred_fallthru
      _
    // Predicated region
    $region54: #{net_forward.1} parent=1 // pred_check
      _
    $region55: #{net_forward.1} parent=1 // pred_check_branch
      %77 = sbr.rel (0) target = $region57
    $region56: #{net_forward.1} parent=1 // pred_region
      %78 = dma.done [#allocation12], 1024
    $region57: #{net_forward.1} parent=1 // pred_fallthru
      _
    %v80 = vld [vmem:[%s0] sm:$0xff]
    %v81 = vld [vmem:[%s0 + $0x8] sm:$0xff]
    %v82 = vld [vmem:[%s0 + $0x10] sm:$0xff]
    %v83 = vld [vmem:[%s0 + $0x18] sm:$0xff]
    %v84 = vld [vmem:[%s0 + $0x20] sm:$0xff]
    %v85 = vld [vmem:[%s0 + $0x28] sm:$0xff]
    %v86 = vld [vmem:[%s0 + $0x30] sm:$0xff]
    %v87 = vld [vmem:[%s0 + $0x38] sm:$0xff]
    %v88 = vld [vmem:[%s0 + $0x40] sm:$0xff]
    %v89 = vld [vmem:[%s0 + $0x48] sm:$0xff]
    %v90 = vld [vmem:[%s0 + $0x50] sm:$0xff]
    %v91 = vld [vmem:[%s0 + $0x58] sm:$0xff]
    %v92 = vld [vmem:[%s0 + $0x60] sm:$0xff]
    %v93 = vld [vmem:[%s0 + $0x68] sm:$0xff]
    %v94 = vld [vmem:[%s0 + $0x70] sm:$0xff]
    %v95 = vld [vmem:[%s0 + $0x78] sm:$0xff]
    %v96 = vld [vmem:[%s0 + $0x80] sm:$0xff]
    %v97 = vld [vmem:[%s0 + $0x88] sm:$0xff]
    %v98 = vld [vmem:[%s0 + $0x90] sm:$0xff]
    %v99 = vld [vmem:[%s0 + $0x98] sm:$0xff]
    %v100 = vld [vmem:[%s0 + $0xa0] sm:$0xff]
    %v101 = vld [vmem:[%s0 + $0xa8] sm:$0xff]
    %v102 = vld [vmem:[%s0 + $0xb0] sm:$0xff]
    %v103 = vld [vmem:[%s0 + $0xb8] sm:$0xff]
    %v104 = vld [vmem:[%s0 + $0xc0] sm:$0xff]
    %v105 = vld [vmem:[%s0 + $0xc8] sm:$0xff]
    %v106 = vld [vmem:[%s0 + $0xd0] sm:$0xff]
    %v107 = vld [vmem:[%s0 + $0xd8] sm:$0xff]
    %v108 = vld [vmem:[%s0 + $0xe0] sm:$0xff]
    %v109 = vld [vmem:[%s0 + $0xe8] sm:$0xff]
    %v110 = vld [vmem:[%s0 + $0xf0] sm:$0xff]
    %v111 = vld [vmem:[%s0 + $0xf8] sm:$0xff]
    %112 = vst [vmem:[#allocation2] sm:$0xff] %v80
    %113 = vst [vmem:[#allocation2 + $0x28] sm:$0xff] %v81
    %114 = vst [vmem:[#allocation2 + $0x50] sm:$0xff] %v82
    %115 = vst [vmem:[#allocation2 + $0x78] sm:$0xff] %v83
    %116 = vst [vmem:[#allocation2 + $0xa0] sm:$0xff] %v84
    %117 = vst [vmem:[#allocation2 + $0xc8] sm:$0xff] %v85
    %118 = vst [vmem:[#allocation2 + $0xf0] sm:$0xff] %v86
    %119 = vst [vmem:[#allocation2 + $0x118] sm:$0xff] %v87
    %120 = vst [vmem:[#allocation2 + $0x140] sm:$0xff] %v88
    %121 = vst [vmem:[#allocation2 + $0x168] sm:$0xff] %v89
    %122 = vst [vmem:[#allocation2 + $0x190] sm:$0xff] %v90
    %123 = vst [vmem:[#allocation2 + $0x1b8] sm:$0xff] %v91
    %124 = vst [vmem:[#allocation2 + $0x1e0] sm:$0xff] %v92
    %125 = vst [vmem:[#allocation2 + $0x208] sm:$0xff] %v93
    %126 = vst [vmem:[#allocation2 + $0x230] sm:$0xff] %v94
    %127 = vst [vmem:[#allocation2 + $0x258] sm:$0xff] %v95
    %128 = vst [vmem:[#allocation2 + $0x280] sm:$0xff] %v96
    %129 = vst [vmem:[#allocation2 + $0x2a8] sm:$0xff] %v97
    %130 = vst [vmem:[#allocation2 + $0x2d0] sm:$0xff] %v98
    %131 = vst [vmem:[#allocation2 + $0x2f8] sm:$0xff] %v99
    %132 = vst [vmem:[#allocation2 + $0x320] sm:$0xff] %v100
    %133 = vst [vmem:[#allocation2 + $0x348] sm:$0xff] %v101
    %134 = vst [vmem:[#allocation2 + $0x370] sm:$0xff] %v102
    %135 = vst [vmem:[#allocation2 + $0x398] sm:$0xff] %v103
    %136 = vst [vmem:[#allocation2 + $0x3c0] sm:$0xff] %v104
    %137 = vst [vmem:[#allocation2 + $0x3e8] sm:$0xff] %v105
    %138 = vst [vmem:[#allocation2 + $0x410] sm:$0xff] %v106
    %139 = vst [vmem:[#allocation2 + $0x438] sm:$0xff] %v107
    %140 = vst [vmem:[#allocation2 + $0x460] sm:$0xff] %v108
    %141 = vst [vmem:[#allocation2 + $0x488] sm:$0xff] %v109
    %142 = vst [vmem:[#allocation2 + $0x4b0] sm:$0xff] %v110
    %143 = vst [vmem:[#allocation2 + $0x4d8] sm:$0xff] %v111
    %v144 = vld [vmem:[%s0 + $0x1] sm:$0xff]
    %v145 = vld [vmem:[%s0 + $0x9] sm:$0xff]
    %v146 = vld [vmem:[%s0 + $0x11] sm:$0xff]
    %v147 = vld [vmem:[%s0 + $0x19] sm:$0xff]
    %v148 = vld [vmem:[%s0 + $0x21] sm:$0xff]
    %v149 = vld [vmem:[%s0 + $0x29] sm:$0xff]
    %v150 = vld [vmem:[%s0 + $0x31] sm:$0xff]
    %v151 = vld [vmem:[%s0 + $0x39] sm:$0xff]
    %v152 = vld [vmem:[%s0 + $0x41] sm:$0xff]
    %v153 = vld [vmem:[%s0 + $0x49] sm:$0xff]
    %v154 = vld [vmem:[%s0 + $0x51] sm:$0xff]
    %v155 = vld [vmem:[%s0 + $0x59] sm:$0xff]
    %v156 = vld [vmem:[%s0 + $0x61] sm:$0xff]
    %v157 = vld [vmem:[%s0 + $0x69] sm:$0xff]
    %v158 = vld [vmem:[%s0 + $0x71] sm:$0xff]
    %v159 = vld [vmem:[%s0 + $0x79] sm:$0xff]
    %v160 = vld [vmem:[%s0 + $0x81] sm:$0xff]
    %v161 = vld [vmem:[%s0 + $0x89] sm:$0xff]
    %v162 = vld [vmem:[%s0 + $0x91] sm:$0xff]
    %v163 = vld [vmem:[%s0 + $0x99] sm:$0xff]
    %v164 = vld [vmem:[%s0 + $0xa1] sm:$0xff]
    %v165 = vld [vmem:[%s0 + $0xa9] sm:$0xff]
    %v166 = vld [vmem:[%s0 + $0xb1] sm:$0xff]
    %v167 = vld [vmem:[%s0 + $0xb9] sm:$0xff]
    %v168 = vld [vmem:[%s0 + $0xc1] sm:$0xff]
    %v169 = vld [vmem:[%s0 + $0xc9] sm:$0xff]
    %v170 = vld [vmem:[%s0 + $0xd1] sm:$0xff]
    %v171 = vld [vmem:[%s0 + $0xd9] sm:$0xff]
    %v172 = vld [vmem:[%s0 + $0xe1] sm:$0xff]
    %v173 = vld [vmem:[%s0 + $0xe9] sm:$0xff]
    %v174 = vld [vmem:[%s0 + $0xf1] sm:$0xff]
    %v175 = vld [vmem:[%s0 + $0xf9] sm:$0x7f]
    %176 = vst [vmem:[#allocation2 + $0x8] sm:$0xff] %v144
    %177 = vst [vmem:[#allocation2 + $0x30] sm:$0xff] %v145
    %178 = vst [vmem:[#allocation2 + $0x58] sm:$0xff] %v146
    %179 = vst [vmem:[#allocation2 + $0x80] sm:$0xff] %v147
    %180 = vst [vmem:[#allocation2 + $0xa8] sm:$0xff] %v148
    %181 = vst [vmem:[#allocation2 + $0xd0] sm:$0xff] %v149
    %182 = vst [vmem:[#allocation2 + $0xf8] sm:$0xff] %v150
    %183 = vst [vmem:[#allocation2 + $0x120] sm:$0xff] %v151
    %184 = vst [vmem:[#allocation2 + $0x148] sm:$0xff] %v152
    %185 = vst [vmem:[#allocation2 + $0x170] sm:$0xff] %v153
    %186 = vst [vmem:[#allocation2 + $0x198] sm:$0xff] %v154
    %187 = vst [vmem:[#allocation2 + $0x1c0] sm:$0xff] %v155
    %188 = vst [vmem:[#allocation2 + $0x1e8] sm:$0xff] %v156
    %189 = vst [vmem:[#allocation2 + $0x210] sm:$0xff] %v157
    %190 = vst [vmem:[#allocation2 + $0x238] sm:$0xff] %v158
    %191 = vst [vmem:[#allocation2 + $0x260] sm:$0xff] %v159
    %192 = vst [vmem:[#allocation2 + $0x288] sm:$0xff] %v160
    %193 = vst [vmem:[#allocation2 + $0x2b0] sm:$0xff] %v161
    %194 = vst [vmem:[#allocation2 + $0x2d8] sm:$0xff] %v162
    %195 = vst [vmem:[#allocation2 + $0x300] sm:$0xff] %v163
    %196 = vst [vmem:[#allocation2 + $0x328] sm:$0xff] %v164
    %197 = vst [vmem:[#allocation2 + $0x350] sm:$0xff] %v165
    %198 = vst [vmem:[#allocation2 + $0x378] sm:$0xff] %v166
    %199 = vst [vmem:[#allocation2 + $0x3a0] sm:$0xff] %v167
    %200 = vst [vmem:[#allocation2 + $0x3c8] sm:$0xff] %v168
    %201 = vst [vmem:[#allocation2 + $0x3f0] sm:$0xff] %v169
    %202 = vst [vmem:[#allocation2 + $0x418] sm:$0xff] %v170
    %203 = vst [vmem:[#allocation2 + $0x440] sm:$0xff] %v171
    %204 = vst [vmem:[#allocation2 + $0x468] sm:$0xff] %v172
    %205 = vst [vmem:[#allocation2 + $0x490] sm:$0xff] %v173
    %206 = vst [vmem:[#allocation2 + $0x4b8] sm:$0xff] %v174
    %207 = vst [vmem:[#allocation2 + $0x4e0] sm:$0x7f] %v175
    %v208 = vld [vmem:[%s0 + $0x2] sm:$0xff]
    %v209 = vld [vmem:[%s0 + $0xa] sm:$0xff]
    %v210 = vld [vmem:[%s0 + $0x12] sm:$0xff]
    %v211 = vld [vmem:[%s0 + $0x1a] sm:$0xff]
    %v212 = vld [vmem:[%s0 + $0x22] sm:$0xff]
    %v213 = vld [vmem:[%s0 + $0x2a] sm:$0xff]
    %v214 = vld [vmem:[%s0 + $0x32] sm:$0xff]
    %v215 = vld [vmem:[%s0 + $0x3a] sm:$0xff]
    %v216 = vld [vmem:[%s0 + $0x42] sm:$0xff]
    %v217 = vld [vmem:[%s0 + $0x4a] sm:$0xff]
    %v218 = vld [vmem:[%s0 + $0x52] sm:$0xff]
    %v219 = vld [vmem:[%s0 + $0x5a] sm:$0xff]
    %v220 = vld [vmem:[%s0 + $0x62] sm:$0xff]
    %v221 = vld [vmem:[%s0 + $0x6a] sm:$0xff]
    %v222 = vld [vmem:[%s0 + $0x72] sm:$0xff]
    %v223 = vld [vmem:[%s0 + $0x7a] sm:$0xff]
    %v224 = vld [vmem:[%s0 + $0x82] sm:$0xff]
    %v225 = vld [vmem:[%s0 + $0x8a] sm:$0xff]
    %v226 = vld [vmem:[%s0 + $0x92] sm:$0xff]
    %v227 = vld [vmem:[%s0 + $0x9a] sm:$0xff]
    %v228 = vld [vmem:[%s0 + $0xa2] sm:$0xff]
    %v229 = vld [vmem:[%s0 + $0xaa] sm:$0xff]
    %v230 = vld [vmem:[%s0 + $0xb2] sm:$0xff]
    %v231 = vld [vmem:[%s0 + $0xba] sm:$0xff]
    %v232 = vld [vmem:[%s0 + $0xc2] sm:$0xff]
    %v233 = vld [vmem:[%s0 + $0xca] sm:$0xff]
    %v234 = vld [vmem:[%s0 + $0xd2] sm:$0xff]
    %v235 = vld [vmem:[%s0 + $0xda] sm:$0xff]
    %v236 = vld [vmem:[%s0 + $0xe2] sm:$0xff]
    %v237 = vld [vmem:[%s0 + $0xea] sm:$0xff]
    %v238 = vld [vmem:[%s0 + $0xf2] sm:$0xff]
    %v239 = vld [vmem:[%s0 + $0xfa] sm:$0x3f]
    %240 = vst [vmem:[#allocation2 + $0x10] sm:$0xff] %v208
    %241 = vst [vmem:[#allocation2 + $0x38] sm:$0xff] %v209
    %242 = vst [vmem:[#allocation2 + $0x60] sm:$0xff] %v210
    %243 = vst [vmem:[#allocation2 + $0x88] sm:$0xff] %v211
    %244 = vst [vmem:[#allocation2 + $0xb0] sm:$0xff] %v212
    %245 = vst [vmem:[#allocation2 + $0xd8] sm:$0xff] %v213
    %246 = vst [vmem:[#allocation2 + $0x100] sm:$0xff] %v214
    %247 = vst [vmem:[#allocation2 + $0x128] sm:$0xff] %v215
    %248 = vst [vmem:[#allocation2 + $0x150] sm:$0xff] %v216
    %249 = vst [vmem:[#allocation2 + $0x178] sm:$0xff] %v217
    %250 = vst [vmem:[#allocation2 + $0x1a0] sm:$0xff] %v218
    %251 = vst [vmem:[#allocation2 + $0x1c8] sm:$0xff] %v219
    %252 = vst [vmem:[#allocation2 + $0x1f0] sm:$0xff] %v220
    %253 = vst [vmem:[#allocation2 + $0x218] sm:$0xff] %v221
    %254 = vst [vmem:[#allocation2 + $0x240] sm:$0xff] %v222
    %255 = vst [vmem:[#allocation2 + $0x268] sm:$0xff] %v223
    %256 = vst [vmem:[#allocation2 + $0x290] sm:$0xff] %v224
    %257 = vst [vmem:[#allocation2 + $0x2b8] sm:$0xff] %v225
    %258 = vst [vmem:[#allocation2 + $0x2e0] sm:$0xff] %v226
    %259 = vst [vmem:[#allocation2 + $0x308] sm:$0xff] %v227
    %260 = vst [vmem:[#allocation2 + $0x330] sm:$0xff] %v228
    %261 = vst [vmem:[#allocation2 + $0x358] sm:$0xff] %v229
    %262 = vst [vmem:[#allocation2 + $0x380] sm:$0xff] %v230
    %263 = vst [vmem:[#allocation2 + $0x3a8] sm:$0xff] %v231
    %264 = vst [vmem:[#allocation2 + $0x3d0] sm:$0xff] %v232
    %265 = vst [vmem:[#allocation2 + $0x3f8] sm:$0xff] %v233
    %266 = vst [vmem:[#allocation2 + $0x420] sm:$0xff] %v234
    %267 = vst [vmem:[#allocation2 + $0x448] sm:$0xff] %v235
    %268 = vst [vmem:[#allocation2 + $0x470] sm:$0xff] %v236
    %269 = vst [vmem:[#allocation2 + $0x498] sm:$0xff] %v237
    %270 = vst [vmem:[#allocation2 + $0x4c0] sm:$0xff] %v238
    %271 = vst [vmem:[#allocation2 + $0x4e8] sm:$0x3f] %v239
    %v272 = vld [vmem:[%s0 + $0x3] sm:$0xff]
    %v273 = vld [vmem:[%s0 + $0xb] sm:$0xff]
    %v274 = vld [vmem:[%s0 + $0x13] sm:$0xff]
    %v275 = vld [vmem:[%s0 + $0x1b] sm:$0xff]
    %v276 = vld [vmem:[%s0 + $0x23] sm:$0xff]
    %v277 = vld [vmem:[%s0 + $0x2b] sm:$0xff]
    %v278 = vld [vmem:[%s0 + $0x33] sm:$0xff]
    %v279 = vld [vmem:[%s0 + $0x3b] sm:$0xff]
    %v280 = vld [vmem:[%s0 + $0x43] sm:$0xff]
    %v281 = vld [vmem:[%s0 + $0x4b] sm:$0xff]
    %v282 = vld [vmem:[%s0 + $0x53] sm:$0xff]
    %v283 = vld [vmem:[%s0 + $0x5b] sm:$0xff]
    %v284 = vld [vmem:[%s0 + $0x63] sm:$0xff]
    %v285 = vld [vmem:[%s0 + $0x6b] sm:$0xff]
    %v286 = vld [vmem:[%s0 + $0x73] sm:$0xff]
    %v287 = vld [vmem:[%s0 + $0x7b] sm:$0xff]
    %v288 = vld [vmem:[%s0 + $0x83] sm:$0xff]
    %v289 = vld [vmem:[%s0 + $0x8b] sm:$0xff]
    %v290 = vld [vmem:[%s0 + $0x93] sm:$0xff]
    %v291 = vld [vmem:[%s0 + $0x9b] sm:$0xff]
    %v292 = vld [vmem:[%s0 + $0xa3] sm:$0xff]
    %v293 = vld [vmem:[%s0 + $0xab] sm:$0xff]
    %v294 = vld [vmem:[%s0 + $0xb3] sm:$0xff]
    %v295 = vld [vmem:[%s0 + $0xbb] sm:$0xff]
    %v296 = vld [vmem:[%s0 + $0xc3] sm:$0xff]
    %v297 = vld [vmem:[%s0 + $0xcb] sm:$0xff]
    %v298 = vld [vmem:[%s0 + $0xd3] sm:$0xff]
    %v299 = vld [vmem:[%s0 + $0xdb] sm:$0xff]
    %v300 = vld [vmem:[%s0 + $0xe3] sm:$0xff]
    %v301 = vld [vmem:[%s0 + $0xeb] sm:$0xff]
    %v302 = vld [vmem:[%s0 + $0xf3] sm:$0xff]
    %v303 = vld [vmem:[%s0 + $0xfb] sm:$0x1f]
    %304 = vst [vmem:[#allocation2 + $0x18] sm:$0xff] %v272
    %305 = vst [vmem:[#allocation2 + $0x40] sm:$0xff] %v273
    %306 = vst [vmem:[#allocation2 + $0x68] sm:$0xff] %v274
    %307 = vst [vmem:[#allocation2 + $0x90] sm:$0xff] %v275
    %308 = vst [vmem:[#allocation2 + $0xb8] sm:$0xff] %v276
    %309 = vst [vmem:[#allocation2 + $0xe0] sm:$0xff] %v277
    %310 = vst [vmem:[#allocation2 + $0x108] sm:$0xff] %v278
    %311 = vst [vmem:[#allocation2 + $0x130] sm:$0xff] %v279
    %312 = vst [vmem:[#allocation2 + $0x158] sm:$0xff] %v280
    %313 = vst [vmem:[#allocation2 + $0x180] sm:$0xff] %v281
    %314 = vst [vmem:[#allocation2 + $0x1a8] sm:$0xff] %v282
    %315 = vst [vmem:[#allocation2 + $0x1d0] sm:$0xff] %v283
    %316 = vst [vmem:[#allocation2 + $0x1f8] sm:$0xff] %v284
    %317 = vst [vmem:[#allocation2 + $0x220] sm:$0xff] %v285
    %318 = vst [vmem:[#allocation2 + $0x248] sm:$0xff] %v286
    %319 = vst [vmem:[#allocation2 + $0x270] sm:$0xff] %v287
    %320 = vst [vmem:[#allocation2 + $0x298] sm:$0xff] %v288
    %321 = vst [vmem:[#allocation2 + $0x2c0] sm:$0xff] %v289
    %322 = vst [vmem:[#allocation2 + $0x2e8] sm:$0xff] %v290
    %323 = vst [vmem:[#allocation2 + $0x310] sm:$0xff] %v291
    %324 = vst [vmem:[#allocation2 + $0x338] sm:$0xff] %v292
    %325 = vst [vmem:[#allocation2 + $0x360] sm:$0xff] %v293
    %326 = vst [vmem:[#allocation2 + $0x388] sm:$0xff] %v294
    %327 = vst [vmem:[#allocation2 + $0x3b0] sm:$0xff] %v295
    %328 = vst [vmem:[#allocation2 + $0x3d8] sm:$0xff] %v296
    %329 = vst [vmem:[#allocation2 + $0x400] sm:$0xff] %v297
    %330 = vst [vmem:[#allocation2 + $0x428] sm:$0xff] %v298
    %331 = vst [vmem:[#allocation2 + $0x450] sm:$0xff] %v299
    %332 = vst [vmem:[#allocation2 + $0x478] sm:$0xff] %v300
    %333 = vst [vmem:[#allocation2 + $0x4a0] sm:$0xff] %v301
    %334 = vst [vmem:[#allocation2 + $0x4c8] sm:$0xff] %v302
    %335 = vst [vmem:[#allocation2 + $0x4f0] sm:$0x1f] %v303
    %v336 = vld [vmem:[%s0 + $0x4] sm:$0xff]
    %v337 = vld [vmem:[%s0 + $0xc] sm:$0xff]
    %v338 = vld [vmem:[%s0 + $0x14] sm:$0xff]
    %v339 = vld [vmem:[%s0 + $0x1c] sm:$0xff]
    %v340 = vld [vmem:[%s0 + $0x24] sm:$0xff]
    %v341 = vld [vmem:[%s0 + $0x2c] sm:$0xff]
    %v342 = vld [vmem:[%s0 + $0x34] sm:$0xff]
    %v343 = vld [vmem:[%s0 + $0x3c] sm:$0xff]
    %v344 = vld [vmem:[%s0 + $0x44] sm:$0xff]
    %v345 = vld [vmem:[%s0 + $0x4c] sm:$0xff]
    %v346 = vld [vmem:[%s0 + $0x54] sm:$0xff]
    %v347 = vld [vmem:[%s0 + $0x5c] sm:$0xff]
    %v348 = vld [vmem:[%s0 + $0x64] sm:$0xff]
    %v349 = vld [vmem:[%s0 + $0x6c] sm:$0xff]
    %v350 = vld [vmem:[%s0 + $0x74] sm:$0xff]
    %v351 = vld [vmem:[%s0 + $0x7c] sm:$0xff]
    %v352 = vld [vmem:[%s0 + $0x84] sm:$0xff]
    %v353 = vld [vmem:[%s0 + $0x8c] sm:$0xff]
    %v354 = vld [vmem:[%s0 + $0x94] sm:$0xff]
    %v355 = vld [vmem:[%s0 + $0x9c] sm:$0xff]
    %v356 = vld [vmem:[%s0 + $0xa4] sm:$0xff]
    %v357 = vld [vmem:[%s0 + $0xac] sm:$0xff]
    %v358 = vld [vmem:[%s0 + $0xb4] sm:$0xff]
    %v359 = vld [vmem:[%s0 + $0xbc] sm:$0xff]
    %v360 = vld [vmem:[%s0 + $0xc4] sm:$0xff]
    %v361 = vld [vmem:[%s0 + $0xcc] sm:$0xff]
    %v362 = vld [vmem:[%s0 + $0xd4] sm:$0xff]
    %v363 = vld [vmem:[%s0 + $0xdc] sm:$0xff]
    %v364 = vld [vmem:[%s0 + $0xe4] sm:$0xff]
    %v365 = vld [vmem:[%s0 + $0xec] sm:$0xff]
    %v366 = vld [vmem:[%s0 + $0xf4] sm:$0xff]
    %v367 = vld [vmem:[%s0 + $0xfc] sm:$0xf]
    %368 = vst [vmem:[#allocation2 + $0x20] sm:$0xff] %v336
    %369 = vst [vmem:[#allocation2 + $0x48] sm:$0xff] %v337
    %370 = vst [vmem:[#allocation2 + $0x70] sm:$0xff] %v338
    %371 = vst [vmem:[#allocation2 + $0x98] sm:$0xff] %v339
    %372 = vst [vmem:[#allocation2 + $0xc0] sm:$0xff] %v340
    %373 = vst [vmem:[#allocation2 + $0xe8] sm:$0xff] %v341
    %374 = vst [vmem:[#allocation2 + $0x110] sm:$0xff] %v342
    %375 = vst [vmem:[#allocation2 + $0x138] sm:$0xff] %v343
    %376 = vst [vmem:[#allocation2 + $0x160] sm:$0xff] %v344
    %377 = vst [vmem:[#allocation2 + $0x188] sm:$0xff] %v345
    %378 = vst [vmem:[#allocation2 + $0x1b0] sm:$0xff] %v346
    %379 = vst [vmem:[#allocation2 + $0x1d8] sm:$0xff] %v347
    %380 = vst [vmem:[#allocation2 + $0x200] sm:$0xff] %v348
    %381 = vst [vmem:[#allocation2 + $0x228] sm:$0xff] %v349
    %382 = vst [vmem:[#allocation2 + $0x250] sm:$0xff] %v350
    %383 = vst [vmem:[#allocation2 + $0x278] sm:$0xff] %v351
    %384 = vst [vmem:[#allocation2 + $0x2a0] sm:$0xff] %v352
    %385 = vst [vmem:[#allocation2 + $0x2c8] sm:$0xff] %v353
    %386 = vst [vmem:[#allocation2 + $0x2f0] sm:$0xff] %v354
    %387 = vst [vmem:[#allocation2 + $0x318] sm:$0xff] %v355
    %388 = vst [vmem:[#allocation2 + $0x340] sm:$0xff] %v356
    %389 = vst [vmem:[#allocation2 + $0x368] sm:$0xff] %v357
    %390 = vst [vmem:[#allocation2 + $0x390] sm:$0xff] %v358
    %391 = vst [vmem:[#allocation2 + $0x3b8] sm:$0xff] %v359
    %392 = vst [vmem:[#allocation2 + $0x3e0] sm:$0xff] %v360
    %393 = vst [vmem:[#allocation2 + $0x408] sm:$0xff] %v361
    %394 = vst [vmem:[#allocation2 + $0x430] sm:$0xff] %v362
    %395 = vst [vmem:[#allocation2 + $0x458] sm:$0xff] %v363
    %396 = vst [vmem:[#allocation2 + $0x480] sm:$0xff] %v364
    %397 = vst [vmem:[#allocation2 + $0x4a8] sm:$0xff] %v365
    %398 = vst [vmem:[#allocation2 + $0x4d0] sm:$0xff] %v366
    %399 = vst [vmem:[#allocation2 + $0x4f8] sm:$0xf] %v367
    %400 = vst [vmem:[#allocation2 + $0x4d8] sm:$0xf0] 0.0
    %401 = vst [vmem:[#allocation2 + $0x4e0] sm:$0xf0] 0.0
    %402 = vst [vmem:[#allocation2 + $0x4e8] sm:$0xf0] 0.0
    %403 = vst [vmem:[#allocation2 + $0x4f0] sm:$0xf0] 0.0
    %404 = vst [vmem:[#allocation2 + $0x4f8] sm:$0xf0] 0.0
    %v405 = vld [vmem:[#allocation2] sm:$0xff]
    %v406 = vld [vmem:[#allocation2 + $0x8] sm:$0xff]
    %v407 = vld [vmem:[#allocation2 + $0x10] sm:$0xff]
    %v408 = vld [vmem:[#allocation2 + $0x18] sm:$0xff]
    %v409 = vld [vmem:[#allocation2 + $0x20] sm:$0xff]
    %v410 = vld [vmem:[#allocation2 + $0x28] sm:$0xff]
    %v411 = vld [vmem:[#allocation2 + $0x30] sm:$0xff]
    %v412 = vld [vmem:[#allocation2 + $0x38] sm:$0xff]
    %v413 = vld [vmem:[#allocation2 + $0x40] sm:$0xff]
    %v414 = vld [vmem:[#allocation2 + $0x48] sm:$0xff]
    %v415 = vld [vmem:[#allocation2 + $0x50] sm:$0xff]
    %v416 = vld [vmem:[#allocation2 + $0x58] sm:$0xff]
    %v417 = vld [vmem:[#allocation2 + $0x60] sm:$0xff]
    %v418 = vld [vmem:[#allocation2 + $0x68] sm:$0xff]
    %v419 = vld [vmem:[#allocation2 + $0x70] sm:$0xff]
    %v420 = vld [vmem:[#allocation2 + $0x78] sm:$0xff]
    %v421 = vld [vmem:[#allocation2 + $0x80] sm:$0xff]
    %v422 = vld [vmem:[#allocation2 + $0x88] sm:$0xff]
    %v423 = vld [vmem:[#allocation2 + $0x90] sm:$0xff]
    %v424 = vld [vmem:[#allocation2 + $0x98] sm:$0xff]
    %v425 = vld [vmem:[#allocation2 + $0xa0] sm:$0xff]
    %v426 = vld [vmem:[#allocation2 + $0xa8] sm:$0xff]
    %v427 = vld [vmem:[#allocation2 + $0xb0] sm:$0xff]
    %v428 = vld [vmem:[#allocation2 + $0xb8] sm:$0xff]
    %v429 = vld [vmem:[#allocation2 + $0xc0] sm:$0xff]
    %v430 = vld [vmem:[#allocation2 + $0xc8] sm:$0xff]
    %v431 = vld [vmem:[#allocation2 + $0xd0] sm:$0xff]
    %v432 = vld [vmem:[#allocation2 + $0xd8] sm:$0xff]
    %v433 = vld [vmem:[#allocation2 + $0xe0] sm:$0xff]
    %v434 = vld [vmem:[#allocation2 + $0xe8] sm:$0xff]
    %v435 = vld [vmem:[#allocation2 + $0xf0] sm:$0xff]
    %v436 = vld [vmem:[#allocation2 + $0xf8] sm:$0xff]
    %v437 = vld [vmem:[#allocation2 + $0x100] sm:$0xff]
    %v438 = vld [vmem:[#allocation2 + $0x108] sm:$0xff]
    %v439 = vld [vmem:[#allocation2 + $0x110] sm:$0xff]
    %v440 = vld [vmem:[#allocation2 + $0x118] sm:$0xff]
    %v441 = vld [vmem:[#allocation2 + $0x120] sm:$0xff]
    %v442 = vld [vmem:[#allocation2 + $0x128] sm:$0xff]
    %v443 = vld [vmem:[#allocation2 + $0x130] sm:$0xff]
    %v444 = vld [vmem:[#allocation2 + $0x138] sm:$0xff]
    %v445 = vld [vmem:[#allocation2 + $0x140] sm:$0xff]
    %v446 = vld [vmem:[#allocation2 + $0x148] sm:$0xff]
    %v447 = vld [vmem:[#allocation2 + $0x150] sm:$0xff]
    %v448 = vld [vmem:[#allocation2 + $0x158] sm:$0xff]
    %v449 = vld [vmem:[#allocation2 + $0x160] sm:$0xff]
    %v450 = vld [vmem:[#allocation2 + $0x168] sm:$0xff]
    %v451 = vld [vmem:[#allocation2 + $0x170] sm:$0xff]
    %v452 = vld [vmem:[#allocation2 + $0x178] sm:$0xff]
    %v453 = vld [vmem:[#allocation2 + $0x180] sm:$0xff]
    %v454 = vld [vmem:[#allocation2 + $0x188] sm:$0xff]
    %v455 = vld [vmem:[#allocation2 + $0x190] sm:$0xff]
    %v456 = vld [vmem:[#allocation2 + $0x198] sm:$0xff]
    %v457 = vld [vmem:[#allocation2 + $0x1a0] sm:$0xff]
    %v458 = vld [vmem:[#allocation2 + $0x1a8] sm:$0xff]
    %v459 = vld [vmem:[#allocation2 + $0x1b0] sm:$0xff]
    %v460 = vld [vmem:[#allocation2 + $0x1b8] sm:$0xff]
    %v461 = vld [vmem:[#allocation2 + $0x1c0] sm:$0xff]
    %v462 = vld [vmem:[#allocation2 + $0x1c8] sm:$0xff]
    %v463 = vld [vmem:[#allocation2 + $0x1d0] sm:$0xff]
    %v464 = vld [vmem:[#allocation2 + $0x1d8] sm:$0xff]
    %v465 = vld [vmem:[#allocation2 + $0x1e0] sm:$0xff]
    %v466 = vld [vmem:[#allocation2 + $0x1e8] sm:$0xff]
    %v467 = vld [vmem:[#allocation2 + $0x1f0] sm:$0xff]
    %v468 = vld [vmem:[#allocation2 + $0x1f8] sm:$0xff]
    %v469 = vld [vmem:[#allocation2 + $0x200] sm:$0xff]
    %v470 = vld [vmem:[#allocation2 + $0x208] sm:$0xff]
    %v471 = vld [vmem:[#allocation2 + $0x210] sm:$0xff]
    %v472 = vld [vmem:[#allocation2 + $0x218] sm:$0xff]
    %v473 = vld [vmem:[#allocation2 + $0x220] sm:$0xff]
    %v474 = vld [vmem:[#allocation2 + $0x228] sm:$0xff]
    %v475 = vld [vmem:[#allocation2 + $0x230] sm:$0xff]
    %v476 = vld [vmem:[#allocation2 + $0x238] sm:$0xff]
    %v477 = vld [vmem:[#allocation2 + $0x240] sm:$0xff]
    %v478 = vld [vmem:[#allocation2 + $0x248] sm:$0xff]
    %v479 = vld [vmem:[#allocation2 + $0x250] sm:$0xff]
    %v480 = vld [vmem:[#allocation2 + $0x258] sm:$0xff]
    %v481 = vld [vmem:[#allocation2 + $0x260] sm:$0xff]
    %v482 = vld [vmem:[#allocation2 + $0x268] sm:$0xff]
    %v483 = vld [vmem:[#allocation2 + $0x270] sm:$0xff]
    %v484 = vld [vmem:[#allocation2 + $0x278] sm:$0xff]
    %v485 = vld [vmem:[#allocation2 + $0x280] sm:$0xff]
    %v486 = vld [vmem:[#allocation2 + $0x288] sm:$0xff]
    %v487 = vld [vmem:[#allocation2 + $0x290] sm:$0xff]
    %v488 = vld [vmem:[#allocation2 + $0x298] sm:$0xff]
    %v489 = vld [vmem:[#allocation2 + $0x2a0] sm:$0xff]
    %v490 = vld [vmem:[#allocation2 + $0x2a8] sm:$0xff]
    %v491 = vld [vmem:[#allocation2 + $0x2b0] sm:$0xff]
    %v492 = vld [vmem:[#allocation2 + $0x2b8] sm:$0xff]
    %v493 = vld [vmem:[#allocation2 + $0x2c0] sm:$0xff]
    %v494 = vld [vmem:[#allocation2 + $0x2c8] sm:$0xff]
    %v495 = vld [vmem:[#allocation2 + $0x2d0] sm:$0xff]
    %v496 = vld [vmem:[#allocation2 + $0x2d8] sm:$0xff]
    %v497 = vld [vmem:[#allocation2 + $0x2e0] sm:$0xff]
    %v498 = vld [vmem:[#allocation2 + $0x2e8] sm:$0xff]
    %v499 = vld [vmem:[#allocation2 + $0x2f0] sm:$0xff]
    %v500 = vld [vmem:[#allocation2 + $0x2f8] sm:$0xff]
    %v501 = vld [vmem:[#allocation2 + $0x300] sm:$0xff]
    %v502 = vld [vmem:[#allocation2 + $0x308] sm:$0xff]
    %v503 = vld [vmem:[#allocation2 + $0x310] sm:$0xff]
    %v504 = vld [vmem:[#allocation2 + $0x318] sm:$0xff]
    %v505 = vld [vmem:[#allocation2 + $0x320] sm:$0xff]
    %v506 = vld [vmem:[#allocation2 + $0x328] sm:$0xff]
    %v507 = vld [vmem:[#allocation2 + $0x330] sm:$0xff]
    %v508 = vld [vmem:[#allocation2 + $0x338] sm:$0xff]
    %v509 = vld [vmem:[#allocation2 + $0x340] sm:$0xff]
    %v510 = vld [vmem:[#allocation2 + $0x348] sm:$0xff]
    %v511 = vld [vmem:[#allocation2 + $0x350] sm:$0xff]
    %v512 = vld [vmem:[#allocation2 + $0x358] sm:$0xff]
    %v513 = vld [vmem:[#allocation2 + $0x360] sm:$0xff]
    %v514 = vld [vmem:[#allocation2 + $0x368] sm:$0xff]
    %v515 = vld [vmem:[#allocation2 + $0x370] sm:$0xff]
    %v516 = vld [vmem:[#allocation2 + $0x378] sm:$0xff]
    %v517 = vld [vmem:[#allocation2 + $0x380] sm:$0xff]
    %v518 = vld [vmem:[#allocation2 + $0x388] sm:$0xff]
    %v519 = vld [vmem:[#allocation2 + $0x390] sm:$0xff]
    %v520 = vld [vmem:[#allocation2 + $0x398] sm:$0xff]
    %v521 = vld [vmem:[#allocation2 + $0x3a0] sm:$0xff]
    %v522 = vld [vmem:[#allocation2 + $0x3a8] sm:$0xff]
    %v523 = vld [vmem:[#allocation2 + $0x3b0] sm:$0xff]
    %v524 = vld [vmem:[#allocation2 + $0x3b8] sm:$0xff]
    %v525 = vld [vmem:[#allocation2 + $0x3c0] sm:$0xff]
    %v526 = vld [vmem:[#allocation2 + $0x3c8] sm:$0xff]
    %v527 = vld [vmem:[#allocation2 + $0x3d0] sm:$0xff]
    %v528 = vld [vmem:[#allocation2 + $0x3d8] sm:$0xff]
    %v529 = vld [vmem:[#allocation2 + $0x3e0] sm:$0xff]
    %v530 = vld [vmem:[#allocation2 + $0x3e8] sm:$0xff]
    %v531 = vld [vmem:[#allocation2 + $0x3f0] sm:$0xff]
    %v532 = vld [vmem:[#allocation2 + $0x3f8] sm:$0xff]
    %v533 = vld [vmem:[#allocation2 + $0x400] sm:$0xff]
    %v534 = vld [vmem:[#allocation2 + $0x408] sm:$0xff]
    %v535 = vld [vmem:[#allocation2 + $0x410] sm:$0xff]
    %v536 = vld [vmem:[#allocation2 + $0x418] sm:$0xff]
    %v537 = vld [vmem:[#allocation2 + $0x420] sm:$0xff]
    %v538 = vld [vmem:[#allocation2 + $0x428] sm:$0xff]
    %v539 = vld [vmem:[#allocation2 + $0x430] sm:$0xff]
    %v540 = vld [vmem:[#allocation2 + $0x438] sm:$0xff]
    %v541 = vld [vmem:[#allocation2 + $0x440] sm:$0xff]
    %v542 = vld [vmem:[#allocation2 + $0x448] sm:$0xff]
    %v543 = vld [vmem:[#allocation2 + $0x450] sm:$0xff]
    %v544 = vld [vmem:[#allocation2 + $0x458] sm:$0xff]
    %v545 = vld [vmem:[#allocation2 + $0x460] sm:$0xff]
    %v546 = vld [vmem:[#allocation2 + $0x468] sm:$0xff]
    %v547 = vld [vmem:[#allocation2 + $0x470] sm:$0xff]
    %v548 = vld [vmem:[#allocation2 + $0x478] sm:$0xff]
    %v549 = vld [vmem:[#allocation2 + $0x480] sm:$0xff]
    %v550 = vld [vmem:[#allocation2 + $0x488] sm:$0xff]
    %v551 = vld [vmem:[#allocation2 + $0x490] sm:$0xff]
    %v552 = vld [vmem:[#allocation2 + $0x498] sm:$0xff]
    %v553 = vld [vmem:[#allocation2 + $0x4a0] sm:$0xff]
    %v554 = vld [vmem:[#allocation2 + $0x4a8] sm:$0xff]
    %v555 = vld [vmem:[#allocation2 + $0x4b0] sm:$0xff]
    %v556 = vld [vmem:[#allocation2 + $0x4b8] sm:$0xff]
    %v557 = vld [vmem:[#allocation2 + $0x4c0] sm:$0xff]
    %v558 = vld [vmem:[#allocation2 + $0x4c8] sm:$0xff]
    %v559 = vld [vmem:[#allocation2 + $0x4d0] sm:$0xff]
    %v560 = vld [vmem:[#allocation2 + $0x4d8] sm:$0xff]
    %v561 = vld [vmem:[#allocation2 + $0x4e0] sm:$0xff]
    %v562 = vld [vmem:[#allocation2 + $0x4e8] sm:$0xff]
    %v563 = vld [vmem:[#allocation2 + $0x4f0] sm:$0xff]
    %v564 = vld [vmem:[#allocation2 + $0x4f8] sm:$0xff]
    %v565 = vpack.c.bf16 %v410, %v405
    %v566 = vpack.c.bf16 %v411, %v406
    %v567 = vpack.c.bf16 %v412, %v407
    %v568 = vpack.c.bf16 %v413, %v408
    %v569 = vpack.c.bf16 %v414, %v409
    %v570 = vpack.c.bf16 %v420, %v415
    %v571 = vpack.c.bf16 %v421, %v416
    %v572 = vpack.c.bf16 %v422, %v417
    %v573 = vpack.c.bf16 %v423, %v418
    %v574 = vpack.c.bf16 %v424, %v419
    %v575 = vpack.c.bf16 %v430, %v425
    %v576 = vpack.c.bf16 %v431, %v426
    %v577 = vpack.c.bf16 %v432, %v427
    %v578 = vpack.c.bf16 %v433, %v428
    %v579 = vpack.c.bf16 %v434, %v429
    %v580 = vpack.c.bf16 %v440, %v435
    %v581 = vpack.c.bf16 %v441, %v436
    %v582 = vpack.c.bf16 %v442, %v437
    %v583 = vpack.c.bf16 %v443, %v438
    %v584 = vpack.c.bf16 %v444, %v439
    %v585 = vpack.c.bf16 %v450, %v445
    %v586 = vpack.c.bf16 %v451, %v446
    %v587 = vpack.c.bf16 %v452, %v447
    %v588 = vpack.c.bf16 %v453, %v448
    %v589 = vpack.c.bf16 %v454, %v449
    %v590 = vpack.c.bf16 %v460, %v455
    %v591 = vpack.c.bf16 %v461, %v456
    %v592 = vpack.c.bf16 %v462, %v457
    %v593 = vpack.c.bf16 %v463, %v458
    %v594 = vpack.c.bf16 %v464, %v459
    %v595 = vpack.c.bf16 %v470, %v465
    %v596 = vpack.c.bf16 %v471, %v466
    %v597 = vpack.c.bf16 %v472, %v467
    %v598 = vpack.c.bf16 %v473, %v468
    %v599 = vpack.c.bf16 %v474, %v469
    %v600 = vpack.c.bf16 %v480, %v475
    %v601 = vpack.c.bf16 %v481, %v476
    %v602 = vpack.c.bf16 %v482, %v477
    %v603 = vpack.c.bf16 %v483, %v478
    %v604 = vpack.c.bf16 %v484, %v479
    %v605 = vpack.c.bf16 %v490, %v485
    %v606 = vpack.c.bf16 %v491, %v486
    %v607 = vpack.c.bf16 %v492, %v487
    %v608 = vpack.c.bf16 %v493, %v488
    %v609 = vpack.c.bf16 %v494, %v489
    %v610 = vpack.c.bf16 %v500, %v495
    %v611 = vpack.c.bf16 %v501, %v496
    %v612 = vpack.c.bf16 %v502, %v497
    %v613 = vpack.c.bf16 %v503, %v498
    %v614 = vpack.c.bf16 %v504, %v499
    %v615 = vpack.c.bf16 %v510, %v505
    %v616 = vpack.c.bf16 %v511, %v506
    %v617 = vpack.c.bf16 %v512, %v507
    %v618 = vpack.c.bf16 %v513, %v508
    %v619 = vpack.c.bf16 %v514, %v509
    %v620 = vpack.c.bf16 %v520, %v515
    %v621 = vpack.c.bf16 %v521, %v516
    %v622 = vpack.c.bf16 %v522, %v517
    %v623 = vpack.c.bf16 %v523, %v518
    %v624 = vpack.c.bf16 %v524, %v519
    %v625 = vpack.c.bf16 %v530, %v525
    %v626 = vpack.c.bf16 %v531, %v526
    %v627 = vpack.c.bf16 %v532, %v527
    %v628 = vpack.c.bf16 %v533, %v528
    %v629 = vpack.c.bf16 %v534, %v529
    %v630 = vpack.c.bf16 %v540, %v535
    %v631 = vpack.c.bf16 %v541, %v536
    %v632 = vpack.c.bf16 %v542, %v537
    %v633 = vpack.c.bf16 %v543, %v538
    %v634 = vpack.c.bf16 %v544, %v539
    %v635 = vpack.c.bf16 %v550, %v545
    %v636 = vpack.c.bf16 %v551, %v546
    %v637 = vpack.c.bf16 %v552, %v547
    %v638 = vpack.c.bf16 %v553, %v548
    %v639 = vpack.c.bf16 %v554, %v549
    %v640 = vpack.c.bf16 %v560, %v555
    %v641 = vpack.c.bf16 %v561, %v556
    %v642 = vpack.c.bf16 %v562, %v557
    %v643 = vpack.c.bf16 %v563, %v558
    %v644 = vpack.c.bf16 %v564, %v559
    %v645 = vld [vmem:[%s1] sm:$0xff]
    %v646 = vld [vmem:[%s1 + $0x8] sm:$0xff]
    %v647 = vld [vmem:[%s1 + $0x10] sm:$0xff]
    %v648 = vld [vmem:[%s1 + $0x18] sm:$0xff]
    %v649 = vld [vmem:[%s1 + $0x20] sm:$0xff]
    %v650 = vld [vmem:[%s1 + $0x28] sm:$0xff]
    %v651 = vld [vmem:[%s1 + $0x30] sm:$0xff]
    %v652 = vld [vmem:[%s1 + $0x38] sm:$0xff]
    %v653 = vld [vmem:[%s1 + $0x40] sm:$0xff]
    %v654 = vld [vmem:[%s1 + $0x48] sm:$0xff]
    %v655 = vld [vmem:[%s1 + $0x50] sm:$0xff]
    %v656 = vld [vmem:[%s1 + $0x58] sm:$0xff]
    %v657 = vld [vmem:[%s1 + $0x60] sm:$0xff]
    %v658 = vld [vmem:[%s1 + $0x68] sm:$0xff]
    %v659 = vld [vmem:[%s1 + $0x70] sm:$0xff]
    %v660 = vld [vmem:[%s1 + $0x78] sm:$0xff]
    %v661 = vld [vmem:[%s1 + $0x80] sm:$0xff]
    %v662 = vld [vmem:[%s1 + $0x88] sm:$0xff]
    %v663 = vld [vmem:[%s1 + $0x90] sm:$0xff]
    %v664 = vld [vmem:[%s1 + $0x98] sm:$0xff]
    %v665 = vld [vmem:[%s1 + $0xa0] sm:$0xff]
    %v666 = vld [vmem:[%s1 + $0xa8] sm:$0xff]
    %v667 = vld [vmem:[%s1 + $0xb0] sm:$0xff]
    %v668 = vld [vmem:[%s1 + $0xb8] sm:$0xff]
    %v669 = vld [vmem:[%s1 + $0xc0] sm:$0xff]
    %v670 = vld [vmem:[%s1 + $0xc8] sm:$0xff]
    %v671 = vld [vmem:[%s1 + $0xd0] sm:$0xff]
    %v672 = vld [vmem:[%s1 + $0xd8] sm:$0xff]
    %v673 = vld [vmem:[%s1 + $0xe0] sm:$0xff]
    %v674 = vld [vmem:[%s1 + $0xe8] sm:$0xff]
    %v675 = vld [vmem:[%s1 + $0xf0] sm:$0xff]
    %v676 = vld [vmem:[%s1 + $0xf8] sm:$0xff]
    %v677 = vld [vmem:[%s1 + $0x100] sm:$0xff]
    %v678 = vld [vmem:[%s1 + $0x108] sm:$0xff]
    %v679 = vld [vmem:[%s1 + $0x110] sm:$0xff]
    %v680 = vld [vmem:[%s1 + $0x118] sm:$0xff]
    %v681 = vld [vmem:[%s1 + $0x120] sm:$0xff]
    %v682 = vld [vmem:[%s1 + $0x128] sm:$0xff]
    %v683 = vld [vmem:[%s1 + $0x130] sm:$0xff]
    %v684 = vld [vmem:[%s1 + $0x138] sm:$0xff]
    %v685 = vld [vmem:[%s1 + $0x140] sm:$0xff]
    %v686 = vld [vmem:[%s1 + $0x148] sm:$0xff]
    %v687 = vld [vmem:[%s1 + $0x150] sm:$0xff]
    %v688 = vld [vmem:[%s1 + $0x158] sm:$0xff]
    %v689 = vld [vmem:[%s1 + $0x160] sm:$0xff]
    %v690 = vld [vmem:[%s1 + $0x168] sm:$0xff]
    %v691 = vld [vmem:[%s1 + $0x170] sm:$0xff]
    %v692 = vld [vmem:[%s1 + $0x178] sm:$0xff]
    %v693 = vld [vmem:[%s1 + $0x180] sm:$0xff]
    %v694 = vld [vmem:[%s1 + $0x188] sm:$0xff]
    %v695 = vld [vmem:[%s1 + $0x190] sm:$0xff]
    %v696 = vld [vmem:[%s1 + $0x198] sm:$0xff]
    %v697 = vld [vmem:[%s1 + $0x1a0] sm:$0xff]
    %v698 = vld [vmem:[%s1 + $0x1a8] sm:$0xff]
    %v699 = vld [vmem:[%s1 + $0x1b0] sm:$0xff]
    %v700 = vld [vmem:[%s1 + $0x1b8] sm:$0xff]
    %v701 = vld [vmem:[%s1 + $0x1c0] sm:$0xff]
    %v702 = vld [vmem:[%s1 + $0x1c8] sm:$0xff]
    %v703 = vld [vmem:[%s1 + $0x1d0] sm:$0xff]
    %v704 = vld [vmem:[%s1 + $0x1d8] sm:$0xff]
    %v705 = vld [vmem:[%s1 + $0x1e0] sm:$0xff]
    %v706 = vld [vmem:[%s1 + $0x1e8] sm:$0xff]
    %v707 = vld [vmem:[%s1 + $0x1f0] sm:$0xff]
    %v708 = vld [vmem:[%s1 + $0x1f8] sm:$0xff]
    %v709 = vld [vmem:[%s1 + $0x200] sm:$0xff]
    %v710 = vld [vmem:[%s1 + $0x208] sm:$0xff]
    %v711 = vld [vmem:[%s1 + $0x210] sm:$0xff]
    %v712 = vld [vmem:[%s1 + $0x218] sm:$0xff]
    %v713 = vld [vmem:[%s1 + $0x220] sm:$0xff]
    %v714 = vld [vmem:[%s1 + $0x228] sm:$0xff]
    %v715 = vld [vmem:[%s1 + $0x230] sm:$0xff]
    %v716 = vld [vmem:[%s1 + $0x238] sm:$0xff]
    %v717 = vld [vmem:[%s1 + $0x240] sm:$0xff]
    %v718 = vld [vmem:[%s1 + $0x248] sm:$0xff]
    %v719 = vld [vmem:[%s1 + $0x250] sm:$0xff]
    %v720 = vld [vmem:[%s1 + $0x258] sm:$0xff]
    %v721 = vld [vmem:[%s1 + $0x260] sm:$0xff]
    %v722 = vld [vmem:[%s1 + $0x268] sm:$0xff]
    %v723 = vld [vmem:[%s1 + $0x270] sm:$0xff]
    %v724 = vld [vmem:[%s1 + $0x278] sm:$0xff]
    %v725 = vld [vmem:[%s2] sm:$0x3]
    %v727 = vlaneseq
    %v728 = vshrl.u32 %v727, 7
    %v729 = vsub.s32 0, %v728
    %v730 = vrot.slane %v725, %v729
    %v731 = vlaneseq
    %v732 = vshrl.u32 %v731, 7
    %v733 = vsub.s32 1, %v732
    %v734 = vrot.slane %v725, %v733
    %v817 = vunpack.c.l.b16 %v645
    %v818 = vunpack.c.h.b16 %v645
    %v819 = vunpack.c.l.b16 %v646
    %v820 = vunpack.c.h.b16 %v646
    %v821 = vunpack.c.l.b16 %v647
    %v822 = vunpack.c.h.b16 %v647
    %v823 = vunpack.c.l.b16 %v648
    %v824 = vunpack.c.h.b16 %v648
    %v825 = vunpack.c.l.b16 %v649
    %v826 = vunpack.c.h.b16 %v649
    %v827 = vunpack.c.l.b16 %v650
    %v828 = vunpack.c.h.b16 %v650
    %v829 = vunpack.c.l.b16 %v651
    %v830 = vunpack.c.h.b16 %v651
    %v831 = vunpack.c.l.b16 %v652
    %v832 = vunpack.c.h.b16 %v652
    %v833 = vunpack.c.l.b16 %v653
    %v834 = vunpack.c.h.b16 %v653
    %v835 = vunpack.c.l.b16 %v654
    %v836 = vunpack.c.h.b16 %v654
    %v837 = vunpack.c.l.b16 %v655
    %v838 = vunpack.c.h.b16 %v655
    %v839 = vunpack.c.l.b16 %v656
    %v840 = vunpack.c.h.b16 %v656
    %v841 = vunpack.c.l.b16 %v657
    %v842 = vunpack.c.h.b16 %v657
    %v843 = vunpack.c.l.b16 %v658
    %v844 = vunpack.c.h.b16 %v658
    %v845 = vunpack.c.l.b16 %v659
    %v846 = vunpack.c.h.b16 %v659
    %v847 = vunpack.c.l.b16 %v660
    %v848 = vunpack.c.h.b16 %v660
    %v849 = vunpack.c.l.b16 %v661
    %v850 = vunpack.c.h.b16 %v661
    %v851 = vunpack.c.l.b16 %v662
    %v852 = vunpack.c.h.b16 %v662
    %v853 = vunpack.c.l.b16 %v663
    %v854 = vunpack.c.h.b16 %v663
    %v855 = vunpack.c.l.b16 %v664
    %v856 = vunpack.c.h.b16 %v664
    %v857 = vunpack.c.l.b16 %v665
    %v858 = vunpack.c.h.b16 %v665
    %v859 = vunpack.c.l.b16 %v666
    %v860 = vunpack.c.h.b16 %v666
    %v861 = vunpack.c.l.b16 %v667
    %v862 = vunpack.c.h.b16 %v667
    %v863 = vunpack.c.l.b16 %v668
    %v864 = vunpack.c.h.b16 %v668
    %v865 = vunpack.c.l.b16 %v669
    %v866 = vunpack.c.h.b16 %v669
    %v867 = vunpack.c.l.b16 %v670
    %v868 = vunpack.c.h.b16 %v670
    %v869 = vunpack.c.l.b16 %v671
    %v870 = vunpack.c.h.b16 %v671
    %v871 = vunpack.c.l.b16 %v672
    %v872 = vunpack.c.h.b16 %v672
    %v873 = vunpack.c.l.b16 %v673
    %v874 = vunpack.c.h.b16 %v673
    %v875 = vunpack.c.l.b16 %v674
    %v876 = vunpack.c.h.b16 %v674
    %v877 = vunpack.c.l.b16 %v675
    %v878 = vunpack.c.h.b16 %v675
    %v879 = vunpack.c.l.b16 %v676
    %v880 = vunpack.c.h.b16 %v676
    %v881 = vunpack.c.l.b16 %v677
    %v882 = vunpack.c.h.b16 %v677
    %v883 = vunpack.c.l.b16 %v678
    %v884 = vunpack.c.h.b16 %v678
    %v885 = vunpack.c.l.b16 %v679
    %v886 = vunpack.c.h.b16 %v679
    %v887 = vunpack.c.l.b16 %v680
    %v888 = vunpack.c.h.b16 %v680
    %v889 = vunpack.c.l.b16 %v681
    %v890 = vunpack.c.h.b16 %v681
    %v891 = vunpack.c.l.b16 %v682
    %v892 = vunpack.c.h.b16 %v682
    %v893 = vunpack.c.l.b16 %v683
    %v894 = vunpack.c.h.b16 %v683
    %v895 = vunpack.c.l.b16 %v684
    %v896 = vunpack.c.h.b16 %v684
    %v897 = vunpack.c.l.b16 %v685
    %v898 = vunpack.c.h.b16 %v685
    %v899 = vunpack.c.l.b16 %v686
    %v900 = vunpack.c.h.b16 %v686
    %v901 = vunpack.c.l.b16 %v687
    %v902 = vunpack.c.h.b16 %v687
    %v903 = vunpack.c.l.b16 %v688
    %v904 = vunpack.c.h.b16 %v688
    %v905 = vunpack.c.l.b16 %v689
    %v906 = vunpack.c.h.b16 %v689
    %v907 = vunpack.c.l.b16 %v690
    %v908 = vunpack.c.h.b16 %v690
    %v909 = vunpack.c.l.b16 %v691
    %v910 = vunpack.c.h.b16 %v691
    %v911 = vunpack.c.l.b16 %v692
    %v912 = vunpack.c.h.b16 %v692
    %v913 = vunpack.c.l.b16 %v693
    %v914 = vunpack.c.h.b16 %v693
    %v915 = vunpack.c.l.b16 %v694
    %v916 = vunpack.c.h.b16 %v694
    %v917 = vunpack.c.l.b16 %v695
    %v918 = vunpack.c.h.b16 %v695
    %v919 = vunpack.c.l.b16 %v696
    %v920 = vunpack.c.h.b16 %v696
    %v921 = vunpack.c.l.b16 %v697
    %v922 = vunpack.c.h.b16 %v697
    %v923 = vunpack.c.l.b16 %v698
    %v924 = vunpack.c.h.b16 %v698
    %v925 = vunpack.c.l.b16 %v699
    %v926 = vunpack.c.h.b16 %v699
    %v927 = vunpack.c.l.b16 %v700
    %v928 = vunpack.c.h.b16 %v700
    %v929 = vunpack.c.l.b16 %v701
    %v930 = vunpack.c.h.b16 %v701
    %v931 = vunpack.c.l.b16 %v702
    %v932 = vunpack.c.h.b16 %v702
    %v933 = vunpack.c.l.b16 %v703
    %v934 = vunpack.c.h.b16 %v703
    %v935 = vunpack.c.l.b16 %v704
    %v936 = vunpack.c.h.b16 %v704
    %v937 = vunpack.c.l.b16 %v705
    %v938 = vunpack.c.h.b16 %v705
    %v939 = vunpack.c.l.b16 %v706
    %v940 = vunpack.c.h.b16 %v706
    %v941 = vunpack.c.l.b16 %v707
    %v942 = vunpack.c.h.b16 %v707
    %v943 = vunpack.c.l.b16 %v708
    %v944 = vunpack.c.h.b16 %v708
    %v945 = vunpack.c.l.b16 %v709
    %v946 = vunpack.c.h.b16 %v709
    %v947 = vunpack.c.l.b16 %v710
    %v948 = vunpack.c.h.b16 %v710
    %v949 = vunpack.c.l.b16 %v711
    %v950 = vunpack.c.h.b16 %v711
    %v951 = vunpack.c.l.b16 %v712
    %v952 = vunpack.c.h.b16 %v712
    %v953 = vunpack.c.l.b16 %v713
    %v954 = vunpack.c.h.b16 %v713
    %v955 = vunpack.c.l.b16 %v714
    %v956 = vunpack.c.h.b16 %v714
    %v957 = vunpack.c.l.b16 %v715
    %v958 = vunpack.c.h.b16 %v715
    %v959 = vunpack.c.l.b16 %v716
    %v960 = vunpack.c.h.b16 %v716
    %v961 = vunpack.c.l.b16 %v717
    %v962 = vunpack.c.h.b16 %v717
    %v963 = vunpack.c.l.b16 %v718
    %v964 = vunpack.c.h.b16 %v718
    %v965 = vunpack.c.l.b16 %v719
    %v966 = vunpack.c.h.b16 %v719
    %v967 = vunpack.c.l.b16 %v720
    %v968 = vunpack.c.h.b16 %v720
    %v969 = vunpack.c.l.b16 %v721
    %v970 = vunpack.c.h.b16 %v721
    %v971 = vunpack.c.l.b16 %v722
    %v972 = vunpack.c.h.b16 %v722
    %v973 = vunpack.c.l.b16 %v723
    %v974 = vunpack.c.h.b16 %v723
    %v975 = vunpack.c.l.b16 %v724
    %v976 = vunpack.c.h.b16 %v724
    %v977 = vpack.c.b16 %v819, %v817
    %v978 = vpack.c.b16 %v820, %v818
    %v979 = vpack.c.b16 %v823, %v821
    %v980 = vpack.c.b16 %v824, %v822
    %v981 = vpack.c.b16 %v827, %v825
    %v982 = vpack.c.b16 %v828, %v826
    %v983 = vpack.c.b16 %v831, %v829
    %v984 = vpack.c.b16 %v832, %v830
    %v985 = vpack.c.b16 %v835, %v833
    %v986 = vpack.c.b16 %v836, %v834
    %v987 = vpack.c.b16 %v839, %v837
    %v988 = vpack.c.b16 %v840, %v838
    %v989 = vpack.c.b16 %v843, %v841
    %v990 = vpack.c.b16 %v844, %v842
    %v991 = vpack.c.b16 %v847, %v845
    %v992 = vpack.c.b16 %v848, %v846
    %v993 = vpack.c.b16 %v851, %v849
    %v994 = vpack.c.b16 %v852, %v850
    %v995 = vpack.c.b16 %v855, %v853
    %v996 = vpack.c.b16 %v856, %v854
    %v997 = vpack.c.b16 %v859, %v857
    %v998 = vpack.c.b16 %v860, %v858
    %v999 = vpack.c.b16 %v863, %v861
    %v1000 = vpack.c.b16 %v864, %v862
    %v1001 = vpack.c.b16 %v867, %v865
    %v1002 = vpack.c.b16 %v868, %v866
    %v1003 = vpack.c.b16 %v871, %v869
    %v1004 = vpack.c.b16 %v872, %v870
    %v1005 = vpack.c.b16 %v875, %v873
    %v1006 = vpack.c.b16 %v876, %v874
    %v1007 = vpack.c.b16 %v879, %v877
    %v1008 = vpack.c.b16 %v880, %v878
    %v1009 = vpack.c.b16 %v883, %v881
    %v1010 = vpack.c.b16 %v884, %v882
    %v1011 = vpack.c.b16 %v887, %v885
    %v1012 = vpack.c.b16 %v888, %v886
    %v1013 = vpack.c.b16 %v891, %v889
    %v1014 = vpack.c.b16 %v892, %v890
    %v1015 = vpack.c.b16 %v895, %v893
    %v1016 = vpack.c.b16 %v896, %v894
    %v1017 = vpack.c.b16 %v899, %v897
    %v1018 = vpack.c.b16 %v900, %v898
    %v1019 = vpack.c.b16 %v903, %v901
    %v1020 = vpack.c.b16 %v904, %v902
    %v1021 = vpack.c.b16 %v907, %v905
    %v1022 = vpack.c.b16 %v908, %v906
    %v1023 = vpack.c.b16 %v911, %v909
    %v1024 = vpack.c.b16 %v912, %v910
    %v1025 = vpack.c.b16 %v915, %v913
    %v1026 = vpack.c.b16 %v916, %v914
    %v1027 = vpack.c.b16 %v919, %v917
    %v1028 = vpack.c.b16 %v920, %v918
    %v1029 = vpack.c.b16 %v923, %v921
    %v1030 = vpack.c.b16 %v924, %v922
    %v1031 = vpack.c.b16 %v927, %v925
    %v1032 = vpack.c.b16 %v928, %v926
    %v1033 = vpack.c.b16 %v931, %v929
    %v1034 = vpack.c.b16 %v932, %v930
    %v1035 = vpack.c.b16 %v935, %v933
    %v1036 = vpack.c.b16 %v936, %v934
    %v1037 = vpack.c.b16 %v939, %v937
    %v1038 = vpack.c.b16 %v940, %v938
    %v1039 = vpack.c.b16 %v943, %v941
    %v1040 = vpack.c.b16 %v944, %v942
    %v1041 = vpack.c.b16 %v947, %v945
    %v1042 = vpack.c.b16 %v948, %v946
    %v1043 = vpack.c.b16 %v951, %v949
    %v1044 = vpack.c.b16 %v952, %v950
    %v1045 = vpack.c.b16 %v955, %v953
    %v1046 = vpack.c.b16 %v956, %v954
    %v1047 = vpack.c.b16 %v959, %v957
    %v1048 = vpack.c.b16 %v960, %v958
    %v1049 = vpack.c.b16 %v963, %v961
    %v1050 = vpack.c.b16 %v964, %v962
    %v1051 = vpack.c.b16 %v967, %v965
    %v1052 = vpack.c.b16 %v968, %v966
    %v1053 = vpack.c.b16 %v971, %v969
    %v1054 = vpack.c.b16 %v972, %v970
    %v1055 = vpack.c.b16 %v975, %v973
    %v1056 = vpack.c.b16 %v976, %v974
    %1137 = vmatprep.subr.bf16.mxu0 %v992
    %1138 = vmatpush1.bf16.msra.mxu0 %v991
    %1139 = vmatprep.subr.bf16.mxu0 %v990
    %1140 = vmatpush1.bf16.msra.mxu0 %v989
    %1141 = vmatprep.subr.bf16.mxu0 %v988
    %1142 = vmatpush1.bf16.msra.mxu0 %v987
    %1143 = vmatprep.subr.bf16.mxu0 %v986
    %1144 = vmatpush1.bf16.msra.mxu0 %v985
    %1145 = vmatprep.subr.bf16.mxu0 %v984
    %1146 = vmatpush1.bf16.msra.mxu0 %v983
    %1147 = vmatprep.subr.bf16.mxu0 %v982
    %1148 = vmatpush1.bf16.msra.mxu0 %v981
    %1149 = vmatprep.subr.bf16.mxu0 %v980
    %1150 = vmatpush1.bf16.msra.mxu0 %v979
    %1151 = vmatprep.subr.bf16.mxu0 %v978
    %1152 = vmatpush1.bf16.msra.mxu0 %v977
    %1153 = vmatprep.subr.bf16.mxu0 %v1008
    %1154 = vmatpush2.bf16.msra.mxu0 %v1007
    %1155 = vmatprep.subr.bf16.mxu0 %v1006
    %1156 = vmatpush2.bf16.msra.mxu0 %v1005
    %1157 = vmatprep.subr.bf16.mxu0 %v1004
    %1158 = vmatpush2.bf16.msra.mxu0 %v1003
    %1159 = vmatprep.subr.bf16.mxu0 %v1002
    %1160 = vmatpush2.bf16.msra.mxu0 %v1001
    %1161 = vmatprep.subr.bf16.mxu0 %v1000
    %1162 = vmatpush2.bf16.msra.mxu0 %v999
    %1163 = vmatprep.subr.bf16.mxu0 %v998
    %1164 = vmatpush2.bf16.msra.mxu0 %v997
    %1165 = vmatprep.subr.bf16.mxu0 %v996
    %1166 = vmatpush2.bf16.msra.mxu0 %v995
    %1167 = vmatprep.subr.bf16.mxu0 %v994
    %1168 = vmatpush2.bf16.msra.mxu0 %v993
    %1169 = vmatprep.mubr.bf16.mxu0 %v566
    %1170 = vmatmul.mubr.bf16.gmra.mxu0 %v565
    %v1171 = vpop.f32.mrf.mxu0
    %v1172 = vadd.f32 %v730, %v1171
    %v1173 = vpop.f32.mrf.mxu0
    %v1174 = vadd.f32 %v734, %v1173
    %v1175 = vpop.f32.mrf.mxu0
    %v1176 = vadd.f32 %v730, %v1175
    %v1177 = vpop.f32.mrf.mxu0
    %v1178 = vadd.f32 %v734, %v1177
    %1179 = vmatprep.mubr.bf16.mxu0 %v571
    %1180 = vmatmul.mubr.bf16.gmra.mxu0 %v570
    %v1181 = vpop.f32.mrf.mxu0
    %v1182 = vadd.f32 %v730, %v1181
    %v1183 = vpop.f32.mrf.mxu0
    %v1184 = vadd.f32 %v734, %v1183
    %v1185 = vpop.f32.mrf.mxu0
    %v1186 = vadd.f32 %v730, %v1185
    %v1187 = vpop.f32.mrf.mxu0
    %v1188 = vadd.f32 %v734, %v1187
    %1189 = vmatprep.mubr.bf16.mxu0 %v576
    %1190 = vmatmul.mubr.bf16.gmra.mxu0 %v575
    %v1191 = vpop.f32.mrf.mxu0
    %v1192 = vadd.f32 %v730, %v1191
    %v1193 = vpop.f32.mrf.mxu0
    %v1194 = vadd.f32 %v734, %v1193
    %v1195 = vpop.f32.mrf.mxu0
    %v1196 = vadd.f32 %v730, %v1195
    %v1197 = vpop.f32.mrf.mxu0
    %v1198 = vadd.f32 %v734, %v1197
    %1199 = vmatprep.mubr.bf16.mxu0 %v581
    %1200 = vmatmul.mubr.bf16.gmra.mxu0 %v580
    %v1201 = vpop.f32.mrf.mxu0
    %v1202 = vadd.f32 %v730, %v1201
    %v1203 = vpop.f32.mrf.mxu0
    %v1204 = vadd.f32 %v734, %v1203
    %v1205 = vpop.f32.mrf.mxu0
    %v1206 = vadd.f32 %v730, %v1205
    %v1207 = vpop.f32.mrf.mxu0
    %v1208 = vadd.f32 %v734, %v1207
    %1209 = vmatprep.mubr.bf16.mxu0 %v586
    %1210 = vmatmul.mubr.bf16.gmra.mxu0 %v585
    %v1211 = vpop.f32.mrf.mxu0
    %v1212 = vadd.f32 %v730, %v1211
    %v1213 = vpop.f32.mrf.mxu0
    %v1214 = vadd.f32 %v734, %v1213
    %v1215 = vpop.f32.mrf.mxu0
    %v1216 = vadd.f32 %v730, %v1215
    %v1217 = vpop.f32.mrf.mxu0
    %v1218 = vadd.f32 %v734, %v1217
    %1219 = vmatprep.mubr.bf16.mxu0 %v591
    %1220 = vmatmul.mubr.bf16.gmra.mxu0 %v590
    %v1221 = vpop.f32.mrf.mxu0
    %v1222 = vadd.f32 %v730, %v1221
    %v1223 = vpop.f32.mrf.mxu0
    %v1224 = vadd.f32 %v734, %v1223
    %v1225 = vpop.f32.mrf.mxu0
    %v1226 = vadd.f32 %v730, %v1225
    %v1227 = vpop.f32.mrf.mxu0
    %v1228 = vadd.f32 %v734, %v1227
    %1229 = vmatprep.mubr.bf16.mxu0 %v596
    %1230 = vmatmul.mubr.bf16.gmra.mxu0 %v595
    %v1231 = vpop.f32.mrf.mxu0
    %v1232 = vadd.f32 %v730, %v1231
    %v1233 = vpop.f32.mrf.mxu0
    %v1234 = vadd.f32 %v734, %v1233
    %v1235 = vpop.f32.mrf.mxu0
    %v1236 = vadd.f32 %v730, %v1235
    %v1237 = vpop.f32.mrf.mxu0
    %v1238 = vadd.f32 %v734, %v1237
    %1239 = vmatprep.mubr.bf16.mxu0 %v601
    %1240 = vmatmul.mubr.bf16.gmra.mxu0 %v600
    %v1241 = vpop.f32.mrf.mxu0
    %v1242 = vadd.f32 %v730, %v1241
    %v1243 = vpop.f32.mrf.mxu0
    %v1244 = vadd.f32 %v734, %v1243
    %v1245 = vpop.f32.mrf.mxu0
    %v1246 = vadd.f32 %v730, %v1245
    %v1247 = vpop.f32.mrf.mxu0
    %v1248 = vadd.f32 %v734, %v1247
    %1249 = vmatprep.mubr.bf16.mxu0 %v606
    %1250 = vmatmul.mubr.bf16.gmra.mxu0 %v605
    %v1251 = vpop.f32.mrf.mxu0
    %v1252 = vadd.f32 %v730, %v1251
    %v1253 = vpop.f32.mrf.mxu0
    %v1254 = vadd.f32 %v734, %v1253
    %v1255 = vpop.f32.mrf.mxu0
    %v1256 = vadd.f32 %v730, %v1255
    %v1257 = vpop.f32.mrf.mxu0
    %v1258 = vadd.f32 %v734, %v1257
    %1259 = vmatprep.mubr.bf16.mxu0 %v611
    %1260 = vmatmul.mubr.bf16.gmra.mxu0 %v610
    %v1261 = vpop.f32.mrf.mxu0
    %v1262 = vadd.f32 %v730, %v1261
    %v1263 = vpop.f32.mrf.mxu0
    %v1264 = vadd.f32 %v734, %v1263
    %v1265 = vpop.f32.mrf.mxu0
    %v1266 = vadd.f32 %v730, %v1265
    %v1267 = vpop.f32.mrf.mxu0
    %v1268 = vadd.f32 %v734, %v1267
    %1269 = vmatprep.mubr.bf16.mxu0 %v616
    %1270 = vmatmul.mubr.bf16.gmra.mxu0 %v615
    %v1271 = vpop.f32.mrf.mxu0
    %v1272 = vadd.f32 %v730, %v1271
    %v1273 = vpop.f32.mrf.mxu0
    %v1274 = vadd.f32 %v734, %v1273
    %v1275 = vpop.f32.mrf.mxu0
    %v1276 = vadd.f32 %v730, %v1275
    %v1277 = vpop.f32.mrf.mxu0
    %v1278 = vadd.f32 %v734, %v1277
    %1279 = vmatprep.mubr.bf16.mxu0 %v621
    %1280 = vmatmul.mubr.bf16.gmra.mxu0 %v620
    %v1281 = vpop.f32.mrf.mxu0
    %v1282 = vadd.f32 %v730, %v1281
    %v1283 = vpop.f32.mrf.mxu0
    %v1284 = vadd.f32 %v734, %v1283
    %v1285 = vpop.f32.mrf.mxu0
    %v1286 = vadd.f32 %v730, %v1285
    %v1287 = vpop.f32.mrf.mxu0
    %v1288 = vadd.f32 %v734, %v1287
    %1289 = vmatprep.mubr.bf16.mxu0 %v626
    %1290 = vmatmul.mubr.bf16.gmra.mxu0 %v625
    %v1291 = vpop.f32.mrf.mxu0
    %v1292 = vadd.f32 %v730, %v1291
    %v1293 = vpop.f32.mrf.mxu0
    %v1294 = vadd.f32 %v734, %v1293
    %v1295 = vpop.f32.mrf.mxu0
    %v1296 = vadd.f32 %v730, %v1295
    %v1297 = vpop.f32.mrf.mxu0
    %v1298 = vadd.f32 %v734, %v1297
    %1299 = vmatprep.mubr.bf16.mxu0 %v631
    %1300 = vmatmul.mubr.bf16.gmra.mxu0 %v630
    %v1301 = vpop.f32.mrf.mxu0
    %v1302 = vadd.f32 %v730, %v1301
    %v1303 = vpop.f32.mrf.mxu0
    %v1304 = vadd.f32 %v734, %v1303
    %v1305 = vpop.f32.mrf.mxu0
    %v1306 = vadd.f32 %v730, %v1305
    %v1307 = vpop.f32.mrf.mxu0
    %v1308 = vadd.f32 %v734, %v1307
    %1309 = vmatprep.mubr.bf16.mxu0 %v636
    %1310 = vmatmul.mubr.bf16.gmra.mxu0 %v635
    %v1311 = vpop.f32.mrf.mxu0
    %v1312 = vadd.f32 %v730, %v1311
    %v1313 = vpop.f32.mrf.mxu0
    %v1314 = vadd.f32 %v734, %v1313
    %v1315 = vpop.f32.mrf.mxu0
    %v1316 = vadd.f32 %v730, %v1315
    %v1317 = vpop.f32.mrf.mxu0
    %v1318 = vadd.f32 %v734, %v1317
    %1319 = vmatprep.mubr.bf16.mxu0 %v641
    %1320 = vmatmul.mubr.bf16.gmra.mxu0 %v640
    %v1321 = vpop.f32.mrf.mxu0
    %v1322 = vadd.f32 %v730, %v1321
    %v1323 = vpop.f32.mrf.mxu0
    %v1324 = vadd.f32 %v734, %v1323
    %v1325 = vpop.f32.mrf.mxu0
    %v1326 = vadd.f32 %v730, %v1325
    %v1327 = vpop.f32.mrf.mxu0
    %v1328 = vadd.f32 %v734, %v1327
    %1329 = vdwg.mxu0
    %1330 = vmatprep.subr.bf16.mxu0 %v1024
    %1331 = vmatpush1.bf16.msra.mxu0 %v1023
    %1332 = vmatprep.subr.bf16.mxu0 %v1022
    %1333 = vmatpush1.bf16.msra.mxu0 %v1021
    %1334 = vmatprep.subr.bf16.mxu0 %v1020
    %1335 = vmatpush1.bf16.msra.mxu0 %v1019
    %1336 = vmatprep.subr.bf16.mxu0 %v1018
    %1337 = vmatpush1.bf16.msra.mxu0 %v1017
    %1338 = vmatprep.subr.bf16.mxu0 %v1016
    %1339 = vmatpush1.bf16.msra.mxu0 %v1015
    %1340 = vmatprep.subr.bf16.mxu0 %v1014
    %1341 = vmatpush1.bf16.msra.mxu0 %v1013
    %1342 = vmatprep.subr.bf16.mxu0 %v1012
    %1343 = vmatpush1.bf16.msra.mxu0 %v1011
    %1344 = vmatprep.subr.bf16.mxu0 %v1010
    %1345 = vmatpush1.bf16.msra.mxu0 %v1009
    %1346 = vmatprep.subr.bf16.mxu0 %v1040
    %1347 = vmatpush2.bf16.msra.mxu0 %v1039
    %1348 = vmatprep.subr.bf16.mxu0 %v1038
    %1349 = vmatpush2.bf16.msra.mxu0 %v1037
    %1350 = vmatprep.subr.bf16.mxu0 %v1036
    %1351 = vmatpush2.bf16.msra.mxu0 %v1035
    %1352 = vmatprep.subr.bf16.mxu0 %v1034
    %1353 = vmatpush2.bf16.msra.mxu0 %v1033
    %1354 = vmatprep.subr.bf16.mxu0 %v1032
    %1355 = vmatpush2.bf16.msra.mxu0 %v1031
    %1356 = vmatprep.subr.bf16.mxu0 %v1030
    %1357 = vmatpush2.bf16.msra.mxu0 %v1029
    %1358 = vmatprep.subr.bf16.mxu0 %v1028
    %1359 = vmatpush2.bf16.msra.mxu0 %v1027
    %1360 = vmatprep.subr.bf16.mxu0 %v1026
    %1361 = vmatpush2.bf16.msra.mxu0 %v1025
    %1362 = vmatprep.mubr.bf16.mxu0 %v568
    %1363 = vmatmul.mubr.bf16.gmra.mxu0 %v567
    %v1364 = vpop.f32.mrf.mxu0
    %v1365 = vadd.f32 %v1172, %v1364
    %v1366 = vpop.f32.mrf.mxu0
    %v1367 = vadd.f32 %v1174, %v1366
    %v1368 = vpop.f32.mrf.mxu0
    %v1369 = vadd.f32 %v1176, %v1368
    %v1370 = vpop.f32.mrf.mxu0
    %v1371 = vadd.f32 %v1178, %v1370
    %1372 = vmatprep.mubr.bf16.mxu0 %v573
    %1373 = vmatmul.mubr.bf16.gmra.mxu0 %v572
    %v1374 = vpop.f32.mrf.mxu0
    %v1375 = vadd.f32 %v1182, %v1374
    %v1376 = vpop.f32.mrf.mxu0
    %v1377 = vadd.f32 %v1184, %v1376
    %v1378 = vpop.f32.mrf.mxu0
    %v1379 = vadd.f32 %v1186, %v1378
    %v1380 = vpop.f32.mrf.mxu0
    %v1381 = vadd.f32 %v1188, %v1380
    %1382 = vmatprep.mubr.bf16.mxu0 %v578
    %1383 = vmatmul.mubr.bf16.gmra.mxu0 %v577
    %v1384 = vpop.f32.mrf.mxu0
    %v1385 = vadd.f32 %v1192, %v1384
    %v1386 = vpop.f32.mrf.mxu0
    %v1387 = vadd.f32 %v1194, %v1386
    %v1388 = vpop.f32.mrf.mxu0
    %v1389 = vadd.f32 %v1196, %v1388
    %v1390 = vpop.f32.mrf.mxu0
    %v1391 = vadd.f32 %v1198, %v1390
    %1392 = vmatprep.mubr.bf16.mxu0 %v583
    %1393 = vmatmul.mubr.bf16.gmra.mxu0 %v582
    %v1394 = vpop.f32.mrf.mxu0
    %v1395 = vadd.f32 %v1202, %v1394
    %v1396 = vpop.f32.mrf.mxu0
    %v1397 = vadd.f32 %v1204, %v1396
    %v1398 = vpop.f32.mrf.mxu0
    %v1399 = vadd.f32 %v1206, %v1398
    %v1400 = vpop.f32.mrf.mxu0
    %v1401 = vadd.f32 %v1208, %v1400
    %1402 = vmatprep.mubr.bf16.mxu0 %v588
    %1403 = vmatmul.mubr.bf16.gmra.mxu0 %v587
    %v1404 = vpop.f32.mrf.mxu0
    %v1405 = vadd.f32 %v1212, %v1404
    %v1406 = vpop.f32.mrf.mxu0
    %v1407 = vadd.f32 %v1214, %v1406
    %v1408 = vpop.f32.mrf.mxu0
    %v1409 = vadd.f32 %v1216, %v1408
    %v1410 = vpop.f32.mrf.mxu0
    %v1411 = vadd.f32 %v1218, %v1410
    %1412 = vmatprep.mubr.bf16.mxu0 %v593
    %1413 = vmatmul.mubr.bf16.gmra.mxu0 %v592
    %v1414 = vpop.f32.mrf.mxu0
    %v1415 = vadd.f32 %v1222, %v1414
    %v1416 = vpop.f32.mrf.mxu0
    %v1417 = vadd.f32 %v1224, %v1416
    %v1418 = vpop.f32.mrf.mxu0
    %v1419 = vadd.f32 %v1226, %v1418
    %v1420 = vpop.f32.mrf.mxu0
    %v1421 = vadd.f32 %v1228, %v1420
    %1422 = vmatprep.mubr.bf16.mxu0 %v598
    %1423 = vmatmul.mubr.bf16.gmra.mxu0 %v597
    %v1424 = vpop.f32.mrf.mxu0
    %v1425 = vadd.f32 %v1232, %v1424
    %v1426 = vpop.f32.mrf.mxu0
    %v1427 = vadd.f32 %v1234, %v1426
    %v1428 = vpop.f32.mrf.mxu0
    %v1429 = vadd.f32 %v1236, %v1428
    %v1430 = vpop.f32.mrf.mxu0
    %v1431 = vadd.f32 %v1238, %v1430
    %1432 = vmatprep.mubr.bf16.mxu0 %v603
    %1433 = vmatmul.mubr.bf16.gmra.mxu0 %v602
    %v1434 = vpop.f32.mrf.mxu0
    %v1435 = vadd.f32 %v1242, %v1434
    %v1436 = vpop.f32.mrf.mxu0
    %v1437 = vadd.f32 %v1244, %v1436
    %v1438 = vpop.f32.mrf.mxu0
    %v1439 = vadd.f32 %v1246, %v1438
    %v1440 = vpop.f32.mrf.mxu0
    %v1441 = vadd.f32 %v1248, %v1440
    %1442 = vmatprep.mubr.bf16.mxu0 %v608
    %1443 = vmatmul.mubr.bf16.gmra.mxu0 %v607
    %v1444 = vpop.f32.mrf.mxu0
    %v1445 = vadd.f32 %v1252, %v1444
    %v1446 = vpop.f32.mrf.mxu0
    %v1447 = vadd.f32 %v1254, %v1446
    %v1448 = vpop.f32.mrf.mxu0
    %v1449 = vadd.f32 %v1256, %v1448
    %v1450 = vpop.f32.mrf.mxu0
    %v1451 = vadd.f32 %v1258, %v1450
    %1452 = vmatprep.mubr.bf16.mxu0 %v613
    %1453 = vmatmul.mubr.bf16.gmra.mxu0 %v612
    %v1454 = vpop.f32.mrf.mxu0
    %v1455 = vadd.f32 %v1262, %v1454
    %v1456 = vpop.f32.mrf.mxu0
    %v1457 = vadd.f32 %v1264, %v1456
    %v1458 = vpop.f32.mrf.mxu0
    %v1459 = vadd.f32 %v1266, %v1458
    %v1460 = vpop.f32.mrf.mxu0
    %v1461 = vadd.f32 %v1268, %v1460
    %1462 = vmatprep.mubr.bf16.mxu0 %v618
    %1463 = vmatmul.mubr.bf16.gmra.mxu0 %v617
    %v1464 = vpop.f32.mrf.mxu0
    %v1465 = vadd.f32 %v1272, %v1464
    %v1466 = vpop.f32.mrf.mxu0
    %v1467 = vadd.f32 %v1274, %v1466
    %v1468 = vpop.f32.mrf.mxu0
    %v1469 = vadd.f32 %v1276, %v1468
    %v1470 = vpop.f32.mrf.mxu0
    %v1471 = vadd.f32 %v1278, %v1470
    %1472 = vmatprep.mubr.bf16.mxu0 %v623
    %1473 = vmatmul.mubr.bf16.gmra.mxu0 %v622
    %v1474 = vpop.f32.mrf.mxu0
    %v1475 = vadd.f32 %v1282, %v1474
    %v1476 = vpop.f32.mrf.mxu0
    %v1477 = vadd.f32 %v1284, %v1476
    %v1478 = vpop.f32.mrf.mxu0
    %v1479 = vadd.f32 %v1286, %v1478
    %v1480 = vpop.f32.mrf.mxu0
    %v1481 = vadd.f32 %v1288, %v1480
    %1482 = vmatprep.mubr.bf16.mxu0 %v628
    %1483 = vmatmul.mubr.bf16.gmra.mxu0 %v627
    %v1484 = vpop.f32.mrf.mxu0
    %v1485 = vadd.f32 %v1292, %v1484
    %v1486 = vpop.f32.mrf.mxu0
    %v1487 = vadd.f32 %v1294, %v1486
    %v1488 = vpop.f32.mrf.mxu0
    %v1489 = vadd.f32 %v1296, %v1488
    %v1490 = vpop.f32.mrf.mxu0
    %v1491 = vadd.f32 %v1298, %v1490
    %1492 = vmatprep.mubr.bf16.mxu0 %v633
    %1493 = vmatmul.mubr.bf16.gmra.mxu0 %v632
    %v1494 = vpop.f32.mrf.mxu0
    %v1495 = vadd.f32 %v1302, %v1494
    %v1496 = vpop.f32.mrf.mxu0
    %v1497 = vadd.f32 %v1304, %v1496
    %v1498 = vpop.f32.mrf.mxu0
    %v1499 = vadd.f32 %v1306, %v1498
    %v1500 = vpop.f32.mrf.mxu0
    %v1501 = vadd.f32 %v1308, %v1500
    %1502 = vmatprep.mubr.bf16.mxu0 %v638
    %1503 = vmatmul.mubr.bf16.gmra.mxu0 %v637
    %v1504 = vpop.f32.mrf.mxu0
    %v1505 = vadd.f32 %v1312, %v1504
    %v1506 = vpop.f32.mrf.mxu0
    %v1507 = vadd.f32 %v1314, %v1506
    %v1508 = vpop.f32.mrf.mxu0
    %v1509 = vadd.f32 %v1316, %v1508
    %v1510 = vpop.f32.mrf.mxu0
    %v1511 = vadd.f32 %v1318, %v1510
    %1512 = vmatprep.mubr.bf16.mxu0 %v643
    %1513 = vmatmul.mubr.bf16.gmra.mxu0 %v642
    %v1514 = vpop.f32.mrf.mxu0
    %v1515 = vadd.f32 %v1322, %v1514
    %v1516 = vpop.f32.mrf.mxu0
    %v1517 = vadd.f32 %v1324, %v1516
    %v1518 = vpop.f32.mrf.mxu0
    %v1519 = vadd.f32 %v1326, %v1518
    %v1520 = vpop.f32.mrf.mxu0
    %v1521 = vadd.f32 %v1328, %v1520
    %1522 = vdwg.mxu0
    %1523 = vmatprep.subr.bf16.mxu0 %v1056
    %1524 = vmatpush1.bf16.msra.mxu0 %v1055
    %1525 = vmatprep.subr.bf16.mxu0 %v1054
    %1526 = vmatpush1.bf16.msra.mxu0 %v1053
    %1527 = vmatprep.subr.bf16.mxu0 %v1052
    %1528 = vmatpush1.bf16.msra.mxu0 %v1051
    %1529 = vmatprep.subr.bf16.mxu0 %v1050
    %1530 = vmatpush1.bf16.msra.mxu0 %v1049
    %1531 = vmatprep.subr.bf16.mxu0 %v1048
    %1532 = vmatpush1.bf16.msra.mxu0 %v1047
    %1533 = vmatprep.subr.bf16.mxu0 %v1046
    %1534 = vmatpush1.bf16.msra.mxu0 %v1045
    %1535 = vmatprep.subr.bf16.mxu0 %v1044
    %1536 = vmatpush1.bf16.msra.mxu0 %v1043
    %1537 = vmatprep.subr.bf16.mxu0 %v1042
    %1538 = vmatpush1.bf16.msra.mxu0 %v1041
    %1539 = vmatprep.subr.bf16.mxu0 0
    %1540 = vmatpush2.bf16.msra.mxu0 0
    %1541 = vmatprep.subr.bf16.mxu0 0
    %1542 = vmatpush2.bf16.msra.mxu0 0
    %1543 = vmatprep.subr.bf16.mxu0 0
    %1544 = vmatpush2.bf16.msra.mxu0 0
    %1545 = vmatprep.subr.bf16.mxu0 0
    %1546 = vmatpush2.bf16.msra.mxu0 0
    %1547 = vmatprep.subr.bf16.mxu0 0
    %1548 = vmatpush2.bf16.msra.mxu0 0
    %1549 = vmatprep.subr.bf16.mxu0 0
    %1550 = vmatpush2.bf16.msra.mxu0 0
    %1551 = vmatprep.subr.bf16.mxu0 0
    %1552 = vmatpush2.bf16.msra.mxu0 0
    %1553 = vmatprep.subr.bf16.mxu0 0
    %1554 = vmatpush2.bf16.msra.mxu0 0
    %1555 = vmatprep.mubr.bf16.mxu0 0
    %1556 = vmatmul.mubr.bf16.gmra.mxu0 %v569
    %v1557 = vpop.f32.mrf.mxu0
    %v1558 = vadd.f32 %v1365, %v1557
    %v1559 = vpop.f32.mrf.mxu0
    %v1560 = vadd.f32 %v1367, %v1559
    %v1561 = vpop.f32.mrf.mxu0
    %v1562 = vadd.f32 %v1369, %v1561
    %v1563 = vpop.f32.mrf.mxu0
    %v1564 = vadd.f32 %v1371, %v1563
    %1565 = vmatprep.mubr.bf16.mxu0 0
    %1566 = vmatmul.mubr.bf16.gmra.mxu0 %v574
    %v1567 = vpop.f32.mrf.mxu0
    %v1568 = vadd.f32 %v1375, %v1567
    %v1569 = vpop.f32.mrf.mxu0
    %v1570 = vadd.f32 %v1377, %v1569
    %v1571 = vpop.f32.mrf.mxu0
    %v1572 = vadd.f32 %v1379, %v1571
    %v1573 = vpop.f32.mrf.mxu0
    %v1574 = vadd.f32 %v1381, %v1573
    %1575 = vmatprep.mubr.bf16.mxu0 0
    %1576 = vmatmul.mubr.bf16.gmra.mxu0 %v579
    %v1577 = vpop.f32.mrf.mxu0
    %v1578 = vadd.f32 %v1385, %v1577
    %v1579 = vpop.f32.mrf.mxu0
    %v1580 = vadd.f32 %v1387, %v1579
    %v1581 = vpop.f32.mrf.mxu0
    %v1582 = vadd.f32 %v1389, %v1581
    %v1583 = vpop.f32.mrf.mxu0
    %v1584 = vadd.f32 %v1391, %v1583
    %1585 = vmatprep.mubr.bf16.mxu0 0
    %1586 = vmatmul.mubr.bf16.gmra.mxu0 %v584
    %v1587 = vpop.f32.mrf.mxu0
    %v1588 = vadd.f32 %v1395, %v1587
    %v1589 = vpop.f32.mrf.mxu0
    %v1590 = vadd.f32 %v1397, %v1589
    %v1591 = vpop.f32.mrf.mxu0
    %v1592 = vadd.f32 %v1399, %v1591
    %v1593 = vpop.f32.mrf.mxu0
    %v1594 = vadd.f32 %v1401, %v1593
    %1595 = vmatprep.mubr.bf16.mxu0 0
    %1596 = vmatmul.mubr.bf16.gmra.mxu0 %v589
    %v1597 = vpop.f32.mrf.mxu0
    %v1598 = vadd.f32 %v1405, %v1597
    %v1599 = vpop.f32.mrf.mxu0
    %v1600 = vadd.f32 %v1407, %v1599
    %v1601 = vpop.f32.mrf.mxu0
    %v1602 = vadd.f32 %v1409, %v1601
    %v1603 = vpop.f32.mrf.mxu0
    %v1604 = vadd.f32 %v1411, %v1603
    %1605 = vmatprep.mubr.bf16.mxu0 0
    %1606 = vmatmul.mubr.bf16.gmra.mxu0 %v594
    %v1607 = vpop.f32.mrf.mxu0
    %v1608 = vadd.f32 %v1415, %v1607
    %v1609 = vpop.f32.mrf.mxu0
    %v1610 = vadd.f32 %v1417, %v1609
    %v1611 = vpop.f32.mrf.mxu0
    %v1612 = vadd.f32 %v1419, %v1611
    %v1613 = vpop.f32.mrf.mxu0
    %v1614 = vadd.f32 %v1421, %v1613
    %1615 = vmatprep.mubr.bf16.mxu0 0
    %1616 = vmatmul.mubr.bf16.gmra.mxu0 %v599
    %v1617 = vpop.f32.mrf.mxu0
    %v1618 = vadd.f32 %v1425, %v1617
    %v1619 = vpop.f32.mrf.mxu0
    %v1620 = vadd.f32 %v1427, %v1619
    %v1621 = vpop.f32.mrf.mxu0
    %v1622 = vadd.f32 %v1429, %v1621
    %v1623 = vpop.f32.mrf.mxu0
    %v1624 = vadd.f32 %v1431, %v1623
    %1625 = vmatprep.mubr.bf16.mxu0 0
    %1626 = vmatmul.mubr.bf16.gmra.mxu0 %v604
    %v1627 = vpop.f32.mrf.mxu0
    %v1628 = vadd.f32 %v1435, %v1627
    %v1629 = vpop.f32.mrf.mxu0
    %v1630 = vadd.f32 %v1437, %v1629
    %v1631 = vpop.f32.mrf.mxu0
    %v1632 = vadd.f32 %v1439, %v1631
    %v1633 = vpop.f32.mrf.mxu0
    %v1634 = vadd.f32 %v1441, %v1633
    %1635 = vmatprep.mubr.bf16.mxu0 0
    %1636 = vmatmul.mubr.bf16.gmra.mxu0 %v609
    %v1637 = vpop.f32.mrf.mxu0
    %v1638 = vadd.f32 %v1445, %v1637
    %v1639 = vpop.f32.mrf.mxu0
    %v1640 = vadd.f32 %v1447, %v1639
    %v1641 = vpop.f32.mrf.mxu0
    %v1642 = vadd.f32 %v1449, %v1641
    %v1643 = vpop.f32.mrf.mxu0
    %v1644 = vadd.f32 %v1451, %v1643
    %1645 = vmatprep.mubr.bf16.mxu0 0
    %1646 = vmatmul.mubr.bf16.gmra.mxu0 %v614
    %v1647 = vpop.f32.mrf.mxu0
    %v1648 = vadd.f32 %v1455, %v1647
    %v1649 = vpop.f32.mrf.mxu0
    %v1650 = vadd.f32 %v1457, %v1649
    %v1651 = vpop.f32.mrf.mxu0
    %v1652 = vadd.f32 %v1459, %v1651
    %v1653 = vpop.f32.mrf.mxu0
    %v1654 = vadd.f32 %v1461, %v1653
    %1655 = vmatprep.mubr.bf16.mxu0 0
    %1656 = vmatmul.mubr.bf16.gmra.mxu0 %v619
    %v1657 = vpop.f32.mrf.mxu0
    %v1658 = vadd.f32 %v1465, %v1657
    %v1659 = vpop.f32.mrf.mxu0
    %v1660 = vadd.f32 %v1467, %v1659
    %v1661 = vpop.f32.mrf.mxu0
    %v1662 = vadd.f32 %v1469, %v1661
    %v1663 = vpop.f32.mrf.mxu0
    %v1664 = vadd.f32 %v1471, %v1663
    %1665 = vmatprep.mubr.bf16.mxu0 0
    %1666 = vmatmul.mubr.bf16.gmra.mxu0 %v624
    %v1667 = vpop.f32.mrf.mxu0
    %v1668 = vadd.f32 %v1475, %v1667
    %v1669 = vpop.f32.mrf.mxu0
    %v1670 = vadd.f32 %v1477, %v1669
    %v1671 = vpop.f32.mrf.mxu0
    %v1672 = vadd.f32 %v1479, %v1671
    %v1673 = vpop.f32.mrf.mxu0
    %v1674 = vadd.f32 %v1481, %v1673
    %1675 = vmatprep.mubr.bf16.mxu0 0
    %1676 = vmatmul.mubr.bf16.gmra.mxu0 %v629
    %v1677 = vpop.f32.mrf.mxu0
    %v1678 = vadd.f32 %v1485, %v1677
    %v1679 = vpop.f32.mrf.mxu0
    %v1680 = vadd.f32 %v1487, %v1679
    %v1681 = vpop.f32.mrf.mxu0
    %v1682 = vadd.f32 %v1489, %v1681
    %v1683 = vpop.f32.mrf.mxu0
    %v1684 = vadd.f32 %v1491, %v1683
    %1685 = vmatprep.mubr.bf16.mxu0 0
    %1686 = vmatmul.mubr.bf16.gmra.mxu0 %v634
    %v1687 = vpop.f32.mrf.mxu0
    %v1688 = vadd.f32 %v1495, %v1687
    %v1689 = vpop.f32.mrf.mxu0
    %v1690 = vadd.f32 %v1497, %v1689
    %v1691 = vpop.f32.mrf.mxu0
    %v1692 = vadd.f32 %v1499, %v1691
    %v1693 = vpop.f32.mrf.mxu0
    %v1694 = vadd.f32 %v1501, %v1693
    %1695 = vmatprep.mubr.bf16.mxu0 0
    %1696 = vmatmul.mubr.bf16.gmra.mxu0 %v639
    %v1697 = vpop.f32.mrf.mxu0
    %v1698 = vadd.f32 %v1505, %v1697
    %v1699 = vpop.f32.mrf.mxu0
    %v1700 = vadd.f32 %v1507, %v1699
    %v1701 = vpop.f32.mrf.mxu0
    %v1702 = vadd.f32 %v1509, %v1701
    %v1703 = vpop.f32.mrf.mxu0
    %v1704 = vadd.f32 %v1511, %v1703
    %1705 = vmatprep.mubr.bf16.mxu0 0
    %1706 = vmatmul.mubr.bf16.gmra.mxu0 %v644
    %v1707 = vpop.f32.mrf.mxu0
    %v1708 = vadd.f32 %v1515, %v1707
    %v1709 = vpop.f32.mrf.mxu0
    %v1710 = vadd.f32 %v1517, %v1709
    %v1711 = vpop.f32.mrf.mxu0
    %v1712 = vadd.f32 %v1519, %v1711
    %v1713 = vpop.f32.mrf.mxu0
    %v1714 = vadd.f32 %v1521, %v1713
    %1715 = vdwg.mxu0
    %v1716 = vmax.f32 %v1558, 0.0
    %v1717 = vmax.f32 %v1560, 0.0
    %v1718 = vmax.f32 %v1562, 0.0
    %v1719 = vmax.f32 %v1564, 0.0
    %v1720 = vmax.f32 %v1568, 0.0
    %v1721 = vmax.f32 %v1570, 0.0
    %v1722 = vmax.f32 %v1572, 0.0
    %v1723 = vmax.f32 %v1574, 0.0
    %v1724 = vmax.f32 %v1578, 0.0
    %v1725 = vmax.f32 %v1580, 0.0
    %v1726 = vmax.f32 %v1582, 0.0
    %v1727 = vmax.f32 %v1584, 0.0
    %v1728 = vmax.f32 %v1588, 0.0
    %v1729 = vmax.f32 %v1590, 0.0
    %v1730 = vmax.f32 %v1592, 0.0
    %v1731 = vmax.f32 %v1594, 0.0
    %v1732 = vmax.f32 %v1598, 0.0
    %v1733 = vmax.f32 %v1600, 0.0
    %v1734 = vmax.f32 %v1602, 0.0
    %v1735 = vmax.f32 %v1604, 0.0
    %v1736 = vmax.f32 %v1608, 0.0
    %v1737 = vmax.f32 %v1610, 0.0
    %v1738 = vmax.f32 %v1612, 0.0
    %v1739 = vmax.f32 %v1614, 0.0
    %v1740 = vmax.f32 %v1618, 0.0
    %v1741 = vmax.f32 %v1620, 0.0
    %v1742 = vmax.f32 %v1622, 0.0
    %v1743 = vmax.f32 %v1624, 0.0
    %v1744 = vmax.f32 %v1628, 0.0
    %v1745 = vmax.f32 %v1630, 0.0
    %v1746 = vmax.f32 %v1632, 0.0
    %v1747 = vmax.f32 %v1634, 0.0
    %v1748 = vmax.f32 %v1638, 0.0
    %v1749 = vmax.f32 %v1640, 0.0
    %v1750 = vmax.f32 %v1642, 0.0
    %v1751 = vmax.f32 %v1644, 0.0
    %v1752 = vmax.f32 %v1648, 0.0
    %v1753 = vmax.f32 %v1650, 0.0
    %v1754 = vmax.f32 %v1652, 0.0
    %v1755 = vmax.f32 %v1654, 0.0
    %v1756 = vmax.f32 %v1658, 0.0
    %v1757 = vmax.f32 %v1660, 0.0
    %v1758 = vmax.f32 %v1662, 0.0
    %v1759 = vmax.f32 %v1664, 0.0
    %v1760 = vmax.f32 %v1668, 0.0
    %v1761 = vmax.f32 %v1670, 0.0
    %v1762 = vmax.f32 %v1672, 0.0
    %v1763 = vmax.f32 %v1674, 0.0
    %v1764 = vmax.f32 %v1678, 0.0
    %v1765 = vmax.f32 %v1680, 0.0
    %v1766 = vmax.f32 %v1682, 0.0
    %v1767 = vmax.f32 %v1684, 0.0
    %v1768 = vmax.f32 %v1688, 0.0
    %v1769 = vmax.f32 %v1690, 0.0
    %v1770 = vmax.f32 %v1692, 0.0
    %v1771 = vmax.f32 %v1694, 0.0
    %v1772 = vmax.f32 %v1698, 0.0
    %v1773 = vmax.f32 %v1700, 0.0
    %v1774 = vmax.f32 %v1702, 0.0
    %v1775 = vmax.f32 %v1704, 0.0
    %v1776 = vmax.f32 %v1708, 0.0
    %v1777 = vmax.f32 %v1710, 0.0
    %v1778 = vmax.f32 %v1712, 0.0
    %v1779 = vmax.f32 %v1714, 0.0
    %v1780 = vmax.f32 %v1716, %v1717
    %v1781 = vmax.f32 %v1718, %v1719
    %v1782 = vmax.f32 %v1720, %v1721
    %v1783 = vmax.f32 %v1722, %v1723
    %v1784 = vmax.f32 %v1724, %v1725
    %v1785 = vmax.f32 %v1726, %v1727
    %v1786 = vmax.f32 %v1728, %v1729
    %v1787 = vmax.f32 %v1730, %v1731
    %v1788 = vmax.f32 %v1732, %v1733
    %v1789 = vmax.f32 %v1734, %v1735
    %v1790 = vmax.f32 %v1736, %v1737
    %v1791 = vmax.f32 %v1738, %v1739
    %v1792 = vmax.f32 %v1740, %v1741
    %v1793 = vmax.f32 %v1742, %v1743
    %v1794 = vmax.f32 %v1744, %v1745
    %v1795 = vmax.f32 %v1746, %v1747
    %v1796 = vmax.f32 %v1748, %v1749
    %v1797 = vmax.f32 %v1750, %v1751
    %v1798 = vmax.f32 %v1752, %v1753
    %v1799 = vmax.f32 %v1754, %v1755
    %v1800 = vmax.f32 %v1756, %v1757
    %v1801 = vmax.f32 %v1758, %v1759
    %v1802 = vmax.f32 %v1760, %v1761
    %v1803 = vmax.f32 %v1762, %v1763
    %v1804 = vmax.f32 %v1764, %v1765
    %v1805 = vmax.f32 %v1766, %v1767
    %v1806 = vmax.f32 %v1768, %v1769
    %v1807 = vmax.f32 %v1770, %v1771
    %v1808 = vmax.f32 %v1772, %v1773
    %v1809 = vmax.f32 %v1774, %v1775
    %v1810 = vmax.f32 %v1776, %v1777
    %v1811 = vmax.f32 %v1778, %v1779
    %1812 = vst [vmem:[#allocation3] sm:$0xff] %v1780
    %1813 = vst [vmem:[#allocation3 + $0x8] sm:$0xff] %v1781
    %1814 = vst [vmem:[#allocation3 + $0x10] sm:$0xff] %v1782
    %1815 = vst [vmem:[#allocation3 + $0x18] sm:$0xff] %v1783
    %1816 = vst [vmem:[#allocation3 + $0x20] sm:$0xff] %v1784
    %1817 = vst [vmem:[#allocation3 + $0x28] sm:$0xff] %v1785
    %1818 = vst [vmem:[#allocation3 + $0x30] sm:$0xff] %v1786
    %1819 = vst [vmem:[#allocation3 + $0x38] sm:$0xff] %v1787
    %1820 = vst [vmem:[#allocation3 + $0x40] sm:$0xff] %v1788
    %1821 = vst [vmem:[#allocation3 + $0x48] sm:$0xff] %v1789
    %1822 = vst [vmem:[#allocation3 + $0x50] sm:$0xff] %v1790
    %1823 = vst [vmem:[#allocation3 + $0x58] sm:$0xff] %v1791
    %1824 = vst [vmem:[#allocation3 + $0x60] sm:$0xff] %v1792
    %1825 = vst [vmem:[#allocation3 + $0x68] sm:$0xff] %v1793
    %1826 = vst [vmem:[#allocation3 + $0x70] sm:$0xff] %v1794
    %1827 = vst [vmem:[#allocation3 + $0x78] sm:$0xff] %v1795
    %1828 = vst [vmem:[#allocation3 + $0x80] sm:$0xff] %v1796
    %1829 = vst [vmem:[#allocation3 + $0x88] sm:$0xff] %v1797
    %1830 = vst [vmem:[#allocation3 + $0x90] sm:$0xff] %v1798
    %1831 = vst [vmem:[#allocation3 + $0x98] sm:$0xff] %v1799
    %1832 = vst [vmem:[#allocation3 + $0xa0] sm:$0xff] %v1800
    %1833 = vst [vmem:[#allocation3 + $0xa8] sm:$0xff] %v1801
    %1834 = vst [vmem:[#allocation3 + $0xb0] sm:$0xff] %v1802
    %1835 = vst [vmem:[#allocation3 + $0xb8] sm:$0xff] %v1803
    %1836 = vst [vmem:[#allocation3 + $0xc0] sm:$0xff] %v1804
    %1837 = vst [vmem:[#allocation3 + $0xc8] sm:$0xff] %v1805
    %1838 = vst [vmem:[#allocation3 + $0xd0] sm:$0xff] %v1806
    %1839 = vst [vmem:[#allocation3 + $0xd8] sm:$0xff] %v1807
    %1840 = vst [vmem:[#allocation3 + $0xe0] sm:$0xff] %v1808
    %1841 = vst [vmem:[#allocation3 + $0xe8] sm:$0xff] %v1809
    %1842 = vst [vmem:[#allocation3 + $0xf0] sm:$0xff] %v1810
    %1843 = vst [vmem:[#allocation3 + $0xf8] sm:$0xff] %v1811
    %v1844 = vld [vmem:[#allocation3] ss:$2 sm:$0xff]
    %s1845 = scalar_lea.vmem [#allocation3], 16
    %v1846 = vld [vmem:[%s1845] ss:$2 sm:$0xff]
    %s1847 = scalar_lea.vmem [#allocation3], 32
    %v1848 = vld [vmem:[%s1847] ss:$2 sm:$0xff]
    %s1849 = scalar_lea.vmem [#allocation3], 48
    %v1850 = vld [vmem:[%s1849] ss:$2 sm:$0xff]
    %s1851 = scalar_lea.vmem [#allocation3], 64
    %v1852 = vld [vmem:[%s1851] ss:$2 sm:$0xff]
    %s1853 = scalar_lea.vmem [#allocation3], 80
    %v1854 = vld [vmem:[%s1853] ss:$2 sm:$0xff]
    %s1855 = scalar_lea.vmem [#allocation3], 96
    %v1856 = vld [vmem:[%s1855] ss:$2 sm:$0xff]
    %s1857 = scalar_lea.vmem [#allocation3], 112
    %v1858 = vld [vmem:[%s1857] ss:$2 sm:$0xff]
    %s1859 = scalar_lea.vmem [#allocation3], 128
    %v1860 = vld [vmem:[%s1859] ss:$2 sm:$0xff]
    %s1861 = scalar_lea.vmem [#allocation3], 144
    %v1862 = vld [vmem:[%s1861] ss:$2 sm:$0xff]
    %s1863 = scalar_lea.vmem [#allocation3], 160
    %v1864 = vld [vmem:[%s1863] ss:$2 sm:$0xff]
    %s1865 = scalar_lea.vmem [#allocation3], 176
    %v1866 = vld [vmem:[%s1865] ss:$2 sm:$0xff]
    %s1867 = scalar_lea.vmem [#allocation3], 192
    %v1868 = vld [vmem:[%s1867] ss:$2 sm:$0xff]
    %s1869 = scalar_lea.vmem [#allocation3], 208
    %v1870 = vld [vmem:[%s1869] ss:$2 sm:$0xff]
    %s1871 = scalar_lea.vmem [#allocation3], 224
    %v1872 = vld [vmem:[%s1871] ss:$2 sm:$0xff]
    %s1873 = scalar_lea.vmem [#allocation3], 240
    %v1874 = vld [vmem:[%s1873] ss:$2 sm:$0xff]
    %s1875 = scalar_lea.vmem [#allocation3], 1
    %v1876 = vld [vmem:[%s1875] ss:$2 sm:$0xff]
    %s1877 = scalar_lea.vmem [#allocation3], 17
    %v1878 = vld [vmem:[%s1877] ss:$2 sm:$0xff]
    %s1879 = scalar_lea.vmem [#allocation3], 33
    %v1880 = vld [vmem:[%s1879] ss:$2 sm:$0xff]
    %s1881 = scalar_lea.vmem [#allocation3], 49
    %v1882 = vld [vmem:[%s1881] ss:$2 sm:$0xff]
    %s1883 = scalar_lea.vmem [#allocation3], 65
    %v1884 = vld [vmem:[%s1883] ss:$2 sm:$0xff]
    %s1885 = scalar_lea.vmem [#allocation3], 81
    %v1886 = vld [vmem:[%s1885] ss:$2 sm:$0xff]
    %s1887 = scalar_lea.vmem [#allocation3], 97
    %v1888 = vld [vmem:[%s1887] ss:$2 sm:$0xff]
    %s1889 = scalar_lea.vmem [#allocation3], 113
    %v1890 = vld [vmem:[%s1889] ss:$2 sm:$0xff]
    %s1891 = scalar_lea.vmem [#allocation3], 129
    %v1892 = vld [vmem:[%s1891] ss:$2 sm:$0xff]
    %s1893 = scalar_lea.vmem [#allocation3], 145
    %v1894 = vld [vmem:[%s1893] ss:$2 sm:$0xff]
    %s1895 = scalar_lea.vmem [#allocation3], 161
    %v1896 = vld [vmem:[%s1895] ss:$2 sm:$0xff]
    %s1897 = scalar_lea.vmem [#allocation3], 177
    %v1898 = vld [vmem:[%s1897] ss:$2 sm:$0xff]
    %s1899 = scalar_lea.vmem [#allocation3], 193
    %v1900 = vld [vmem:[%s1899] ss:$2 sm:$0xff]
    %s1901 = scalar_lea.vmem [#allocation3], 209
    %v1902 = vld [vmem:[%s1901] ss:$2 sm:$0xff]
    %s1903 = scalar_lea.vmem [#allocation3], 225
    %v1904 = vld [vmem:[%s1903] ss:$2 sm:$0xff]
    %s1905 = scalar_lea.vmem [#allocation3], 241
    %v1906 = vld [vmem:[%s1905] ss:$2 sm:$0xff]
    %v1907 = vmax.f32 %v1844, %v1876
    %v1908 = vmax.f32 %v1846, %v1878
    %v1909 = vmax.f32 %v1848, %v1880
    %v1910 = vmax.f32 %v1850, %v1882
    %v1911 = vmax.f32 %v1852, %v1884
    %v1912 = vmax.f32 %v1854, %v1886
    %v1913 = vmax.f32 %v1856, %v1888
    %v1914 = vmax.f32 %v1858, %v1890
    %v1915 = vmax.f32 %v1860, %v1892
    %v1916 = vmax.f32 %v1862, %v1894
    %v1917 = vmax.f32 %v1864, %v1896
    %v1918 = vmax.f32 %v1866, %v1898
    %v1919 = vmax.f32 %v1868, %v1900
    %v1920 = vmax.f32 %v1870, %v1902
    %v1921 = vmax.f32 %v1872, %v1904
    %v1922 = vmax.f32 %v1874, %v1906
    %1923 = vst [vmem:[#allocation4] sm:$0xff] %v1907
    %1924 = vst [vmem:[#allocation4 + $0x8] sm:$0xff] %v1908
    %1925 = vst [vmem:[#allocation4 + $0x10] sm:$0xff] %v1909
    %1926 = vst [vmem:[#allocation4 + $0x18] sm:$0xff] %v1910
    %1927 = vst [vmem:[#allocation4 + $0x20] sm:$0xff] %v1911
    %1928 = vst [vmem:[#allocation4 + $0x28] sm:$0xff] %v1912
    %1929 = vst [vmem:[#allocation4 + $0x30] sm:$0xff] %v1913
    %1930 = vst [vmem:[#allocation4 + $0x38] sm:$0xff] %v1914
    %1931 = vst [vmem:[#allocation4 + $0x40] sm:$0xff] %v1915
    %1932 = vst [vmem:[#allocation4 + $0x48] sm:$0xff] %v1916
    %1933 = vst [vmem:[#allocation4 + $0x50] sm:$0xff] %v1917
    %1934 = vst [vmem:[#allocation4 + $0x58] sm:$0xff] %v1918
    %1935 = vst [vmem:[#allocation4 + $0x60] sm:$0xff] %v1919
    %1936 = vst [vmem:[#allocation4 + $0x68] sm:$0xff] %v1920
    %1937 = vst [vmem:[#allocation4 + $0x70] sm:$0xff] %v1921
    %1938 = vst [vmem:[#allocation4 + $0x78] sm:$0xff] %v1922
    %v1939 = vld [vmem:[#allocation4] sm:$0xff]
    %v1940 = vld [vmem:[#allocation4 + $0x8] sm:$0xff]
    %v1941 = vld [vmem:[#allocation4 + $0x10] sm:$0xff]
    %v1942 = vld [vmem:[#allocation4 + $0x18] sm:$0xff]
    %v1943 = vld [vmem:[#allocation4 + $0x20] sm:$0xff]
    %v1944 = vld [vmem:[#allocation4 + $0x28] sm:$0xff]
    %v1945 = vld [vmem:[#allocation4 + $0x30] sm:$0xff]
    %v1946 = vld [vmem:[#allocation4 + $0x38] sm:$0xff]
    %v1947 = vld [vmem:[#allocation4 + $0x40] sm:$0xff]
    %v1948 = vld [vmem:[#allocation4 + $0x48] sm:$0xff]
    %v1949 = vld [vmem:[#allocation4 + $0x50] sm:$0xff]
    %v1950 = vld [vmem:[#allocation4 + $0x58] sm:$0xff]
    %v1951 = vld [vmem:[#allocation4 + $0x60] sm:$0xff]
    %v1952 = vld [vmem:[#allocation4 + $0x68] sm:$0xff]
    %v1953 = vld [vmem:[#allocation4 + $0x70] sm:$0xff]
    %v1954 = vld [vmem:[#allocation4 + $0x78] sm:$0xff]
    %1955 = vst [vmem:[#allocation5] sm:$0xff] %v1939
    %1956 = vst [vmem:[#allocation5 + $0x28] sm:$0xff] %v1940
    %1957 = vst [vmem:[#allocation5 + $0x50] sm:$0xff] %v1941
    %1958 = vst [vmem:[#allocation5 + $0x78] sm:$0xff] %v1942
    %1959 = vst [vmem:[#allocation5 + $0xa0] sm:$0xff] %v1943
    %1960 = vst [vmem:[#allocation5 + $0xc8] sm:$0xff] %v1944
    %1961 = vst [vmem:[#allocation5 + $0xf0] sm:$0xff] %v1945
    %1962 = vst [vmem:[#allocation5 + $0x118] sm:$0xff] %v1946
    %1963 = vst [vmem:[#allocation5 + $0x140] sm:$0xff] %v1947
    %1964 = vst [vmem:[#allocation5 + $0x168] sm:$0xff] %v1948
    %1965 = vst [vmem:[#allocation5 + $0x190] sm:$0xff] %v1949
    %1966 = vst [vmem:[#allocation5 + $0x1b8] sm:$0xff] %v1950
    %1967 = vst [vmem:[#allocation5 + $0x1e0] sm:$0xff] %v1951
    %1968 = vst [vmem:[#allocation5 + $0x208] sm:$0xff] %v1952
    %1969 = vst [vmem:[#allocation5 + $0x230] sm:$0xff] %v1953
    %1970 = vst [vmem:[#allocation5 + $0x258] sm:$0xff] %v1954
    %v1971 = vld [vmem:[#allocation4 + $0x1] sm:$0xff]
    %v1972 = vld [vmem:[#allocation4 + $0x9] sm:$0xff]
    %v1973 = vld [vmem:[#allocation4 + $0x11] sm:$0xff]
    %v1974 = vld [vmem:[#allocation4 + $0x19] sm:$0xff]
    %v1975 = vld [vmem:[#allocation4 + $0x21] sm:$0xff]
    %v1976 = vld [vmem:[#allocation4 + $0x29] sm:$0xff]
    %v1977 = vld [vmem:[#allocation4 + $0x31] sm:$0xff]
    %v1978 = vld [vmem:[#allocation4 + $0x39] sm:$0xff]
    %v1979 = vld [vmem:[#allocation4 + $0x41] sm:$0xff]
    %v1980 = vld [vmem:[#allocation4 + $0x49] sm:$0xff]
    %v1981 = vld [vmem:[#allocation4 + $0x51] sm:$0xff]
    %v1982 = vld [vmem:[#allocation4 + $0x59] sm:$0xff]
    %v1983 = vld [vmem:[#allocation4 + $0x61] sm:$0xff]
    %v1984 = vld [vmem:[#allocation4 + $0x69] sm:$0xff]
    %v1985 = vld [vmem:[#allocation4 + $0x71] sm:$0xff]
    %v1986 = vld [vmem:[#allocation4 + $0x79] sm:$0x7f]
    %1987 = vst [vmem:[#allocation5 + $0x8] sm:$0xff] %v1971
    %1988 = vst [vmem:[#allocation5 + $0x30] sm:$0xff] %v1972
    %1989 = vst [vmem:[#allocation5 + $0x58] sm:$0xff] %v1973
    %1990 = vst [vmem:[#allocation5 + $0x80] sm:$0xff] %v1974
    %1991 = vst [vmem:[#allocation5 + $0xa8] sm:$0xff] %v1975
    %1992 = vst [vmem:[#allocation5 + $0xd0] sm:$0xff] %v1976
    %1993 = vst [vmem:[#allocation5 + $0xf8] sm:$0xff] %v1977
    %1994 = vst [vmem:[#allocation5 + $0x120] sm:$0xff] %v1978
    %1995 = vst [vmem:[#allocation5 + $0x148] sm:$0xff] %v1979
    %1996 = vst [vmem:[#allocation5 + $0x170] sm:$0xff] %v1980
    %1997 = vst [vmem:[#allocation5 + $0x198] sm:$0xff] %v1981
    %1998 = vst [vmem:[#allocation5 + $0x1c0] sm:$0xff] %v1982
    %1999 = vst [vmem:[#allocation5 + $0x1e8] sm:$0xff] %v1983
    %2000 = vst [vmem:[#allocation5 + $0x210] sm:$0xff] %v1984
    %2001 = vst [vmem:[#allocation5 + $0x238] sm:$0xff] %v1985
    %2002 = vst [vmem:[#allocation5 + $0x260] sm:$0x7f] %v1986
    %v2003 = vld [vmem:[#allocation4 + $0x2] sm:$0xff]
    %v2004 = vld [vmem:[#allocation4 + $0xa] sm:$0xff]
    %v2005 = vld [vmem:[#allocation4 + $0x12] sm:$0xff]
    %v2006 = vld [vmem:[#allocation4 + $0x1a] sm:$0xff]
    %v2007 = vld [vmem:[#allocation4 + $0x22] sm:$0xff]
    %v2008 = vld [vmem:[#allocation4 + $0x2a] sm:$0xff]
    %v2009 = vld [vmem:[#allocation4 + $0x32] sm:$0xff]
    %v2010 = vld [vmem:[#allocation4 + $0x3a] sm:$0xff]
    %v2011 = vld [vmem:[#allocation4 + $0x42] sm:$0xff]
    %v2012 = vld [vmem:[#allocation4 + $0x4a] sm:$0xff]
    %v2013 = vld [vmem:[#allocation4 + $0x52] sm:$0xff]
    %v2014 = vld [vmem:[#allocation4 + $0x5a] sm:$0xff]
    %v2015 = vld [vmem:[#allocation4 + $0x62] sm:$0xff]
    %v2016 = vld [vmem:[#allocation4 + $0x6a] sm:$0xff]
    %v2017 = vld [vmem:[#allocation4 + $0x72] sm:$0xff]
    %v2018 = vld [vmem:[#allocation4 + $0x7a] sm:$0x3f]
    %2019 = vst [vmem:[#allocation5 + $0x10] sm:$0xff] %v2003
    %2020 = vst [vmem:[#allocation5 + $0x38] sm:$0xff] %v2004
    %2021 = vst [vmem:[#allocation5 + $0x60] sm:$0xff] %v2005
    %2022 = vst [vmem:[#allocation5 + $0x88] sm:$0xff] %v2006
    %2023 = vst [vmem:[#allocation5 + $0xb0] sm:$0xff] %v2007
    %2024 = vst [vmem:[#allocation5 + $0xd8] sm:$0xff] %v2008
    %2025 = vst [vmem:[#allocation5 + $0x100] sm:$0xff] %v2009
    %2026 = vst [vmem:[#allocation5 + $0x128] sm:$0xff] %v2010
    %2027 = vst [vmem:[#allocation5 + $0x150] sm:$0xff] %v2011
    %2028 = vst [vmem:[#allocation5 + $0x178] sm:$0xff] %v2012
    %2029 = vst [vmem:[#allocation5 + $0x1a0] sm:$0xff] %v2013
    %2030 = vst [vmem:[#allocation5 + $0x1c8] sm:$0xff] %v2014
    %2031 = vst [vmem:[#allocation5 + $0x1f0] sm:$0xff] %v2015
    %2032 = vst [vmem:[#allocation5 + $0x218] sm:$0xff] %v2016
    %2033 = vst [vmem:[#allocation5 + $0x240] sm:$0xff] %v2017
    %2034 = vst [vmem:[#allocation5 + $0x268] sm:$0x3f] %v2018
    %v2035 = vld [vmem:[#allocation4 + $0x3] sm:$0xff]
    %v2036 = vld [vmem:[#allocation4 + $0xb] sm:$0xff]
    %v2037 = vld [vmem:[#allocation4 + $0x13] sm:$0xff]
    %v2038 = vld [vmem:[#allocation4 + $0x1b] sm:$0xff]
    %v2039 = vld [vmem:[#allocation4 + $0x23] sm:$0xff]
    %v2040 = vld [vmem:[#allocation4 + $0x2b] sm:$0xff]
    %v2041 = vld [vmem:[#allocation4 + $0x33] sm:$0xff]
    %v2042 = vld [vmem:[#allocation4 + $0x3b] sm:$0xff]
    %v2043 = vld [vmem:[#allocation4 + $0x43] sm:$0xff]
    %v2044 = vld [vmem:[#allocation4 + $0x4b] sm:$0xff]
    %v2045 = vld [vmem:[#allocation4 + $0x53] sm:$0xff]
    %v2046 = vld [vmem:[#allocation4 + $0x5b] sm:$0xff]
    %v2047 = vld [vmem:[#allocation4 + $0x63] sm:$0xff]
    %v2048 = vld [vmem:[#allocation4 + $0x6b] sm:$0xff]
    %v2049 = vld [vmem:[#allocation4 + $0x73] sm:$0xff]
    %v2050 = vld [vmem:[#allocation4 + $0x7b] sm:$0x1f]
    %2051 = vst [vmem:[#allocation5 + $0x18] sm:$0xff] %v2035
    %2052 = vst [vmem:[#allocation5 + $0x40] sm:$0xff] %v2036
    %2053 = vst [vmem:[#allocation5 + $0x68] sm:$0xff] %v2037
    %2054 = vst [vmem:[#allocation5 + $0x90] sm:$0xff] %v2038
    %2055 = vst [vmem:[#allocation5 + $0xb8] sm:$0xff] %v2039
    %2056 = vst [vmem:[#allocation5 + $0xe0] sm:$0xff] %v2040
    %2057 = vst [vmem:[#allocation5 + $0x108] sm:$0xff] %v2041
    %2058 = vst [vmem:[#allocation5 + $0x130] sm:$0xff] %v2042
    %2059 = vst [vmem:[#allocation5 + $0x158] sm:$0xff] %v2043
    %2060 = vst [vmem:[#allocation5 + $0x180] sm:$0xff] %v2044
    %2061 = vst [vmem:[#allocation5 + $0x1a8] sm:$0xff] %v2045
    %2062 = vst [vmem:[#allocation5 + $0x1d0] sm:$0xff] %v2046
    %2063 = vst [vmem:[#allocation5 + $0x1f8] sm:$0xff] %v2047
    %2064 = vst [vmem:[#allocation5 + $0x220] sm:$0xff] %v2048
    %2065 = vst [vmem:[#allocation5 + $0x248] sm:$0xff] %v2049
    %2066 = vst [vmem:[#allocation5 + $0x270] sm:$0x1f] %v2050
    %v2067 = vld [vmem:[#allocation4 + $0x4] sm:$0xff]
    %v2068 = vld [vmem:[#allocation4 + $0xc] sm:$0xff]
    %v2069 = vld [vmem:[#allocation4 + $0x14] sm:$0xff]
    %v2070 = vld [vmem:[#allocation4 + $0x1c] sm:$0xff]
    %v2071 = vld [vmem:[#allocation4 + $0x24] sm:$0xff]
    %v2072 = vld [vmem:[#allocation4 + $0x2c] sm:$0xff]
    %v2073 = vld [vmem:[#allocation4 + $0x34] sm:$0xff]
    %v2074 = vld [vmem:[#allocation4 + $0x3c] sm:$0xff]
    %v2075 = vld [vmem:[#allocation4 + $0x44] sm:$0xff]
    %v2076 = vld [vmem:[#allocation4 + $0x4c] sm:$0xff]
    %v2077 = vld [vmem:[#allocation4 + $0x54] sm:$0xff]
    %v2078 = vld [vmem:[#allocation4 + $0x5c] sm:$0xff]
    %v2079 = vld [vmem:[#allocation4 + $0x64] sm:$0xff]
    %v2080 = vld [vmem:[#allocation4 + $0x6c] sm:$0xff]
    %v2081 = vld [vmem:[#allocation4 + $0x74] sm:$0xff]
    %v2082 = vld [vmem:[#allocation4 + $0x7c] sm:$0xf]
    %2083 = vst [vmem:[#allocation5 + $0x20] sm:$0xff] %v2067
    %2084 = vst [vmem:[#allocation5 + $0x48] sm:$0xff] %v2068
    %2085 = vst [vmem:[#allocation5 + $0x70] sm:$0xff] %v2069
    %2086 = vst [vmem:[#allocation5 + $0x98] sm:$0xff] %v2070
    %2087 = vst [vmem:[#allocation5 + $0xc0] sm:$0xff] %v2071
    %2088 = vst [vmem:[#allocation5 + $0xe8] sm:$0xff] %v2072
    %2089 = vst [vmem:[#allocation5 + $0x110] sm:$0xff] %v2073
    %2090 = vst [vmem:[#allocation5 + $0x138] sm:$0xff] %v2074
    %2091 = vst [vmem:[#allocation5 + $0x160] sm:$0xff] %v2075
    %2092 = vst [vmem:[#allocation5 + $0x188] sm:$0xff] %v2076
    %2093 = vst [vmem:[#allocation5 + $0x1b0] sm:$0xff] %v2077
    %2094 = vst [vmem:[#allocation5 + $0x1d8] sm:$0xff] %v2078
    %2095 = vst [vmem:[#allocation5 + $0x200] sm:$0xff] %v2079
    %2096 = vst [vmem:[#allocation5 + $0x228] sm:$0xff] %v2080
    %2097 = vst [vmem:[#allocation5 + $0x250] sm:$0xff] %v2081
    %2098 = vst [vmem:[#allocation5 + $0x278] sm:$0xf] %v2082
    %2099 = vst [vmem:[#allocation5 + $0x258] sm:$0xf0] 0.0
    %2100 = vst [vmem:[#allocation5 + $0x260] sm:$0xf0] 0.0
    %2101 = vst [vmem:[#allocation5 + $0x268] sm:$0xf0] 0.0
    %2102 = vst [vmem:[#allocation5 + $0x270] sm:$0xf0] 0.0
    %2103 = vst [vmem:[#allocation5 + $0x278] sm:$0xf0] 0.0
    %v2104 = vld [vmem:[#allocation5] sm:$0xff]
    %v2105 = vld [vmem:[#allocation5 + $0x8] sm:$0xff]
    %v2106 = vld [vmem:[#allocation5 + $0x10] sm:$0xff]
    %v2107 = vld [vmem:[#allocation5 + $0x18] sm:$0xff]
    %v2108 = vld [vmem:[#allocation5 + $0x20] sm:$0xff]
    %v2109 = vld [vmem:[#allocation5 + $0x28] sm:$0xff]
    %v2110 = vld [vmem:[#allocation5 + $0x30] sm:$0xff]
    %v2111 = vld [vmem:[#allocation5 + $0x38] sm:$0xff]
    %v2112 = vld [vmem:[#allocation5 + $0x40] sm:$0xff]
    %v2113 = vld [vmem:[#allocation5 + $0x48] sm:$0xff]
    %v2114 = vld [vmem:[#allocation5 + $0x50] sm:$0xff]
    %v2115 = vld [vmem:[#allocation5 + $0x58] sm:$0xff]
    %v2116 = vld [vmem:[#allocation5 + $0x60] sm:$0xff]
    %v2117 = vld [vmem:[#allocation5 + $0x68] sm:$0xff]
    %v2118 = vld [vmem:[#allocation5 + $0x70] sm:$0xff]
    %v2119 = vld [vmem:[#allocation5 + $0x78] sm:$0xff]
    %v2120 = vld [vmem:[#allocation5 + $0x80] sm:$0xff]
    %v2121 = vld [vmem:[#allocation5 + $0x88] sm:$0xff]
    %v2122 = vld [vmem:[#allocation5 + $0x90] sm:$0xff]
    %v2123 = vld [vmem:[#allocation5 + $0x98] sm:$0xff]
    %v2124 = vld [vmem:[#allocation5 + $0xa0] sm:$0xff]
    %v2125 = vld [vmem:[#allocation5 + $0xa8] sm:$0xff]
    %v2126 = vld [vmem:[#allocation5 + $0xb0] sm:$0xff]
    %v2127 = vld [vmem:[#allocation5 + $0xb8] sm:$0xff]
    %v2128 = vld [vmem:[#allocation5 + $0xc0] sm:$0xff]
    %v2129 = vld [vmem:[#allocation5 + $0xc8] sm:$0xff]
    %v2130 = vld [vmem:[#allocation5 + $0xd0] sm:$0xff]
    %v2131 = vld [vmem:[#allocation5 + $0xd8] sm:$0xff]
    %v2132 = vld [vmem:[#allocation5 + $0xe0] sm:$0xff]
    %v2133 = vld [vmem:[#allocation5 + $0xe8] sm:$0xff]
    %v2134 = vld [vmem:[#allocation5 + $0xf0] sm:$0xff]
    %v2135 = vld [vmem:[#allocation5 + $0xf8] sm:$0xff]
    %v2136 = vld [vmem:[#allocation5 + $0x100] sm:$0xff]
    %v2137 = vld [vmem:[#allocation5 + $0x108] sm:$0xff]
    %v2138 = vld [vmem:[#allocation5 + $0x110] sm:$0xff]
    %v2139 = vld [vmem:[#allocation5 + $0x118] sm:$0xff]
    %v2140 = vld [vmem:[#allocation5 + $0x120] sm:$0xff]
    %v2141 = vld [vmem:[#allocation5 + $0x128] sm:$0xff]
    %v2142 = vld [vmem:[#allocation5 + $0x130] sm:$0xff]
    %v2143 = vld [vmem:[#allocation5 + $0x138] sm:$0xff]
    %v2144 = vld [vmem:[#allocation5 + $0x140] sm:$0xff]
    %v2145 = vld [vmem:[#allocation5 + $0x148] sm:$0xff]
    %v2146 = vld [vmem:[#allocation5 + $0x150] sm:$0xff]
    %v2147 = vld [vmem:[#allocation5 + $0x158] sm:$0xff]
    %v2148 = vld [vmem:[#allocation5 + $0x160] sm:$0xff]
    %v2149 = vld [vmem:[#allocation5 + $0x168] sm:$0xff]
    %v2150 = vld [vmem:[#allocation5 + $0x170] sm:$0xff]
    %v2151 = vld [vmem:[#allocation5 + $0x178] sm:$0xff]
    %v2152 = vld [vmem:[#allocation5 + $0x180] sm:$0xff]
    %v2153 = vld [vmem:[#allocation5 + $0x188] sm:$0xff]
    %v2154 = vld [vmem:[#allocation5 + $0x190] sm:$0xff]
    %v2155 = vld [vmem:[#allocation5 + $0x198] sm:$0xff]
    %v2156 = vld [vmem:[#allocation5 + $0x1a0] sm:$0xff]
    %v2157 = vld [vmem:[#allocation5 + $0x1a8] sm:$0xff]
    %v2158 = vld [vmem:[#allocation5 + $0x1b0] sm:$0xff]
    %v2159 = vld [vmem:[#allocation5 + $0x1b8] sm:$0xff]
    %v2160 = vld [vmem:[#allocation5 + $0x1c0] sm:$0xff]
    %v2161 = vld [vmem:[#allocation5 + $0x1c8] sm:$0xff]
    %v2162 = vld [vmem:[#allocation5 + $0x1d0] sm:$0xff]
    %v2163 = vld [vmem:[#allocation5 + $0x1d8] sm:$0xff]
    %v2164 = vld [vmem:[#allocation5 + $0x1e0] sm:$0xff]
    %v2165 = vld [vmem:[#allocation5 + $0x1e8] sm:$0xff]
    %v2166 = vld [vmem:[#allocation5 + $0x1f0] sm:$0xff]
    %v2167 = vld [vmem:[#allocation5 + $0x1f8] sm:$0xff]
    %v2168 = vld [vmem:[#allocation5 + $0x200] sm:$0xff]
    %v2169 = vld [vmem:[#allocation5 + $0x208] sm:$0xff]
    %v2170 = vld [vmem:[#allocation5 + $0x210] sm:$0xff]
    %v2171 = vld [vmem:[#allocation5 + $0x218] sm:$0xff]
    %v2172 = vld [vmem:[#allocation5 + $0x220] sm:$0xff]
    %v2173 = vld [vmem:[#allocation5 + $0x228] sm:$0xff]
    %v2174 = vld [vmem:[#allocation5 + $0x230] sm:$0xff]
    %v2175 = vld [vmem:[#allocation5 + $0x238] sm:$0xff]
    %v2176 = vld [vmem:[#allocation5 + $0x240] sm:$0xff]
    %v2177 = vld [vmem:[#allocation5 + $0x248] sm:$0xff]
    %v2178 = vld [vmem:[#allocation5 + $0x250] sm:$0xff]
    %v2179 = vld [vmem:[#allocation5 + $0x258] sm:$0xff]
    %v2180 = vld [vmem:[#allocation5 + $0x260] sm:$0xff]
    %v2181 = vld [vmem:[#allocation5 + $0x268] sm:$0xff]
    %v2182 = vld [vmem:[#allocation5 + $0x270] sm:$0xff]
    %v2183 = vld [vmem:[#allocation5 + $0x278] sm:$0xff]
    %v2184 = vpack.c.bf16 %v2109, %v2104
    %v2185 = vpack.c.bf16 %v2110, %v2105
    %v2186 = vpack.c.bf16 %v2111, %v2106
    %v2187 = vpack.c.bf16 %v2112, %v2107
    %v2188 = vpack.c.bf16 %v2113, %v2108
    %v2189 = vpack.c.bf16 %v2119, %v2114
    %v2190 = vpack.c.bf16 %v2120, %v2115
    %v2191 = vpack.c.bf16 %v2121, %v2116
    %v2192 = vpack.c.bf16 %v2122, %v2117
    %v2193 = vpack.c.bf16 %v2123, %v2118
    %v2194 = vpack.c.bf16 %v2129, %v2124
    %v2195 = vpack.c.bf16 %v2130, %v2125
    %v2196 = vpack.c.bf16 %v2131, %v2126
    %v2197 = vpack.c.bf16 %v2132, %v2127
    %v2198 = vpack.c.bf16 %v2133, %v2128
    %v2199 = vpack.c.bf16 %v2139, %v2134
    %v2200 = vpack.c.bf16 %v2140, %v2135
    %v2201 = vpack.c.bf16 %v2141, %v2136
    %v2202 = vpack.c.bf16 %v2142, %v2137
    %v2203 = vpack.c.bf16 %v2143, %v2138
    %v2204 = vpack.c.bf16 %v2149, %v2144
    %v2205 = vpack.c.bf16 %v2150, %v2145
    %v2206 = vpack.c.bf16 %v2151, %v2146
    %v2207 = vpack.c.bf16 %v2152, %v2147
    %v2208 = vpack.c.bf16 %v2153, %v2148
    %v2209 = vpack.c.bf16 %v2159, %v2154
    %v2210 = vpack.c.bf16 %v2160, %v2155
    %v2211 = vpack.c.bf16 %v2161, %v2156
    %v2212 = vpack.c.bf16 %v2162, %v2157
    %v2213 = vpack.c.bf16 %v2163, %v2158
    %v2214 = vpack.c.bf16 %v2169, %v2164
    %v2215 = vpack.c.bf16 %v2170, %v2165
    %v2216 = vpack.c.bf16 %v2171, %v2166
    %v2217 = vpack.c.bf16 %v2172, %v2167
    %v2218 = vpack.c.bf16 %v2173, %v2168
    %v2219 = vpack.c.bf16 %v2179, %v2174
    %v2220 = vpack.c.bf16 %v2180, %v2175
    %v2221 = vpack.c.bf16 %v2181, %v2176
    %v2222 = vpack.c.bf16 %v2182, %v2177
    %v2223 = vpack.c.bf16 %v2183, %v2178
    %v2224 = vld [vmem:[#allocation9] sm:$0xff]
    %v2225 = vld [vmem:[#allocation9 + $0x8] sm:$0xff]
    %v2226 = vld [vmem:[#allocation9 + $0x10] sm:$0xff]
    %v2227 = vld [vmem:[#allocation9 + $0x18] sm:$0xff]
    %v2228 = vld [vmem:[#allocation9 + $0x20] sm:$0xff]
    %v2229 = vld [vmem:[#allocation9 + $0x28] sm:$0xff]
    %v2230 = vld [vmem:[#allocation9 + $0x30] sm:$0xff]
    %v2231 = vld [vmem:[#allocation9 + $0x38] sm:$0xff]
    %v2232 = vld [vmem:[#allocation9 + $0x40] sm:$0xff]
    %v2233 = vld [vmem:[#allocation9 + $0x48] sm:$0xff]
    %v2234 = vld [vmem:[#allocation9 + $0x50] sm:$0xff]
    %v2235 = vld [vmem:[#allocation9 + $0x58] sm:$0xff]
    %v2236 = vld [vmem:[#allocation9 + $0x60] sm:$0xff]
    %v2237 = vld [vmem:[#allocation9 + $0x68] sm:$0xff]
    %v2238 = vld [vmem:[#allocation9 + $0x70] sm:$0xff]
    %v2239 = vld [vmem:[#allocation9 + $0x78] sm:$0xff]
    %v2240 = vld [vmem:[#allocation9 + $0x80] sm:$0xff]
    %v2241 = vld [vmem:[#allocation9 + $0x88] sm:$0xff]
    %v2242 = vld [vmem:[#allocation9 + $0x90] sm:$0xff]
    %v2243 = vld [vmem:[#allocation9 + $0x98] sm:$0xff]
    %v2244 = vld [vmem:[#allocation9 + $0xa0] sm:$0xff]
    %v2245 = vld [vmem:[#allocation9 + $0xa8] sm:$0xff]
    %v2246 = vld [vmem:[#allocation9 + $0xb0] sm:$0xff]
    %v2247 = vld [vmem:[#allocation9 + $0xb8] sm:$0xff]
    %v2248 = vld [vmem:[#allocation9 + $0xc0] sm:$0xff]
    %v2249 = vld [vmem:[#allocation9 + $0xc8] sm:$0xff]
    %v2250 = vld [vmem:[#allocation9 + $0xd0] sm:$0xff]
    %v2251 = vld [vmem:[#allocation9 + $0xd8] sm:$0xff]
    %v2252 = vld [vmem:[#allocation9 + $0xe0] sm:$0xff]
    %v2253 = vld [vmem:[#allocation9 + $0xe8] sm:$0xff]
    %v2254 = vld [vmem:[#allocation9 + $0xf0] sm:$0xff]
    %v2255 = vld [vmem:[#allocation9 + $0xf8] sm:$0xff]
    %v2256 = vld [vmem:[#allocation9 + $0x100] sm:$0xff]
    %v2257 = vld [vmem:[#allocation9 + $0x108] sm:$0xff]
    %v2258 = vld [vmem:[#allocation9 + $0x110] sm:$0xff]
    %v2259 = vld [vmem:[#allocation9 + $0x118] sm:$0xff]
    %v2260 = vld [vmem:[#allocation9 + $0x120] sm:$0xff]
    %v2261 = vld [vmem:[#allocation9 + $0x128] sm:$0xff]
    %v2262 = vld [vmem:[#allocation9 + $0x130] sm:$0xff]
    %v2263 = vld [vmem:[#allocation9 + $0x138] sm:$0xff]
    %v2264 = vld [vmem:[#allocation9 + $0x140] sm:$0xff]
    %v2265 = vld [vmem:[#allocation9 + $0x148] sm:$0xff]
    %v2266 = vld [vmem:[#allocation9 + $0x150] sm:$0xff]
    %v2267 = vld [vmem:[#allocation9 + $0x158] sm:$0xff]
    %v2268 = vld [vmem:[#allocation9 + $0x160] sm:$0xff]
    %v2269 = vld [vmem:[#allocation9 + $0x168] sm:$0xff]
    %v2270 = vld [vmem:[#allocation9 + $0x170] sm:$0xff]
    %v2271 = vld [vmem:[#allocation9 + $0x178] sm:$0xff]
    %v2272 = vld [vmem:[#allocation9 + $0x180] sm:$0xff]
    %v2273 = vld [vmem:[#allocation9 + $0x188] sm:$0xff]
    %v2274 = vld [vmem:[#allocation9 + $0x190] sm:$0xff]
    %v2275 = vld [vmem:[#allocation9 + $0x198] sm:$0xff]
    %v2276 = vld [vmem:[#allocation9 + $0x1a0] sm:$0xff]
    %v2277 = vld [vmem:[#allocation9 + $0x1a8] sm:$0xff]
    %v2278 = vld [vmem:[#allocation9 + $0x1b0] sm:$0xff]
    %v2279 = vld [vmem:[#allocation9 + $0x1b8] sm:$0xff]
    %v2280 = vld [vmem:[#allocation9 + $0x1c0] sm:$0xff]
    %v2281 = vld [vmem:[#allocation9 + $0x1c8] sm:$0xff]
    %v2282 = vld [vmem:[#allocation9 + $0x1d0] sm:$0xff]
    %v2283 = vld [vmem:[#allocation9 + $0x1d8] sm:$0xff]
    %v2284 = vld [vmem:[#allocation9 + $0x1e0] sm:$0xff]
    %v2285 = vld [vmem:[#allocation9 + $0x1e8] sm:$0xff]
    %v2286 = vld [vmem:[#allocation9 + $0x1f0] sm:$0xff]
    %v2287 = vld [vmem:[#allocation9 + $0x1f8] sm:$0xff]
    %v2288 = vld [vmem:[#allocation9 + $0x200] sm:$0xff]
    %v2289 = vld [vmem:[#allocation9 + $0x208] sm:$0xff]
    %v2290 = vld [vmem:[#allocation9 + $0x210] sm:$0xff]
    %v2291 = vld [vmem:[#allocation9 + $0x218] sm:$0xff]
    %v2292 = vld [vmem:[#allocation9 + $0x220] sm:$0xff]
    %v2293 = vld [vmem:[#allocation9 + $0x228] sm:$0xff]
    %v2294 = vld [vmem:[#allocation9 + $0x230] sm:$0xff]
    %v2295 = vld [vmem:[#allocation9 + $0x238] sm:$0xff]
    %v2296 = vld [vmem:[#allocation9 + $0x240] sm:$0xff]
    %v2297 = vld [vmem:[#allocation9 + $0x248] sm:$0xff]
    %v2298 = vld [vmem:[#allocation9 + $0x250] sm:$0xff]
    %v2299 = vld [vmem:[#allocation9 + $0x258] sm:$0xff]
    %v2300 = vld [vmem:[#allocation9 + $0x260] sm:$0xff]
    %v2301 = vld [vmem:[#allocation9 + $0x268] sm:$0xff]
    %v2302 = vld [vmem:[#allocation9 + $0x270] sm:$0xff]
    %v2303 = vld [vmem:[#allocation9 + $0x278] sm:$0xff]
    %v2304 = vld [vmem:[%s4] sm:$0x3]
    %v2306 = vlaneseq
    %v2307 = vshrl.u32 %v2306, 7
    %v2308 = vsub.s32 0, %v2307
    %v2309 = vrot.slane %v2304, %v2308
    %v2310 = vlaneseq
    %v2311 = vshrl.u32 %v2310, 7
    %v2312 = vsub.s32 1, %v2311
    %v2313 = vrot.slane %v2304, %v2312
    %v2396 = vunpack.c.l.b16 %v2224
    %v2397 = vunpack.c.h.b16 %v2224
    %v2398 = vunpack.c.l.b16 %v2225
    %v2399 = vunpack.c.h.b16 %v2225
    %v2400 = vunpack.c.l.b16 %v2226
    %v2401 = vunpack.c.h.b16 %v2226
    %v2402 = vunpack.c.l.b16 %v2227
    %v2403 = vunpack.c.h.b16 %v2227
    %v2404 = vunpack.c.l.b16 %v2228
    %v2405 = vunpack.c.h.b16 %v2228
    %v2406 = vunpack.c.l.b16 %v2229
    %v2407 = vunpack.c.h.b16 %v2229
    %v2408 = vunpack.c.l.b16 %v2230
    %v2409 = vunpack.c.h.b16 %v2230
    %v2410 = vunpack.c.l.b16 %v2231
    %v2411 = vunpack.c.h.b16 %v2231
    %v2412 = vunpack.c.l.b16 %v2232
    %v2413 = vunpack.c.h.b16 %v2232
    %v2414 = vunpack.c.l.b16 %v2233
    %v2415 = vunpack.c.h.b16 %v2233
    %v2416 = vunpack.c.l.b16 %v2234
    %v2417 = vunpack.c.h.b16 %v2234
    %v2418 = vunpack.c.l.b16 %v2235
    %v2419 = vunpack.c.h.b16 %v2235
    %v2420 = vunpack.c.l.b16 %v2236
    %v2421 = vunpack.c.h.b16 %v2236
    %v2422 = vunpack.c.l.b16 %v2237
    %v2423 = vunpack.c.h.b16 %v2237
    %v2424 = vunpack.c.l.b16 %v2238
    %v2425 = vunpack.c.h.b16 %v2238
    %v2426 = vunpack.c.l.b16 %v2239
    %v2427 = vunpack.c.h.b16 %v2239
    %v2428 = vunpack.c.l.b16 %v2240
    %v2429 = vunpack.c.h.b16 %v2240
    %v2430 = vunpack.c.l.b16 %v2241
    %v2431 = vunpack.c.h.b16 %v2241
    %v2432 = vunpack.c.l.b16 %v2242
    %v2433 = vunpack.c.h.b16 %v2242
    %v2434 = vunpack.c.l.b16 %v2243
    %v2435 = vunpack.c.h.b16 %v2243
    %v2436 = vunpack.c.l.b16 %v2244
    %v2437 = vunpack.c.h.b16 %v2244
    %v2438 = vunpack.c.l.b16 %v2245
    %v2439 = vunpack.c.h.b16 %v2245
    %v2440 = vunpack.c.l.b16 %v2246
    %v2441 = vunpack.c.h.b16 %v2246
    %v2442 = vunpack.c.l.b16 %v2247
    %v2443 = vunpack.c.h.b16 %v2247
    %v2444 = vunpack.c.l.b16 %v2248
    %v2445 = vunpack.c.h.b16 %v2248
    %v2446 = vunpack.c.l.b16 %v2249
    %v2447 = vunpack.c.h.b16 %v2249
    %v2448 = vunpack.c.l.b16 %v2250
    %v2449 = vunpack.c.h.b16 %v2250
    %v2450 = vunpack.c.l.b16 %v2251
    %v2451 = vunpack.c.h.b16 %v2251
    %v2452 = vunpack.c.l.b16 %v2252
    %v2453 = vunpack.c.h.b16 %v2252
    %v2454 = vunpack.c.l.b16 %v2253
    %v2455 = vunpack.c.h.b16 %v2253
    %v2456 = vunpack.c.l.b16 %v2254
    %v2457 = vunpack.c.h.b16 %v2254
    %v2458 = vunpack.c.l.b16 %v2255
    %v2459 = vunpack.c.h.b16 %v2255
    %v2460 = vunpack.c.l.b16 %v2256
    %v2461 = vunpack.c.h.b16 %v2256
    %v2462 = vunpack.c.l.b16 %v2257
    %v2463 = vunpack.c.h.b16 %v2257
    %v2464 = vunpack.c.l.b16 %v2258
    %v2465 = vunpack.c.h.b16 %v2258
    %v2466 = vunpack.c.l.b16 %v2259
    %v2467 = vunpack.c.h.b16 %v2259
    %v2468 = vunpack.c.l.b16 %v2260
    %v2469 = vunpack.c.h.b16 %v2260
    %v2470 = vunpack.c.l.b16 %v2261
    %v2471 = vunpack.c.h.b16 %v2261
    %v2472 = vunpack.c.l.b16 %v2262
    %v2473 = vunpack.c.h.b16 %v2262
    %v2474 = vunpack.c.l.b16 %v2263
    %v2475 = vunpack.c.h.b16 %v2263
    %v2476 = vunpack.c.l.b16 %v2264
    %v2477 = vunpack.c.h.b16 %v2264
    %v2478 = vunpack.c.l.b16 %v2265
    %v2479 = vunpack.c.h.b16 %v2265
    %v2480 = vunpack.c.l.b16 %v2266
    %v2481 = vunpack.c.h.b16 %v2266
    %v2482 = vunpack.c.l.b16 %v2267
    %v2483 = vunpack.c.h.b16 %v2267
    %v2484 = vunpack.c.l.b16 %v2268
    %v2485 = vunpack.c.h.b16 %v2268
    %v2486 = vunpack.c.l.b16 %v2269
    %v2487 = vunpack.c.h.b16 %v2269
    %v2488 = vunpack.c.l.b16 %v2270
    %v2489 = vunpack.c.h.b16 %v2270
    %v2490 = vunpack.c.l.b16 %v2271
    %v2491 = vunpack.c.h.b16 %v2271
    %v2492 = vunpack.c.l.b16 %v2272
    %v2493 = vunpack.c.h.b16 %v2272
    %v2494 = vunpack.c.l.b16 %v2273
    %v2495 = vunpack.c.h.b16 %v2273
    %v2496 = vunpack.c.l.b16 %v2274
    %v2497 = vunpack.c.h.b16 %v2274
    %v2498 = vunpack.c.l.b16 %v2275
    %v2499 = vunpack.c.h.b16 %v2275
    %v2500 = vunpack.c.l.b16 %v2276
    %v2501 = vunpack.c.h.b16 %v2276
    %v2502 = vunpack.c.l.b16 %v2277
    %v2503 = vunpack.c.h.b16 %v2277
    %v2504 = vunpack.c.l.b16 %v2278
    %v2505 = vunpack.c.h.b16 %v2278
    %v2506 = vunpack.c.l.b16 %v2279
    %v2507 = vunpack.c.h.b16 %v2279
    %v2508 = vunpack.c.l.b16 %v2280
    %v2509 = vunpack.c.h.b16 %v2280
    %v2510 = vunpack.c.l.b16 %v2281
    %v2511 = vunpack.c.h.b16 %v2281
    %v2512 = vunpack.c.l.b16 %v2282
    %v2513 = vunpack.c.h.b16 %v2282
    %v2514 = vunpack.c.l.b16 %v2283
    %v2515 = vunpack.c.h.b16 %v2283
    %v2516 = vunpack.c.l.b16 %v2284
    %v2517 = vunpack.c.h.b16 %v2284
    %v2518 = vunpack.c.l.b16 %v2285
    %v2519 = vunpack.c.h.b16 %v2285
    %v2520 = vunpack.c.l.b16 %v2286
    %v2521 = vunpack.c.h.b16 %v2286
    %v2522 = vunpack.c.l.b16 %v2287
    %v2523 = vunpack.c.h.b16 %v2287
    %v2524 = vunpack.c.l.b16 %v2288
    %v2525 = vunpack.c.h.b16 %v2288
    %v2526 = vunpack.c.l.b16 %v2289
    %v2527 = vunpack.c.h.b16 %v2289
    %v2528 = vunpack.c.l.b16 %v2290
    %v2529 = vunpack.c.h.b16 %v2290
    %v2530 = vunpack.c.l.b16 %v2291
    %v2531 = vunpack.c.h.b16 %v2291
    %v2532 = vunpack.c.l.b16 %v2292
    %v2533 = vunpack.c.h.b16 %v2292
    %v2534 = vunpack.c.l.b16 %v2293
    %v2535 = vunpack.c.h.b16 %v2293
    %v2536 = vunpack.c.l.b16 %v2294
    %v2537 = vunpack.c.h.b16 %v2294
    %v2538 = vunpack.c.l.b16 %v2295
    %v2539 = vunpack.c.h.b16 %v2295
    %v2540 = vunpack.c.l.b16 %v2296
    %v2541 = vunpack.c.h.b16 %v2296
    %v2542 = vunpack.c.l.b16 %v2297
    %v2543 = vunpack.c.h.b16 %v2297
    %v2544 = vunpack.c.l.b16 %v2298
    %v2545 = vunpack.c.h.b16 %v2298
    %v2546 = vunpack.c.l.b16 %v2299
    %v2547 = vunpack.c.h.b16 %v2299
    %v2548 = vunpack.c.l.b16 %v2300
    %v2549 = vunpack.c.h.b16 %v2300
    %v2550 = vunpack.c.l.b16 %v2301
    %v2551 = vunpack.c.h.b16 %v2301
    %v2552 = vunpack.c.l.b16 %v2302
    %v2553 = vunpack.c.h.b16 %v2302
    %v2554 = vunpack.c.l.b16 %v2303
    %v2555 = vunpack.c.h.b16 %v2303
    %v2556 = vpack.c.b16 %v2398, %v2396
    %v2557 = vpack.c.b16 %v2399, %v2397
    %v2558 = vpack.c.b16 %v2402, %v2400
    %v2559 = vpack.c.b16 %v2403, %v2401
    %v2560 = vpack.c.b16 %v2406, %v2404
    %v2561 = vpack.c.b16 %v2407, %v2405
    %v2562 = vpack.c.b16 %v2410, %v2408
    %v2563 = vpack.c.b16 %v2411, %v2409
    %v2564 = vpack.c.b16 %v2414, %v2412
    %v2565 = vpack.c.b16 %v2415, %v2413
    %v2566 = vpack.c.b16 %v2418, %v2416
    %v2567 = vpack.c.b16 %v2419, %v2417
    %v2568 = vpack.c.b16 %v2422, %v2420
    %v2569 = vpack.c.b16 %v2423, %v2421
    %v2570 = vpack.c.b16 %v2426, %v2424
    %v2571 = vpack.c.b16 %v2427, %v2425
    %v2572 = vpack.c.b16 %v2430, %v2428
    %v2573 = vpack.c.b16 %v2431, %v2429
    %v2574 = vpack.c.b16 %v2434, %v2432
    %v2575 = vpack.c.b16 %v2435, %v2433
    %v2576 = vpack.c.b16 %v2438, %v2436
    %v2577 = vpack.c.b16 %v2439, %v2437
    %v2578 = vpack.c.b16 %v2442, %v2440
    %v2579 = vpack.c.b16 %v2443, %v2441
    %v2580 = vpack.c.b16 %v2446, %v2444
    %v2581 = vpack.c.b16 %v2447, %v2445
    %v2582 = vpack.c.b16 %v2450, %v2448
    %v2583 = vpack.c.b16 %v2451, %v2449
    %v2584 = vpack.c.b16 %v2454, %v2452
    %v2585 = vpack.c.b16 %v2455, %v2453
    %v2586 = vpack.c.b16 %v2458, %v2456
    %v2587 = vpack.c.b16 %v2459, %v2457
    %v2588 = vpack.c.b16 %v2462, %v2460
    %v2589 = vpack.c.b16 %v2463, %v2461
    %v2590 = vpack.c.b16 %v2466, %v2464
    %v2591 = vpack.c.b16 %v2467, %v2465
    %v2592 = vpack.c.b16 %v2470, %v2468
    %v2593 = vpack.c.b16 %v2471, %v2469
    %v2594 = vpack.c.b16 %v2474, %v2472
    %v2595 = vpack.c.b16 %v2475, %v2473
    %v2596 = vpack.c.b16 %v2478, %v2476
    %v2597 = vpack.c.b16 %v2479, %v2477
    %v2598 = vpack.c.b16 %v2482, %v2480
    %v2599 = vpack.c.b16 %v2483, %v2481
    %v2600 = vpack.c.b16 %v2486, %v2484
    %v2601 = vpack.c.b16 %v2487, %v2485
    %v2602 = vpack.c.b16 %v2490, %v2488
    %v2603 = vpack.c.b16 %v2491, %v2489
    %v2604 = vpack.c.b16 %v2494, %v2492
    %v2605 = vpack.c.b16 %v2495, %v2493
    %v2606 = vpack.c.b16 %v2498, %v2496
    %v2607 = vpack.c.b16 %v2499, %v2497
    %v2608 = vpack.c.b16 %v2502, %v2500
    %v2609 = vpack.c.b16 %v2503, %v2501
    %v2610 = vpack.c.b16 %v2506, %v2504
    %v2611 = vpack.c.b16 %v2507, %v2505
    %v2612 = vpack.c.b16 %v2510, %v2508
    %v2613 = vpack.c.b16 %v2511, %v2509
    %v2614 = vpack.c.b16 %v2514, %v2512
    %v2615 = vpack.c.b16 %v2515, %v2513
    %v2616 = vpack.c.b16 %v2518, %v2516
    %v2617 = vpack.c.b16 %v2519, %v2517
    %v2618 = vpack.c.b16 %v2522, %v2520
    %v2619 = vpack.c.b16 %v2523, %v2521
    %v2620 = vpack.c.b16 %v2526, %v2524
    %v2621 = vpack.c.b16 %v2527, %v2525
    %v2622 = vpack.c.b16 %v2530, %v2528
    %v2623 = vpack.c.b16 %v2531, %v2529
    %v2624 = vpack.c.b16 %v2534, %v2532
    %v2625 = vpack.c.b16 %v2535, %v2533
    %v2626 = vpack.c.b16 %v2538, %v2536
    %v2627 = vpack.c.b16 %v2539, %v2537
    %v2628 = vpack.c.b16 %v2542, %v2540
    %v2629 = vpack.c.b16 %v2543, %v2541
    %v2630 = vpack.c.b16 %v2546, %v2544
    %v2631 = vpack.c.b16 %v2547, %v2545
    %v2632 = vpack.c.b16 %v2550, %v2548
    %v2633 = vpack.c.b16 %v2551, %v2549
    %v2634 = vpack.c.b16 %v2554, %v2552
    %v2635 = vpack.c.b16 %v2555, %v2553
    %2716 = vmatprep.subr.bf16.mxu0 %v2571
    %2717 = vmatpush1.bf16.msra.mxu0 %v2570
    %2718 = vmatprep.subr.bf16.mxu0 %v2569
    %2719 = vmatpush1.bf16.msra.mxu0 %v2568
    %2720 = vmatprep.subr.bf16.mxu0 %v2567
    %2721 = vmatpush1.bf16.msra.mxu0 %v2566
    %2722 = vmatprep.subr.bf16.mxu0 %v2565
    %2723 = vmatpush1.bf16.msra.mxu0 %v2564
    %2724 = vmatprep.subr.bf16.mxu0 %v2563
    %2725 = vmatpush1.bf16.msra.mxu0 %v2562
    %2726 = vmatprep.subr.bf16.mxu0 %v2561
    %2727 = vmatpush1.bf16.msra.mxu0 %v2560
    %2728 = vmatprep.subr.bf16.mxu0 %v2559
    %2729 = vmatpush1.bf16.msra.mxu0 %v2558
    %2730 = vmatprep.subr.bf16.mxu0 %v2557
    %2731 = vmatpush1.bf16.msra.mxu0 %v2556
    %2732 = vmatprep.subr.bf16.mxu0 %v2587
    %2733 = vmatpush2.bf16.msra.mxu0 %v2586
    %2734 = vmatprep.subr.bf16.mxu0 %v2585
    %2735 = vmatpush2.bf16.msra.mxu0 %v2584
    %2736 = vmatprep.subr.bf16.mxu0 %v2583
    %2737 = vmatpush2.bf16.msra.mxu0 %v2582
    %2738 = vmatprep.subr.bf16.mxu0 %v2581
    %2739 = vmatpush2.bf16.msra.mxu0 %v2580
    %2740 = vmatprep.subr.bf16.mxu0 %v2579
    %2741 = vmatpush2.bf16.msra.mxu0 %v2578
    %2742 = vmatprep.subr.bf16.mxu0 %v2577
    %2743 = vmatpush2.bf16.msra.mxu0 %v2576
    %2744 = vmatprep.subr.bf16.mxu0 %v2575
    %2745 = vmatpush2.bf16.msra.mxu0 %v2574
    %2746 = vmatprep.subr.bf16.mxu0 %v2573
    %2747 = vmatpush2.bf16.msra.mxu0 %v2572
    %2748 = vmatprep.mubr.bf16.mxu0 %v2185
    %2749 = vmatmul.mubr.bf16.gmra.mxu0 %v2184
    %v2750 = vpop.f32.mrf.mxu0
    %v2751 = vadd.f32 %v2309, %v2750
    %v2752 = vpop.f32.mrf.mxu0
    %v2753 = vadd.f32 %v2313, %v2752
    %v2754 = vpop.f32.mrf.mxu0
    %v2755 = vadd.f32 %v2309, %v2754
    %v2756 = vpop.f32.mrf.mxu0
    %v2757 = vadd.f32 %v2313, %v2756
    %2758 = vmatprep.mubr.bf16.mxu0 %v2190
    %2759 = vmatmul.mubr.bf16.gmra.mxu0 %v2189
    %v2760 = vpop.f32.mrf.mxu0
    %v2761 = vadd.f32 %v2309, %v2760
    %v2762 = vpop.f32.mrf.mxu0
    %v2763 = vadd.f32 %v2313, %v2762
    %v2764 = vpop.f32.mrf.mxu0
    %v2765 = vadd.f32 %v2309, %v2764
    %v2766 = vpop.f32.mrf.mxu0
    %v2767 = vadd.f32 %v2313, %v2766
    %2768 = vmatprep.mubr.bf16.mxu0 %v2195
    %2769 = vmatmul.mubr.bf16.gmra.mxu0 %v2194
    %v2770 = vpop.f32.mrf.mxu0
    %v2771 = vadd.f32 %v2309, %v2770
    %v2772 = vpop.f32.mrf.mxu0
    %v2773 = vadd.f32 %v2313, %v2772
    %v2774 = vpop.f32.mrf.mxu0
    %v2775 = vadd.f32 %v2309, %v2774
    %v2776 = vpop.f32.mrf.mxu0
    %v2777 = vadd.f32 %v2313, %v2776
    %2778 = vmatprep.mubr.bf16.mxu0 %v2200
    %2779 = vmatmul.mubr.bf16.gmra.mxu0 %v2199
    %v2780 = vpop.f32.mrf.mxu0
    %v2781 = vadd.f32 %v2309, %v2780
    %v2782 = vpop.f32.mrf.mxu0
    %v2783 = vadd.f32 %v2313, %v2782
    %v2784 = vpop.f32.mrf.mxu0
    %v2785 = vadd.f32 %v2309, %v2784
    %v2786 = vpop.f32.mrf.mxu0
    %v2787 = vadd.f32 %v2313, %v2786
    %2788 = vmatprep.mubr.bf16.mxu0 %v2205
    %2789 = vmatmul.mubr.bf16.gmra.mxu0 %v2204
    %v2790 = vpop.f32.mrf.mxu0
    %v2791 = vadd.f32 %v2309, %v2790
    %v2792 = vpop.f32.mrf.mxu0
    %v2793 = vadd.f32 %v2313, %v2792
    %v2794 = vpop.f32.mrf.mxu0
    %v2795 = vadd.f32 %v2309, %v2794
    %v2796 = vpop.f32.mrf.mxu0
    %v2797 = vadd.f32 %v2313, %v2796
    %2798 = vmatprep.mubr.bf16.mxu0 %v2210
    %2799 = vmatmul.mubr.bf16.gmra.mxu0 %v2209
    %v2800 = vpop.f32.mrf.mxu0
    %v2801 = vadd.f32 %v2309, %v2800
    %v2802 = vpop.f32.mrf.mxu0
    %v2803 = vadd.f32 %v2313, %v2802
    %v2804 = vpop.f32.mrf.mxu0
    %v2805 = vadd.f32 %v2309, %v2804
    %v2806 = vpop.f32.mrf.mxu0
    %v2807 = vadd.f32 %v2313, %v2806
    %2808 = vmatprep.mubr.bf16.mxu0 %v2215
    %2809 = vmatmul.mubr.bf16.gmra.mxu0 %v2214
    %v2810 = vpop.f32.mrf.mxu0
    %v2811 = vadd.f32 %v2309, %v2810
    %v2812 = vpop.f32.mrf.mxu0
    %v2813 = vadd.f32 %v2313, %v2812
    %v2814 = vpop.f32.mrf.mxu0
    %v2815 = vadd.f32 %v2309, %v2814
    %v2816 = vpop.f32.mrf.mxu0
    %v2817 = vadd.f32 %v2313, %v2816
    %2818 = vmatprep.mubr.bf16.mxu0 %v2220
    %2819 = vmatmul.mubr.bf16.gmra.mxu0 %v2219
    %v2820 = vpop.f32.mrf.mxu0
    %v2821 = vadd.f32 %v2309, %v2820
    %v2822 = vpop.f32.mrf.mxu0
    %v2823 = vadd.f32 %v2313, %v2822
    %v2824 = vpop.f32.mrf.mxu0
    %v2825 = vadd.f32 %v2309, %v2824
    %v2826 = vpop.f32.mrf.mxu0
    %v2827 = vadd.f32 %v2313, %v2826
    %2828 = vdwg.mxu0
    %2829 = vmatprep.subr.bf16.mxu0 %v2603
    %2830 = vmatpush1.bf16.msra.mxu0 %v2602
    %2831 = vmatprep.subr.bf16.mxu0 %v2601
    %2832 = vmatpush1.bf16.msra.mxu0 %v2600
    %2833 = vmatprep.subr.bf16.mxu0 %v2599
    %2834 = vmatpush1.bf16.msra.mxu0 %v2598
    %2835 = vmatprep.subr.bf16.mxu0 %v2597
    %2836 = vmatpush1.bf16.msra.mxu0 %v2596
    %2837 = vmatprep.subr.bf16.mxu0 %v2595
    %2838 = vmatpush1.bf16.msra.mxu0 %v2594
    %2839 = vmatprep.subr.bf16.mxu0 %v2593
    %2840 = vmatpush1.bf16.msra.mxu0 %v2592
    %2841 = vmatprep.subr.bf16.mxu0 %v2591
    %2842 = vmatpush1.bf16.msra.mxu0 %v2590
    %2843 = vmatprep.subr.bf16.mxu0 %v2589
    %2844 = vmatpush1.bf16.msra.mxu0 %v2588
    %2845 = vmatprep.subr.bf16.mxu0 %v2619
    %2846 = vmatpush2.bf16.msra.mxu0 %v2618
    %2847 = vmatprep.subr.bf16.mxu0 %v2617
    %2848 = vmatpush2.bf16.msra.mxu0 %v2616
    %2849 = vmatprep.subr.bf16.mxu0 %v2615
    %2850 = vmatpush2.bf16.msra.mxu0 %v2614
    %2851 = vmatprep.subr.bf16.mxu0 %v2613
    %2852 = vmatpush2.bf16.msra.mxu0 %v2612
    %2853 = vmatprep.subr.bf16.mxu0 %v2611
    %2854 = vmatpush2.bf16.msra.mxu0 %v2610
    %2855 = vmatprep.subr.bf16.mxu0 %v2609
    %2856 = vmatpush2.bf16.msra.mxu0 %v2608
    %2857 = vmatprep.subr.bf16.mxu0 %v2607
    %2858 = vmatpush2.bf16.msra.mxu0 %v2606
    %2859 = vmatprep.subr.bf16.mxu0 %v2605
    %2860 = vmatpush2.bf16.msra.mxu0 %v2604
    %2861 = vmatprep.mubr.bf16.mxu0 %v2187
    %2862 = vmatmul.mubr.bf16.gmra.mxu0 %v2186
    %v2863 = vpop.f32.mrf.mxu0
    %v2864 = vadd.f32 %v2751, %v2863
    %v2865 = vpop.f32.mrf.mxu0
    %v2866 = vadd.f32 %v2753, %v2865
    %v2867 = vpop.f32.mrf.mxu0
    %v2868 = vadd.f32 %v2755, %v2867
    %v2869 = vpop.f32.mrf.mxu0
    %v2870 = vadd.f32 %v2757, %v2869
    %2871 = vmatprep.mubr.bf16.mxu0 %v2192
    %2872 = vmatmul.mubr.bf16.gmra.mxu0 %v2191
    %v2873 = vpop.f32.mrf.mxu0
    %v2874 = vadd.f32 %v2761, %v2873
    %v2875 = vpop.f32.mrf.mxu0
    %v2876 = vadd.f32 %v2763, %v2875
    %v2877 = vpop.f32.mrf.mxu0
    %v2878 = vadd.f32 %v2765, %v2877
    %v2879 = vpop.f32.mrf.mxu0
    %v2880 = vadd.f32 %v2767, %v2879
    %2881 = vmatprep.mubr.bf16.mxu0 %v2197
    %2882 = vmatmul.mubr.bf16.gmra.mxu0 %v2196
    %v2883 = vpop.f32.mrf.mxu0
    %v2884 = vadd.f32 %v2771, %v2883
    %v2885 = vpop.f32.mrf.mxu0
    %v2886 = vadd.f32 %v2773, %v2885
    %v2887 = vpop.f32.mrf.mxu0
    %v2888 = vadd.f32 %v2775, %v2887
    %v2889 = vpop.f32.mrf.mxu0
    %v2890 = vadd.f32 %v2777, %v2889
    %2891 = vmatprep.mubr.bf16.mxu0 %v2202
    %2892 = vmatmul.mubr.bf16.gmra.mxu0 %v2201
    %v2893 = vpop.f32.mrf.mxu0
    %v2894 = vadd.f32 %v2781, %v2893
    %v2895 = vpop.f32.mrf.mxu0
    %v2896 = vadd.f32 %v2783, %v2895
    %v2897 = vpop.f32.mrf.mxu0
    %v2898 = vadd.f32 %v2785, %v2897
    %v2899 = vpop.f32.mrf.mxu0
    %v2900 = vadd.f32 %v2787, %v2899
    %2901 = vmatprep.mubr.bf16.mxu0 %v2207
    %2902 = vmatmul.mubr.bf16.gmra.mxu0 %v2206
    %v2903 = vpop.f32.mrf.mxu0
    %v2904 = vadd.f32 %v2791, %v2903
    %v2905 = vpop.f32.mrf.mxu0
    %v2906 = vadd.f32 %v2793, %v2905
    %v2907 = vpop.f32.mrf.mxu0
    %v2908 = vadd.f32 %v2795, %v2907
    %v2909 = vpop.f32.mrf.mxu0
    %v2910 = vadd.f32 %v2797, %v2909
    %2911 = vmatprep.mubr.bf16.mxu0 %v2212
    %2912 = vmatmul.mubr.bf16.gmra.mxu0 %v2211
    %v2913 = vpop.f32.mrf.mxu0
    %v2914 = vadd.f32 %v2801, %v2913
    %v2915 = vpop.f32.mrf.mxu0
    %v2916 = vadd.f32 %v2803, %v2915
    %v2917 = vpop.f32.mrf.mxu0
    %v2918 = vadd.f32 %v2805, %v2917
    %v2919 = vpop.f32.mrf.mxu0
    %v2920 = vadd.f32 %v2807, %v2919
    %2921 = vmatprep.mubr.bf16.mxu0 %v2217
    %2922 = vmatmul.mubr.bf16.gmra.mxu0 %v2216
    %v2923 = vpop.f32.mrf.mxu0
    %v2924 = vadd.f32 %v2811, %v2923
    %v2925 = vpop.f32.mrf.mxu0
    %v2926 = vadd.f32 %v2813, %v2925
    %v2927 = vpop.f32.mrf.mxu0
    %v2928 = vadd.f32 %v2815, %v2927
    %v2929 = vpop.f32.mrf.mxu0
    %v2930 = vadd.f32 %v2817, %v2929
    %2931 = vmatprep.mubr.bf16.mxu0 %v2222
    %2932 = vmatmul.mubr.bf16.gmra.mxu0 %v2221
    %v2933 = vpop.f32.mrf.mxu0
    %v2934 = vadd.f32 %v2821, %v2933
    %v2935 = vpop.f32.mrf.mxu0
    %v2936 = vadd.f32 %v2823, %v2935
    %v2937 = vpop.f32.mrf.mxu0
    %v2938 = vadd.f32 %v2825, %v2937
    %v2939 = vpop.f32.mrf.mxu0
    %v2940 = vadd.f32 %v2827, %v2939
    %2941 = vdwg.mxu0
    %2942 = vmatprep.subr.bf16.mxu0 %v2635
    %2943 = vmatpush1.bf16.msra.mxu0 %v2634
    %2944 = vmatprep.subr.bf16.mxu0 %v2633
    %2945 = vmatpush1.bf16.msra.mxu0 %v2632
    %2946 = vmatprep.subr.bf16.mxu0 %v2631
    %2947 = vmatpush1.bf16.msra.mxu0 %v2630
    %2948 = vmatprep.subr.bf16.mxu0 %v2629
    %2949 = vmatpush1.bf16.msra.mxu0 %v2628
    %2950 = vmatprep.subr.bf16.mxu0 %v2627
    %2951 = vmatpush1.bf16.msra.mxu0 %v2626
    %2952 = vmatprep.subr.bf16.mxu0 %v2625
    %2953 = vmatpush1.bf16.msra.mxu0 %v2624
    %2954 = vmatprep.subr.bf16.mxu0 %v2623
    %2955 = vmatpush1.bf16.msra.mxu0 %v2622
    %2956 = vmatprep.subr.bf16.mxu0 %v2621
    %2957 = vmatpush1.bf16.msra.mxu0 %v2620
    %2958 = vmatprep.subr.bf16.mxu0 0
    %2959 = vmatpush2.bf16.msra.mxu0 0
    %2960 = vmatprep.subr.bf16.mxu0 0
    %2961 = vmatpush2.bf16.msra.mxu0 0
    %2962 = vmatprep.subr.bf16.mxu0 0
    %2963 = vmatpush2.bf16.msra.mxu0 0
    %2964 = vmatprep.subr.bf16.mxu0 0
    %2965 = vmatpush2.bf16.msra.mxu0 0
    %2966 = vmatprep.subr.bf16.mxu0 0
    %2967 = vmatpush2.bf16.msra.mxu0 0
    %2968 = vmatprep.subr.bf16.mxu0 0
    %2969 = vmatpush2.bf16.msra.mxu0 0
    %2970 = vmatprep.subr.bf16.mxu0 0
    %2971 = vmatpush2.bf16.msra.mxu0 0
    %2972 = vmatprep.subr.bf16.mxu0 0
    %2973 = vmatpush2.bf16.msra.mxu0 0
    %2974 = vmatprep.mubr.bf16.mxu0 0
    %2975 = vmatmul.mubr.bf16.gmra.mxu0 %v2188
    %v2976 = vpop.f32.mrf.mxu0
    %v2977 = vadd.f32 %v2864, %v2976
    %v2978 = vpop.f32.mrf.mxu0
    %v2979 = vadd.f32 %v2866, %v2978
    %v2980 = vpop.f32.mrf.mxu0
    %v2981 = vadd.f32 %v2868, %v2980
    %v2982 = vpop.f32.mrf.mxu0
    %v2983 = vadd.f32 %v2870, %v2982
    %2984 = vmatprep.mubr.bf16.mxu0 0
    %2985 = vmatmul.mubr.bf16.gmra.mxu0 %v2193
    %v2986 = vpop.f32.mrf.mxu0
    %v2987 = vadd.f32 %v2874, %v2986
    %v2988 = vpop.f32.mrf.mxu0
    %v2989 = vadd.f32 %v2876, %v2988
    %v2990 = vpop.f32.mrf.mxu0
    %v2991 = vadd.f32 %v2878, %v2990
    %v2992 = vpop.f32.mrf.mxu0
    %v2993 = vadd.f32 %v2880, %v2992
    %2994 = vmatprep.mubr.bf16.mxu0 0
    %2995 = vmatmul.mubr.bf16.gmra.mxu0 %v2198
    %v2996 = vpop.f32.mrf.mxu0
    %v2997 = vadd.f32 %v2884, %v2996
    %v2998 = vpop.f32.mrf.mxu0
    %v2999 = vadd.f32 %v2886, %v2998
    %v3000 = vpop.f32.mrf.mxu0
    %v3001 = vadd.f32 %v2888, %v3000
    %v3002 = vpop.f32.mrf.mxu0
    %v3003 = vadd.f32 %v2890, %v3002
    %3004 = vmatprep.mubr.bf16.mxu0 0
    %3005 = vmatmul.mubr.bf16.gmra.mxu0 %v2203
    %v3006 = vpop.f32.mrf.mxu0
    %v3007 = vadd.f32 %v2894, %v3006
    %v3008 = vpop.f32.mrf.mxu0
    %v3009 = vadd.f32 %v2896, %v3008
    %v3010 = vpop.f32.mrf.mxu0
    %v3011 = vadd.f32 %v2898, %v3010
    %v3012 = vpop.f32.mrf.mxu0
    %v3013 = vadd.f32 %v2900, %v3012
    %3014 = vmatprep.mubr.bf16.mxu0 0
    %3015 = vmatmul.mubr.bf16.gmra.mxu0 %v2208
    %v3016 = vpop.f32.mrf.mxu0
    %v3017 = vadd.f32 %v2904, %v3016
    %v3018 = vpop.f32.mrf.mxu0
    %v3019 = vadd.f32 %v2906, %v3018
    %v3020 = vpop.f32.mrf.mxu0
    %v3021 = vadd.f32 %v2908, %v3020
    %v3022 = vpop.f32.mrf.mxu0
    %v3023 = vadd.f32 %v2910, %v3022
    %3024 = vmatprep.mubr.bf16.mxu0 0
    %3025 = vmatmul.mubr.bf16.gmra.mxu0 %v2213
    %v3026 = vpop.f32.mrf.mxu0
    %v3027 = vadd.f32 %v2914, %v3026
    %v3028 = vpop.f32.mrf.mxu0
    %v3029 = vadd.f32 %v2916, %v3028
    %v3030 = vpop.f32.mrf.mxu0
    %v3031 = vadd.f32 %v2918, %v3030
    %v3032 = vpop.f32.mrf.mxu0
    %v3033 = vadd.f32 %v2920, %v3032
    %3034 = vmatprep.mubr.bf16.mxu0 0
    %3035 = vmatmul.mubr.bf16.gmra.mxu0 %v2218
    %v3036 = vpop.f32.mrf.mxu0
    %v3037 = vadd.f32 %v2924, %v3036
    %v3038 = vpop.f32.mrf.mxu0
    %v3039 = vadd.f32 %v2926, %v3038
    %v3040 = vpop.f32.mrf.mxu0
    %v3041 = vadd.f32 %v2928, %v3040
    %v3042 = vpop.f32.mrf.mxu0
    %v3043 = vadd.f32 %v2930, %v3042
    %3044 = vmatprep.mubr.bf16.mxu0 0
    %3045 = vmatmul.mubr.bf16.gmra.mxu0 %v2223
    %v3046 = vpop.f32.mrf.mxu0
    %v3047 = vadd.f32 %v2934, %v3046
    %v3048 = vpop.f32.mrf.mxu0
    %v3049 = vadd.f32 %v2936, %v3048
    %v3050 = vpop.f32.mrf.mxu0
    %v3051 = vadd.f32 %v2938, %v3050
    %v3052 = vpop.f32.mrf.mxu0
    %v3053 = vadd.f32 %v2940, %v3052
    %3054 = vdwg.mxu0
    %v3055 = vmax.f32 %v2977, 0.0
    %v3056 = vmax.f32 %v2979, 0.0
    %v3057 = vmax.f32 %v2981, 0.0
    %v3058 = vmax.f32 %v2983, 0.0
    %v3059 = vmax.f32 %v2987, 0.0
    %v3060 = vmax.f32 %v2989, 0.0
    %v3061 = vmax.f32 %v2991, 0.0
    %v3062 = vmax.f32 %v2993, 0.0
    %v3063 = vmax.f32 %v2997, 0.0
    %v3064 = vmax.f32 %v2999, 0.0
    %v3065 = vmax.f32 %v3001, 0.0
    %v3066 = vmax.f32 %v3003, 0.0
    %v3067 = vmax.f32 %v3007, 0.0
    %v3068 = vmax.f32 %v3009, 0.0
    %v3069 = vmax.f32 %v3011, 0.0
    %v3070 = vmax.f32 %v3013, 0.0
    %v3071 = vmax.f32 %v3017, 0.0
    %v3072 = vmax.f32 %v3019, 0.0
    %v3073 = vmax.f32 %v3021, 0.0
    %v3074 = vmax.f32 %v3023, 0.0
    %v3075 = vmax.f32 %v3027, 0.0
    %v3076 = vmax.f32 %v3029, 0.0
    %v3077 = vmax.f32 %v3031, 0.0
    %v3078 = vmax.f32 %v3033, 0.0
    %v3079 = vmax.f32 %v3037, 0.0
    %v3080 = vmax.f32 %v3039, 0.0
    %v3081 = vmax.f32 %v3041, 0.0
    %v3082 = vmax.f32 %v3043, 0.0
    %v3083 = vmax.f32 %v3047, 0.0
    %v3084 = vmax.f32 %v3049, 0.0
    %v3085 = vmax.f32 %v3051, 0.0
    %v3086 = vmax.f32 %v3053, 0.0
    %v3087 = vmax.f32 %v3055, %v3056
    %v3088 = vmax.f32 %v3057, %v3058
    %v3089 = vmax.f32 %v3059, %v3060
    %v3090 = vmax.f32 %v3061, %v3062
    %v3091 = vmax.f32 %v3063, %v3064
    %v3092 = vmax.f32 %v3065, %v3066
    %v3093 = vmax.f32 %v3067, %v3068
    %v3094 = vmax.f32 %v3069, %v3070
    %v3095 = vmax.f32 %v3071, %v3072
    %v3096 = vmax.f32 %v3073, %v3074
    %v3097 = vmax.f32 %v3075, %v3076
    %v3098 = vmax.f32 %v3077, %v3078
    %v3099 = vmax.f32 %v3079, %v3080
    %v3100 = vmax.f32 %v3081, %v3082
    %v3101 = vmax.f32 %v3083, %v3084
    %v3102 = vmax.f32 %v3085, %v3086
    %3103 = vst [vmem:[#allocation6] sm:$0xff] %v3087
    %3104 = vst [vmem:[#allocation6 + $0x8] sm:$0xff] %v3088
    %3105 = vst [vmem:[#allocation6 + $0x10] sm:$0xff] %v3089
    %3106 = vst [vmem:[#allocation6 + $0x18] sm:$0xff] %v3090
    %3107 = vst [vmem:[#allocation6 + $0x20] sm:$0xff] %v3091
    %3108 = vst [vmem:[#allocation6 + $0x28] sm:$0xff] %v3092
    %3109 = vst [vmem:[#allocation6 + $0x30] sm:$0xff] %v3093
    %3110 = vst [vmem:[#allocation6 + $0x38] sm:$0xff] %v3094
    %3111 = vst [vmem:[#allocation6 + $0x40] sm:$0xff] %v3095
    %3112 = vst [vmem:[#allocation6 + $0x48] sm:$0xff] %v3096
    %3113 = vst [vmem:[#allocation6 + $0x50] sm:$0xff] %v3097
    %3114 = vst [vmem:[#allocation6 + $0x58] sm:$0xff] %v3098
    %3115 = vst [vmem:[#allocation6 + $0x60] sm:$0xff] %v3099
    %3116 = vst [vmem:[#allocation6 + $0x68] sm:$0xff] %v3100
    %3117 = vst [vmem:[#allocation6 + $0x70] sm:$0xff] %v3101
    %3118 = vst [vmem:[#allocation6 + $0x78] sm:$0xff] %v3102
    %v3119 = vld [vmem:[#allocation6] ss:$2 sm:$0xff]
    %s3120 = scalar_lea.vmem [#allocation6], 16
    %v3121 = vld [vmem:[%s3120] ss:$2 sm:$0xff]
    %s3122 = scalar_lea.vmem [#allocation6], 32
    %v3123 = vld [vmem:[%s3122] ss:$2 sm:$0xff]
    %s3124 = scalar_lea.vmem [#allocation6], 48
    %v3125 = vld [vmem:[%s3124] ss:$2 sm:$0xff]
    %s3126 = scalar_lea.vmem [#allocation6], 64
    %v3127 = vld [vmem:[%s3126] ss:$2 sm:$0xff]
    %s3128 = scalar_lea.vmem [#allocation6], 80
    %v3129 = vld [vmem:[%s3128] ss:$2 sm:$0xff]
    %s3130 = scalar_lea.vmem [#allocation6], 96
    %v3131 = vld [vmem:[%s3130] ss:$2 sm:$0xff]
    %s3132 = scalar_lea.vmem [#allocation6], 112
    %v3133 = vld [vmem:[%s3132] ss:$2 sm:$0xff]
    %s3134 = scalar_lea.vmem [#allocation6], 1
    %v3135 = vld [vmem:[%s3134] ss:$2 sm:$0xff]
    %s3136 = scalar_lea.vmem [#allocation6], 17
    %v3137 = vld [vmem:[%s3136] ss:$2 sm:$0xff]
    %s3138 = scalar_lea.vmem [#allocation6], 33
    %v3139 = vld [vmem:[%s3138] ss:$2 sm:$0xff]
    %s3140 = scalar_lea.vmem [#allocation6], 49
    %v3141 = vld [vmem:[%s3140] ss:$2 sm:$0xff]
    %s3142 = scalar_lea.vmem [#allocation6], 65
    %v3143 = vld [vmem:[%s3142] ss:$2 sm:$0xff]
    %s3144 = scalar_lea.vmem [#allocation6], 81
    %v3145 = vld [vmem:[%s3144] ss:$2 sm:$0xff]
    %s3146 = scalar_lea.vmem [#allocation6], 97
    %v3147 = vld [vmem:[%s3146] ss:$2 sm:$0xff]
    %s3148 = scalar_lea.vmem [#allocation6], 113
    %v3149 = vld [vmem:[%s3148] ss:$2 sm:$0xff]
    %v3150 = vmax.f32 %v3119, %v3135
    %v3151 = vmax.f32 %v3121, %v3137
    %v3152 = vmax.f32 %v3123, %v3139
    %v3153 = vmax.f32 %v3125, %v3141
    %v3154 = vmax.f32 %v3127, %v3143
    %v3155 = vmax.f32 %v3129, %v3145
    %v3156 = vmax.f32 %v3131, %v3147
    %v3157 = vmax.f32 %v3133, %v3149
    %3158 = vst [vmem:[#allocation7] sm:$0xff] %v3150
    %3159 = vst [vmem:[#allocation7 + $0x8] sm:$0xff] %v3151
    %3160 = vst [vmem:[#allocation7 + $0x10] sm:$0xff] %v3152
    %3161 = vst [vmem:[#allocation7 + $0x18] sm:$0xff] %v3153
    %3162 = vst [vmem:[#allocation7 + $0x20] sm:$0xff] %v3154
    %3163 = vst [vmem:[#allocation7 + $0x28] sm:$0xff] %v3155
    %3164 = vst [vmem:[#allocation7 + $0x30] sm:$0xff] %v3156
    %3165 = vst [vmem:[#allocation7 + $0x38] sm:$0xff] %v3157
    %v3166 = vld [vmem:[#allocation7] ss:$8 sm:$0xf]
    %v3167 = vld [vmem:[#allocation7] ss:$8 sm:$0xf0]
    %v3168 = vor.u32 %v3166, %v3167
    %3169 = vst [vmem:[#allocation8] sm:$0xff] %v3168
    %s3170 = scalar_lea.vmem [#allocation7], 1
    %v3171 = vld [vmem:[%s3170] ss:$8 sm:$0xf]
    %v3172 = vld [vmem:[%s3170] ss:$8 sm:$0xf0]
    %v3173 = vor.u32 %v3171, %v3172
    %3174 = vst [vmem:[#allocation8 + $0x8] sm:$0xff] %v3173
    %s3175 = scalar_lea.vmem [#allocation7], 2
    %v3176 = vld [vmem:[%s3175] ss:$8 sm:$0xf]
    %v3177 = vld [vmem:[%s3175] ss:$8 sm:$0xf0]
    %v3178 = vor.u32 %v3176, %v3177
    %3179 = vst [vmem:[#allocation8 + $0x10] sm:$0xff] %v3178
    %s3180 = scalar_lea.vmem [#allocation7], 3
    %v3181 = vld [vmem:[%s3180] ss:$8 sm:$0xf]
    %v3182 = vld [vmem:[%s3180] ss:$8 sm:$0xf0]
    %v3183 = vor.u32 %v3181, %v3182
    %3184 = vst [vmem:[#allocation8 + $0x18] sm:$0xff] %v3183
    %s3185 = scalar_lea.vmem [#allocation7], 4
    %v3186 = vld [vmem:[%s3185] ss:$8 sm:$0xf]
    %v3187 = vld [vmem:[%s3185] ss:$8 sm:$0xf0]
    %v3188 = vor.u32 %v3186, %v3187
    %3189 = vst [vmem:[#allocation8 + $0x20] sm:$0xff] %v3188
    %v3190 = vld [vmem:[#allocation8] sm:$0xff]
    %v3191 = vld [vmem:[#allocation8 + $0x8] sm:$0xff]
    %v3192 = vld [vmem:[#allocation8 + $0x10] sm:$0xff]
    %v3193 = vld [vmem:[#allocation8 + $0x18] sm:$0xff]
    %v3194 = vld [vmem:[#allocation8 + $0x20] sm:$0xff]
    %v3195 = vpack.c.bf16 %v3190, %v3190
    %v3196 = vpack.c.bf16 %v3191, %v3191
    %v3197 = vpack.c.bf16 %v3192, %v3192
    %v3198 = vpack.c.bf16 %v3193, %v3193
    %v3199 = vpack.c.bf16 %v3194, %v3194
    %v3200 = vld [vmem:[%s5] sm:$0xf]
    %v3201 = vld [vmem:[%s5 + $0x4] sm:$0xf]
    %v3202 = vld [vmem:[%s5 + $0x8] sm:$0xf]
    %v3203 = vld [vmem:[%s5 + $0xc] sm:$0xf]
    %v3204 = vld [vmem:[%s5 + $0x10] sm:$0xf]
    %v3205 = vld [vmem:[%s5 + $0x14] sm:$0xf]
    %v3206 = vld [vmem:[%s5 + $0x18] sm:$0xf]
    %v3207 = vld [vmem:[%s5 + $0x1c] sm:$0xf]
    %v3208 = vld [vmem:[%s5 + $0x20] sm:$0xf]
    %v3209 = vld [vmem:[%s5 + $0x24] sm:$0xf]
    %v3210 = vld [vmem:[%s5 + $0x28] sm:$0xf]
    %v3211 = vld [vmem:[%s5 + $0x2c] sm:$0xf]
    %v3212 = vld [vmem:[%s5 + $0x30] sm:$0xf]
    %v3213 = vld [vmem:[%s5 + $0x34] sm:$0xf]
    %v3214 = vld [vmem:[%s5 + $0x38] sm:$0xf]
    %v3215 = vld [vmem:[%s5 + $0x3c] sm:$0xf]
    %v3216 = vld [vmem:[%s5 + $0x40] sm:$0xf]
    %v3217 = vld [vmem:[%s5 + $0x44] sm:$0xf]
    %v3218 = vld [vmem:[%s5 + $0x48] sm:$0xf]
    %v3219 = vld [vmem:[%s5 + $0x4c] sm:$0xf]
    %v3220 = vld [vmem:[%s5 + $0x50] sm:$0xf]
    %v3221 = vld [vmem:[%s5 + $0x54] sm:$0xf]
    %v3222 = vld [vmem:[%s5 + $0x58] sm:$0xf]
    %v3223 = vld [vmem:[%s5 + $0x5c] sm:$0xf]
    %v3224 = vld [vmem:[%s5 + $0x60] sm:$0xf]
    %v3225 = vld [vmem:[%s5 + $0x64] sm:$0xf]
    %v3226 = vld [vmem:[%s5 + $0x68] sm:$0xf]
    %v3227 = vld [vmem:[%s5 + $0x6c] sm:$0xf]
    %v3228 = vld [vmem:[%s5 + $0x70] sm:$0xf]
    %v3229 = vld [vmem:[%s5 + $0x74] sm:$0xf]
    %v3230 = vld [vmem:[%s5 + $0x78] sm:$0xf]
    %v3231 = vld [vmem:[%s5 + $0x7c] sm:$0xf]
    %v3232 = vld [vmem:[%s5 + $0x80] sm:$0xf]
    %v3233 = vld [vmem:[%s5 + $0x84] sm:$0xf]
    %v3234 = vld [vmem:[%s5 + $0x88] sm:$0xf]
    %v3235 = vld [vmem:[%s5 + $0x8c] sm:$0xf]
    %v3236 = vld [vmem:[%s5 + $0x90] sm:$0xf]
    %v3237 = vld [vmem:[%s5 + $0x94] sm:$0xf]
    %v3238 = vld [vmem:[%s5 + $0x98] sm:$0xf]
    %v3239 = vld [vmem:[%s5 + $0x9c] sm:$0xf]
    %v3240 = vld [vmem:[%s5 + $0xa0] sm:$0xf]
    %v3241 = vld [vmem:[%s5 + $0xa4] sm:$0xf]
    %v3242 = vld [vmem:[%s5 + $0xa8] sm:$0xf]
    %v3243 = vld [vmem:[%s5 + $0xac] sm:$0xf]
    %v3244 = vld [vmem:[%s5 + $0xb0] sm:$0xf]
    %v3245 = vld [vmem:[%s5 + $0xb4] sm:$0xf]
    %v3246 = vld [vmem:[%s5 + $0xb8] sm:$0xf]
    %v3247 = vld [vmem:[%s5 + $0xbc] sm:$0xf]
    %v3248 = vld [vmem:[%s5 + $0xc0] sm:$0xf]
    %v3249 = vld [vmem:[%s5 + $0xc4] sm:$0xf]
    %v3250 = vld [vmem:[%s5 + $0xc8] sm:$0xf]
    %v3251 = vld [vmem:[%s5 + $0xcc] sm:$0xf]
    %v3252 = vld [vmem:[%s5 + $0xd0] sm:$0xf]
    %v3253 = vld [vmem:[%s5 + $0xd4] sm:$0xf]
    %v3254 = vld [vmem:[%s5 + $0xd8] sm:$0xf]
    %v3255 = vld [vmem:[%s5 + $0xdc] sm:$0xf]
    %v3256 = vld [vmem:[%s5 + $0xe0] sm:$0xf]
    %v3257 = vld [vmem:[%s5 + $0xe4] sm:$0xf]
    %v3258 = vld [vmem:[%s5 + $0xe8] sm:$0xf]
    %v3259 = vld [vmem:[%s5 + $0xec] sm:$0xf]
    %v3260 = vld [vmem:[%s5 + $0xf0] sm:$0xf]
    %v3261 = vld [vmem:[%s5 + $0xf4] sm:$0xf]
    %v3262 = vld [vmem:[%s5 + $0xf8] sm:$0xf]
    %v3263 = vld [vmem:[%s5 + $0xfc] sm:$0xf]
    %v3264 = vld [vmem:[%s5 + $0x100] sm:$0xf]
    %v3265 = vld [vmem:[%s5 + $0x104] sm:$0xf]
    %v3266 = vld [vmem:[%s5 + $0x108] sm:$0xf]
    %v3267 = vld [vmem:[%s5 + $0x10c] sm:$0xf]
    %v3268 = vld [vmem:[%s5 + $0x110] sm:$0xf]
    %v3269 = vld [vmem:[%s5 + $0x114] sm:$0xf]
    %v3270 = vld [vmem:[%s5 + $0x118] sm:$0xf]
    %v3271 = vld [vmem:[%s5 + $0x11c] sm:$0xf]
    %v3272 = vld [vmem:[%s5 + $0x120] sm:$0xf]
    %v3273 = vld [vmem:[%s5 + $0x124] sm:$0xf]
    %v3274 = vld [vmem:[%s5 + $0x128] sm:$0xf]
    %v3275 = vld [vmem:[%s5 + $0x12c] sm:$0xf]
    %v3276 = vld [vmem:[%s5 + $0x130] sm:$0xf]
    %v3277 = vld [vmem:[%s5 + $0x134] sm:$0xf]
    %v3278 = vld [vmem:[%s5 + $0x138] sm:$0xf]
    %v3279 = vld [vmem:[%s5 + $0x13c] sm:$0xf]
    %v3280 = vld [vmem:[%s6] sm:$0x1]
    %v3282 = vlaneseq
    %v3283 = vshrl.u32 %v3282, 7
    %v3284 = vsub.s32 0, %v3283
    %v3285 = vrot.slane %v3280, %v3284
    %v3367 = vunpack.c.l.b16 %v3200
    %v3368 = vunpack.c.l.b16 %v3201
    %v3369 = vunpack.c.l.b16 %v3202
    %v3370 = vunpack.c.l.b16 %v3203
    %v3371 = vunpack.c.l.b16 %v3204
    %v3372 = vunpack.c.l.b16 %v3205
    %v3373 = vunpack.c.l.b16 %v3206
    %v3374 = vunpack.c.l.b16 %v3207
    %v3375 = vunpack.c.l.b16 %v3208
    %v3376 = vunpack.c.l.b16 %v3209
    %v3377 = vunpack.c.l.b16 %v3210
    %v3378 = vunpack.c.l.b16 %v3211
    %v3379 = vunpack.c.l.b16 %v3212
    %v3380 = vunpack.c.l.b16 %v3213
    %v3381 = vunpack.c.l.b16 %v3214
    %v3382 = vunpack.c.l.b16 %v3215
    %v3383 = vunpack.c.l.b16 %v3216
    %v3384 = vunpack.c.l.b16 %v3217
    %v3385 = vunpack.c.l.b16 %v3218
    %v3386 = vunpack.c.l.b16 %v3219
    %v3387 = vunpack.c.l.b16 %v3220
    %v3388 = vunpack.c.l.b16 %v3221
    %v3389 = vunpack.c.l.b16 %v3222
    %v3390 = vunpack.c.l.b16 %v3223
    %v3391 = vunpack.c.l.b16 %v3224
    %v3392 = vunpack.c.l.b16 %v3225
    %v3393 = vunpack.c.l.b16 %v3226
    %v3394 = vunpack.c.l.b16 %v3227
    %v3395 = vunpack.c.l.b16 %v3228
    %v3396 = vunpack.c.l.b16 %v3229
    %v3397 = vunpack.c.l.b16 %v3230
    %v3398 = vunpack.c.l.b16 %v3231
    %v3399 = vunpack.c.l.b16 %v3232
    %v3400 = vunpack.c.l.b16 %v3233
    %v3401 = vunpack.c.l.b16 %v3234
    %v3402 = vunpack.c.l.b16 %v3235
    %v3403 = vunpack.c.l.b16 %v3236
    %v3404 = vunpack.c.l.b16 %v3237
    %v3405 = vunpack.c.l.b16 %v3238
    %v3406 = vunpack.c.l.b16 %v3239
    %v3407 = vunpack.c.l.b16 %v3240
    %v3408 = vunpack.c.l.b16 %v3241
    %v3409 = vunpack.c.l.b16 %v3242
    %v3410 = vunpack.c.l.b16 %v3243
    %v3411 = vunpack.c.l.b16 %v3244
    %v3412 = vunpack.c.l.b16 %v3245
    %v3413 = vunpack.c.l.b16 %v3246
    %v3414 = vunpack.c.l.b16 %v3247
    %v3415 = vunpack.c.l.b16 %v3248
    %v3416 = vunpack.c.l.b16 %v3249
    %v3417 = vunpack.c.l.b16 %v3250
    %v3418 = vunpack.c.l.b16 %v3251
    %v3419 = vunpack.c.l.b16 %v3252
    %v3420 = vunpack.c.l.b16 %v3253
    %v3421 = vunpack.c.l.b16 %v3254
    %v3422 = vunpack.c.l.b16 %v3255
    %v3423 = vunpack.c.l.b16 %v3256
    %v3424 = vunpack.c.l.b16 %v3257
    %v3425 = vunpack.c.l.b16 %v3258
    %v3426 = vunpack.c.l.b16 %v3259
    %v3427 = vunpack.c.l.b16 %v3260
    %v3428 = vunpack.c.l.b16 %v3261
    %v3429 = vunpack.c.l.b16 %v3262
    %v3430 = vunpack.c.l.b16 %v3263
    %v3431 = vunpack.c.l.b16 %v3264
    %v3432 = vunpack.c.l.b16 %v3265
    %v3433 = vunpack.c.l.b16 %v3266
    %v3434 = vunpack.c.l.b16 %v3267
    %v3435 = vunpack.c.l.b16 %v3268
    %v3436 = vunpack.c.l.b16 %v3269
    %v3437 = vunpack.c.l.b16 %v3270
    %v3438 = vunpack.c.l.b16 %v3271
    %v3439 = vunpack.c.l.b16 %v3272
    %v3440 = vunpack.c.l.b16 %v3273
    %v3441 = vunpack.c.l.b16 %v3274
    %v3442 = vunpack.c.l.b16 %v3275
    %v3443 = vunpack.c.l.b16 %v3276
    %v3444 = vunpack.c.l.b16 %v3277
    %v3445 = vunpack.c.l.b16 %v3278
    %v3446 = vunpack.c.l.b16 %v3279
    %v3447 = vpack.c.b16 %v3368, %v3367
    %v3448 = vpack.c.b16 %v3370, %v3369
    %v3449 = vpack.c.b16 %v3372, %v3371
    %v3450 = vpack.c.b16 %v3374, %v3373
    %v3451 = vpack.c.b16 %v3376, %v3375
    %v3452 = vpack.c.b16 %v3378, %v3377
    %v3453 = vpack.c.b16 %v3380, %v3379
    %v3454 = vpack.c.b16 %v3382, %v3381
    %v3455 = vpack.c.b16 %v3384, %v3383
    %v3456 = vpack.c.b16 %v3386, %v3385
    %v3457 = vpack.c.b16 %v3388, %v3387
    %v3458 = vpack.c.b16 %v3390, %v3389
    %v3459 = vpack.c.b16 %v3392, %v3391
    %v3460 = vpack.c.b16 %v3394, %v3393
    %v3461 = vpack.c.b16 %v3396, %v3395
    %v3462 = vpack.c.b16 %v3398, %v3397
    %v3463 = vpack.c.b16 %v3400, %v3399
    %v3464 = vpack.c.b16 %v3402, %v3401
    %v3465 = vpack.c.b16 %v3404, %v3403
    %v3466 = vpack.c.b16 %v3406, %v3405
    %v3467 = vpack.c.b16 %v3408, %v3407
    %v3468 = vpack.c.b16 %v3410, %v3409
    %v3469 = vpack.c.b16 %v3412, %v3411
    %v3470 = vpack.c.b16 %v3414, %v3413
    %v3471 = vpack.c.b16 %v3416, %v3415
    %v3472 = vpack.c.b16 %v3418, %v3417
    %v3473 = vpack.c.b16 %v3420, %v3419
    %v3474 = vpack.c.b16 %v3422, %v3421
    %v3475 = vpack.c.b16 %v3424, %v3423
    %v3476 = vpack.c.b16 %v3426, %v3425
    %v3477 = vpack.c.b16 %v3428, %v3427
    %v3478 = vpack.c.b16 %v3430, %v3429
    %v3479 = vpack.c.b16 %v3432, %v3431
    %v3480 = vpack.c.b16 %v3434, %v3433
    %v3481 = vpack.c.b16 %v3436, %v3435
    %v3482 = vpack.c.b16 %v3438, %v3437
    %v3483 = vpack.c.b16 %v3440, %v3439
    %v3484 = vpack.c.b16 %v3442, %v3441
    %v3485 = vpack.c.b16 %v3444, %v3443
    %v3486 = vpack.c.b16 %v3446, %v3445
    %3527 = vmatprep.subr.bf16.mxu0 0
    %3528 = vmatpush1.bf16.msra.mxu0 %v3454
    %3529 = vmatprep.subr.bf16.mxu0 0
    %3530 = vmatpush1.bf16.msra.mxu0 %v3453
    %3531 = vmatprep.subr.bf16.mxu0 0
    %3532 = vmatpush1.bf16.msra.mxu0 %v3452
    %3533 = vmatprep.subr.bf16.mxu0 0
    %3534 = vmatpush1.bf16.msra.mxu0 %v3451
    %3535 = vmatprep.subr.bf16.mxu0 0
    %3536 = vmatpush1.bf16.msra.mxu0 %v3450
    %3537 = vmatprep.subr.bf16.mxu0 0
    %3538 = vmatpush1.bf16.msra.mxu0 %v3449
    %3539 = vmatprep.subr.bf16.mxu0 0
    %3540 = vmatpush1.bf16.msra.mxu0 %v3448
    %3541 = vmatprep.subr.bf16.mxu0 0
    %3542 = vmatpush1.bf16.msra.mxu0 %v3447
    %3543 = vmatprep.subr.bf16.mxu0 0
    %3544 = vmatpush2.bf16.msra.mxu0 %v3462
    %3545 = vmatprep.subr.bf16.mxu0 0
    %3546 = vmatpush2.bf16.msra.mxu0 %v3461
    %3547 = vmatprep.subr.bf16.mxu0 0
    %3548 = vmatpush2.bf16.msra.mxu0 %v3460
    %3549 = vmatprep.subr.bf16.mxu0 0
    %3550 = vmatpush2.bf16.msra.mxu0 %v3459
    %3551 = vmatprep.subr.bf16.mxu0 0
    %3552 = vmatpush2.bf16.msra.mxu0 %v3458
    %3553 = vmatprep.subr.bf16.mxu0 0
    %3554 = vmatpush2.bf16.msra.mxu0 %v3457
    %3555 = vmatprep.subr.bf16.mxu0 0
    %3556 = vmatpush2.bf16.msra.mxu0 %v3456
    %3557 = vmatprep.subr.bf16.mxu0 0
    %3558 = vmatpush2.bf16.msra.mxu0 %v3455
    %3559 = vmatprep.mubr.bf16.mxu0 %v3196
    %3560 = vmatmul.mubr.bf16.gmra.mxu0 %v3195
    %v3561 = vpop.f32.mrf.mxu0
    %v3562 = vadd.f32 %v3285, %v3561
    %v3563 = vpop.f32.mrf.mxu0
    %v3564 = vpop.f32.mrf.mxu0
    %v3565 = vpop.f32.mrf.mxu0
    %3566 = vdwg.mxu0
    %3567 = vmatprep.subr.bf16.mxu0 0
    %3568 = vmatpush1.bf16.msra.mxu0 %v3470
    %3569 = vmatprep.subr.bf16.mxu0 0
    %3570 = vmatpush1.bf16.msra.mxu0 %v3469
    %3571 = vmatprep.subr.bf16.mxu0 0
    %3572 = vmatpush1.bf16.msra.mxu0 %v3468
    %3573 = vmatprep.subr.bf16.mxu0 0
    %3574 = vmatpush1.bf16.msra.mxu0 %v3467
    %3575 = vmatprep.subr.bf16.mxu0 0
    %3576 = vmatpush1.bf16.msra.mxu0 %v3466
    %3577 = vmatprep.subr.bf16.mxu0 0
    %3578 = vmatpush1.bf16.msra.mxu0 %v3465
    %3579 = vmatprep.subr.bf16.mxu0 0
    %3580 = vmatpush1.bf16.msra.mxu0 %v3464
    %3581 = vmatprep.subr.bf16.mxu0 0
    %3582 = vmatpush1.bf16.msra.mxu0 %v3463
    %3583 = vmatprep.subr.bf16.mxu0 0
    %3584 = vmatpush2.bf16.msra.mxu0 %v3478
    %3585 = vmatprep.subr.bf16.mxu0 0
    %3586 = vmatpush2.bf16.msra.mxu0 %v3477
    %3587 = vmatprep.subr.bf16.mxu0 0
    %3588 = vmatpush2.bf16.msra.mxu0 %v3476
    %3589 = vmatprep.subr.bf16.mxu0 0
    %3590 = vmatpush2.bf16.msra.mxu0 %v3475
    %3591 = vmatprep.subr.bf16.mxu0 0
    %3592 = vmatpush2.bf16.msra.mxu0 %v3474
    %3593 = vmatprep.subr.bf16.mxu0 0
    %3594 = vmatpush2.bf16.msra.mxu0 %v3473
    %3595 = vmatprep.subr.bf16.mxu0 0
    %3596 = vmatpush2.bf16.msra.mxu0 %v3472
    %3597 = vmatprep.subr.bf16.mxu0 0
    %3598 = vmatpush2.bf16.msra.mxu0 %v3471
    %3599 = vmatprep.mubr.bf16.mxu0 %v3198
    %3600 = vmatmul.mubr.bf16.gmra.mxu0 %v3197
    %v3601 = vpop.f32.mrf.mxu0
    %v3602 = vadd.f32 %v3562, %v3601
    %v3603 = vpop.f32.mrf.mxu0
    %v3604 = vpop.f32.mrf.mxu0
    %v3605 = vpop.f32.mrf.mxu0
    %3606 = vdwg.mxu0
    %3607 = vmatprep.subr.bf16.mxu0 0
    %3608 = vmatpush1.bf16.msra.mxu0 %v3486
    %3609 = vmatprep.subr.bf16.mxu0 0
    %3610 = vmatpush1.bf16.msra.mxu0 %v3485
    %3611 = vmatprep.subr.bf16.mxu0 0
    %3612 = vmatpush1.bf16.msra.mxu0 %v3484
    %3613 = vmatprep.subr.bf16.mxu0 0
    %3614 = vmatpush1.bf16.msra.mxu0 %v3483
    %3615 = vmatprep.subr.bf16.mxu0 0
    %3616 = vmatpush1.bf16.msra.mxu0 %v3482
    %3617 = vmatprep.subr.bf16.mxu0 0
    %3618 = vmatpush1.bf16.msra.mxu0 %v3481
    %3619 = vmatprep.subr.bf16.mxu0 0
    %3620 = vmatpush1.bf16.msra.mxu0 %v3480
    %3621 = vmatprep.subr.bf16.mxu0 0
    %3622 = vmatpush1.bf16.msra.mxu0 %v3479
    %3623 = vmatprep.subr.bf16.mxu0 0
    %3624 = vmatpush2.bf16.msra.mxu0 0
    %3625 = vmatprep.subr.bf16.mxu0 0
    %3626 = vmatpush2.bf16.msra.mxu0 0
    %3627 = vmatprep.subr.bf16.mxu0 0
    %3628 = vmatpush2.bf16.msra.mxu0 0
    %3629 = vmatprep.subr.bf16.mxu0 0
    %3630 = vmatpush2.bf16.msra.mxu0 0
    %3631 = vmatprep.subr.bf16.mxu0 0
    %3632 = vmatpush2.bf16.msra.mxu0 0
    %3633 = vmatprep.subr.bf16.mxu0 0
    %3634 = vmatpush2.bf16.msra.mxu0 0
    %3635 = vmatprep.subr.bf16.mxu0 0
    %3636 = vmatpush2.bf16.msra.mxu0 0
    %3637 = vmatprep.subr.bf16.mxu0 0
    %3638 = vmatpush2.bf16.msra.mxu0 0
    %3639 = vmatprep.mubr.bf16.mxu0 0
    %3640 = vmatmul.mubr.bf16.gmra.mxu0 %v3199
    %v3641 = vpop.f32.mrf.mxu0
    %v3642 = vadd.f32 %v3602, %v3641
    %v3643 = vpop.f32.mrf.mxu0
    %v3644 = vpop.f32.mrf.mxu0
    %v3645 = vpop.f32.mrf.mxu0
    %3646 = vdwg.mxu0
    %v3647 = vmax.f32 %v3642, 0.0
    %v3648 = vpack.c.bf16 %v3647, %v3647
    %v3649 = vld [vmem:[#allocation11] sm:$0xf]
    %v3650 = vld [vmem:[#allocation11 + $0x4] sm:$0xf]
    %v3651 = vld [vmem:[#allocation11 + $0x8] sm:$0xf]
    %v3652 = vld [vmem:[#allocation11 + $0xc] sm:$0xf]
    %v3653 = vld [vmem:[#allocation11 + $0x10] sm:$0xf]
    %v3654 = vld [vmem:[#allocation11 + $0x14] sm:$0xf]
    %v3655 = vld [vmem:[#allocation11 + $0x18] sm:$0xf]
    %v3656 = vld [vmem:[#allocation11 + $0x1c] sm:$0xf]
    %v3657 = vld [vmem:[#allocation11 + $0x20] sm:$0xf]
    %v3658 = vld [vmem:[#allocation11 + $0x24] sm:$0xf]
    %v3659 = vld [vmem:[#allocation11 + $0x28] sm:$0xf]
    %v3660 = vld [vmem:[#allocation11 + $0x2c] sm:$0xf]
    %v3661 = vld [vmem:[#allocation11 + $0x30] sm:$0xf]
    %v3662 = vld [vmem:[#allocation11 + $0x34] sm:$0xf]
    %v3663 = vld [vmem:[#allocation11 + $0x38] sm:$0xf]
    %v3664 = vld [vmem:[#allocation11 + $0x3c] sm:$0xf]
    %v3665 = vld [vmem:[%s8] sm:$0x1]
    %v3667 = vlaneseq
    %v3668 = vshrl.u32 %v3667, 7
    %v3669 = vsub.s32 0, %v3668
    %v3670 = vrot.slane %v3665, %v3669
    %v3688 = vunpack.c.l.b16 %v3649
    %v3689 = vunpack.c.l.b16 %v3650
    %v3690 = vunpack.c.l.b16 %v3651
    %v3691 = vunpack.c.l.b16 %v3652
    %v3692 = vunpack.c.l.b16 %v3653
    %v3693 = vunpack.c.l.b16 %v3654
    %v3694 = vunpack.c.l.b16 %v3655
    %v3695 = vunpack.c.l.b16 %v3656
    %v3696 = vunpack.c.l.b16 %v3657
    %v3697 = vunpack.c.l.b16 %v3658
    %v3698 = vunpack.c.l.b16 %v3659
    %v3699 = vunpack.c.l.b16 %v3660
    %v3700 = vunpack.c.l.b16 %v3661
    %v3701 = vunpack.c.l.b16 %v3662
    %v3702 = vunpack.c.l.b16 %v3663
    %v3703 = vunpack.c.l.b16 %v3664
    %v3704 = vpack.c.b16 %v3689, %v3688
    %v3705 = vpack.c.b16 %v3691, %v3690
    %v3706 = vpack.c.b16 %v3693, %v3692
    %v3707 = vpack.c.b16 %v3695, %v3694
    %v3708 = vpack.c.b16 %v3697, %v3696
    %v3709 = vpack.c.b16 %v3699, %v3698
    %v3710 = vpack.c.b16 %v3701, %v3700
    %v3711 = vpack.c.b16 %v3703, %v3702
    %3720 = vmatprep.subr.bf16.mxu0 0
    %3721 = vmatpush1.bf16.msra.mxu0 %v3711
    %3722 = vmatprep.subr.bf16.mxu0 0
    %3723 = vmatpush1.bf16.msra.mxu0 %v3710
    %3724 = vmatprep.subr.bf16.mxu0 0
    %3725 = vmatpush1.bf16.msra.mxu0 %v3709
    %3726 = vmatprep.subr.bf16.mxu0 0
    %3727 = vmatpush1.bf16.msra.mxu0 %v3708
    %3728 = vmatprep.subr.bf16.mxu0 0
    %3729 = vmatpush1.bf16.msra.mxu0 %v3707
    %3730 = vmatprep.subr.bf16.mxu0 0
    %3731 = vmatpush1.bf16.msra.mxu0 %v3706
    %3732 = vmatprep.subr.bf16.mxu0 0
    %3733 = vmatpush1.bf16.msra.mxu0 %v3705
    %3734 = vmatprep.subr.bf16.mxu0 0
    %3735 = vmatpush1.bf16.msra.mxu0 %v3704
    %3736 = vmatprep.subr.bf16.mxu0 0
    %3737 = vmatpush2.bf16.msra.mxu0 0
    %3738 = vmatprep.subr.bf16.mxu0 0
    %3739 = vmatpush2.bf16.msra.mxu0 0
    %3740 = vmatprep.subr.bf16.mxu0 0
    %3741 = vmatpush2.bf16.msra.mxu0 0
    %3742 = vmatprep.subr.bf16.mxu0 0
    %3743 = vmatpush2.bf16.msra.mxu0 0
    %3744 = vmatprep.subr.bf16.mxu0 0
    %3745 = vmatpush2.bf16.msra.mxu0 0
    %3746 = vmatprep.subr.bf16.mxu0 0
    %3747 = vmatpush2.bf16.msra.mxu0 0
    %3748 = vmatprep.subr.bf16.mxu0 0
    %3749 = vmatpush2.bf16.msra.mxu0 0
    %3750 = vmatprep.subr.bf16.mxu0 0
    %3751 = vmatpush2.bf16.msra.mxu0 0
    %3752 = vmatprep.mubr.bf16.mxu0 0
    %3753 = vmatmul.mubr.bf16.gmra.mxu0 %v3648
    %v3754 = vpop.f32.mrf.mxu0
    %v3755 = vadd.f32 %v3670, %v3754
    %v3756 = vpop.f32.mrf.mxu0
    %v3757 = vpop.f32.mrf.mxu0
    %v3758 = vpop.f32.mrf.mxu0
    %3759 = vdwg.mxu0
    %v3760 = vmax.f32 %v3755, 0.0
    %v3761 = vpack.c.bf16 %v3760, %v3760
    %v3762 = vld [vmem:[#allocation13] sm:$0xf]
    %v3763 = vld [vmem:[#allocation13 + $0x4] sm:$0xf]
    %v3764 = vld [vmem:[#allocation13 + $0x8] sm:$0xf]
    %v3765 = vld [vmem:[#allocation13 + $0xc] sm:$0xf]
    %v3766 = vld [vmem:[#allocation13 + $0x10] sm:$0xf]
    %v3767 = vld [vmem:[#allocation13 + $0x14] sm:$0xf]
    %v3768 = vld [vmem:[#allocation13 + $0x18] sm:$0xf]
    %v3769 = vld [vmem:[#allocation13 + $0x1c] sm:$0xf]
    %v3770 = vld [vmem:[#allocation13 + $0x20] sm:$0xf]
    %v3771 = vld [vmem:[#allocation13 + $0x24] sm:$0xf]
    %v3772 = vld [vmem:[#allocation13 + $0x28] sm:$0xf]
    %v3773 = vld [vmem:[#allocation13 + $0x2c] sm:$0xf]
    %v3774 = vld [vmem:[#allocation13 + $0x30] sm:$0xf]
    %v3775 = vld [vmem:[#allocation13 + $0x34] sm:$0xf]
    %v3776 = vld [vmem:[#allocation13 + $0x38] sm:$0xf]
    %v3777 = vld [vmem:[#allocation13 + $0x3c] sm:$0xf]
    %v3778 = vld [vmem:[%s10] sm:$0x1]
    %v3780 = vlaneseq
    %v3781 = vshrl.u32 %v3780, 7
    %v3782 = vsub.s32 0, %v3781
    %v3783 = vrot.slane %v3778, %v3782
    %v3801 = vunpack.c.l.b16 %v3762
    %v3802 = vunpack.c.l.b16 %v3763
    %v3803 = vunpack.c.l.b16 %v3764
    %v3804 = vunpack.c.l.b16 %v3765
    %v3805 = vunpack.c.l.b16 %v3766
    %v3806 = vunpack.c.l.b16 %v3767
    %v3807 = vunpack.c.l.b16 %v3768
    %v3808 = vunpack.c.l.b16 %v3769
    %v3809 = vunpack.c.l.b16 %v3770
    %v3810 = vunpack.c.l.b16 %v3771
    %v3811 = vunpack.c.l.b16 %v3772
    %v3812 = vunpack.c.l.b16 %v3773
    %v3813 = vunpack.c.l.b16 %v3774
    %v3814 = vunpack.c.l.b16 %v3775
    %v3815 = vunpack.c.l.b16 %v3776
    %v3816 = vunpack.c.l.b16 %v3777
    %v3817 = vpack.c.b16 %v3802, %v3801
    %v3818 = vpack.c.b16 %v3804, %v3803
    %v3819 = vpack.c.b16 %v3806, %v3805
    %v3820 = vpack.c.b16 %v3808, %v3807
    %v3821 = vpack.c.b16 %v3810, %v3809
    %v3822 = vpack.c.b16 %v3812, %v3811
    %v3823 = vpack.c.b16 %v3814, %v3813
    %v3824 = vpack.c.b16 %v3816, %v3815
    %3833 = vmatprep.subr.bf16.mxu0 0
    %3834 = vmatpush1.bf16.msra.mxu0 %v3824
    %3835 = vmatprep.subr.bf16.mxu0 0
    %3836 = vmatpush1.bf16.msra.mxu0 %v3823
    %3837 = vmatprep.subr.bf16.mxu0 0
    %3838 = vmatpush1.bf16.msra.mxu0 %v3822
    %3839 = vmatprep.subr.bf16.mxu0 0
    %3840 = vmatpush1.bf16.msra.mxu0 %v3821
    %3841 = vmatprep.subr.bf16.mxu0 0
    %3842 = vmatpush1.bf16.msra.mxu0 %v3820
    %3843 = vmatprep.subr.bf16.mxu0 0
    %3844 = vmatpush1.bf16.msra.mxu0 %v3819
    %3845 = vmatprep.subr.bf16.mxu0 0
    %3846 = vmatpush1.bf16.msra.mxu0 %v3818
    %3847 = vmatprep.subr.bf16.mxu0 0
    %3848 = vmatpush1.bf16.msra.mxu0 %v3817
    %3849 = vmatprep.subr.bf16.mxu0 0
    %3850 = vmatpush2.bf16.msra.mxu0 0
    %3851 = vmatprep.subr.bf16.mxu0 0
    %3852 = vmatpush2.bf16.msra.mxu0 0
    %3853 = vmatprep.subr.bf16.mxu0 0
    %3854 = vmatpush2.bf16.msra.mxu0 0
    %3855 = vmatprep.subr.bf16.mxu0 0
    %3856 = vmatpush2.bf16.msra.mxu0 0
    %3857 = vmatprep.subr.bf16.mxu0 0
    %3858 = vmatpush2.bf16.msra.mxu0 0
    %3859 = vmatprep.subr.bf16.mxu0 0
    %3860 = vmatpush2.bf16.msra.mxu0 0
    %3861 = vmatprep.subr.bf16.mxu0 0
    %3862 = vmatpush2.bf16.msra.mxu0 0
    %3863 = vmatprep.subr.bf16.mxu0 0
    %3864 = vmatpush2.bf16.msra.mxu0 0
    %3865 = vmatprep.mubr.bf16.mxu0 0
    %3866 = vmatmul.mubr.bf16.gmra.mxu0 %v3761
    %v3867 = vpop.f32.mrf.mxu0
    %v3868 = vadd.f32 %v3783, %v3867
    %v3869 = vpop.f32.mrf.mxu0
    %v3870 = vpop.f32.mrf.mxu0
    %v3871 = vpop.f32.mrf.mxu0
    %3872 = vdwg.mxu0
    %3873 = vst [vmem:[%s11] sm:$0xff] %v3868
    // Predicated region
    $region58: #{net_forward.1} parent=1 // pred_check
      _
    $region59: #{net_forward.1} parent=1 // pred_check_branch
      %3875 = sbr.rel (0) target = $region61
    $region60: #{net_forward.1} parent=1 // pred_region
      _
    $region61: #{net_forward.1} parent=1 // pred_fallthru
      _
    // Predicated region
    $region62: #{net_forward.1} parent=1 // pred_check
      _
    $region63: #{net_forward.1} parent=1 // pred_check_branch
      %3877 = sbr.rel (0) target = $region65
    $region64: #{net_forward.1} parent=1 // pred_region
      _
    $region65: #{net_forward.1} parent=1 // pred_fallthru
      _
    %3878 = vsyncpa [#allocation10], 1
    %3879 = vsyncpa [#allocation12], 1

</llo_original>
